<compile_context>
chip_gen: v5e
topology: v5e:2x2
jax: 0.10.0
libtpu: 0.0.40
codegen_flags: <defaults>
</compile_context>

<pallas_src>
import functools

import jax
import jax.numpy as jnp
from jax import lax
from jax.experimental import pallas as pl
from jax.experimental.pallas import tpu as pltpu


def _gru_kernel(
    # inputs
    x_ref,        # (S, TB, D)  f32, time-major input block
    w0_ref,       # (D, D)      init_linear weight (transposed), proj dtype
    b0_ref,       # (1, D)      f32
    wih0_ref,     # (2, D, 3H)  layer-0 input weights [dir], gate-fused, proj dtype
    whh0_ref,     # (2, H, 3H)  layer-0 hidden weights [dir], f32
    bin0_ref,     # (2, 1, 3H)  folded input-side biases [r_ih+r_hh, z_ih+z_hh, n_ih], f32
    bhn0_ref,     # (2, 1, H)   b_hh_n, f32
    wih1a_ref,    # (2, H, 3H)  layer-1 input weights, rows for l0-forward part, proj dtype
    wih1b_ref,    # (2, H, 3H)  layer-1 input weights, rows for l0-backward part, proj dtype
    whh1f_ref,    # (H, 3H)     layer-1 forward hidden weights, f32
    bin1_ref,     # (2, 1, 3H)  f32
    bhn1_ref,     # (2, 1, H)   f32
    # output
    hout_ref,     # (TB, 2H)    concat(h1_fwd_last, h1_bwd_last), f32
    # scratch
    l0f, l0b,     # (S, TB, H)  f32 layer-0 outputs per direction
    *, S, TB, D, H, unroll):

    f32 = jnp.float32
    pdt = w0_ref.dtype            # dtype of the hoisted-projection operands
    H3 = 3 * H
    h0 = jnp.zeros((TB, H), f32)

    def gru_elem(gi, gh, bhn, h):
        # gi/gh: (TB, 3H) input-side (with folded biases) / hidden-side
        # pre-activations; bhn: (1, H) b_hh_n; h: (TB, H).
        r = jax.nn.sigmoid(gi[:, 0:H] + gh[:, 0:H])
        z = jax.nn.sigmoid(gi[:, H:2 * H] + gh[:, H:2 * H])
        n = jnp.tanh(gi[:, 2 * H:H3] + r * (gh[:, 2 * H:H3] + bhn))
        return (1.0 - z) * n + z * h

    # ------------------------------------------------------------------
    # Phase A/B: init_linear + ReLU, hoisted layer-0 gate-input projections,
    # fused forward+backward layer-0 scan.  gi0f/gi0b live only in this scope.
    # ------------------------------------------------------------------
    def phase_layer0(gi0f, gi0b):
        xb = x_ref[...].astype(pdt).reshape(S * TB, D)
        xh = jnp.maximum(
            jnp.dot(xb, w0_ref[...], preferred_element_type=f32) + b0_ref[...],
            0.0).astype(pdt)

        wih0 = wih0_ref[...]
        gi0f[...] = (jnp.dot(xh, wih0[0], preferred_element_type=f32)
                     + bin0_ref[0]).reshape(S, TB, H3)
        gi0b[...] = (jnp.dot(xh, wih0[1], preferred_element_type=f32)
                     + bin0_ref[1]).reshape(S, TB, H3)

        whh0 = whh0_ref[...]
        w0f, w0b = whh0[0], whh0[1]
        bhn0f, bhn0b = bhn0_ref[0], bhn0_ref[1]

        def body0(t, carry):
            hf, hb = carry
            tb = S - 1 - t
            # One fused (TB,H)@(H,3H) MXU push per direction; the fwd and bwd
            # chains are independent so their latencies overlap.
            ghf = jnp.dot(hf, w0f, preferred_element_type=f32)
            ghb = jnp.dot(hb, w0b, preferred_element_type=f32)
            hf = gru_elem(gi0f[t], ghf, bhn0f, hf)
            hb = gru_elem(gi0b[tb], ghb, bhn0b, hb)
            l0f[t] = hf
            l0b[tb] = hb
            return (hf, hb)

        lax.fori_loop(0, S, body0, (h0, h0), unroll=unroll)

    pl.run_scoped(phase_layer0,
                  pltpu.VMEM((S, TB, H3), f32),
                  pltpu.VMEM((S, TB, H3), f32))

    # ------------------------------------------------------------------
    # Phase C/D/E: layer-1 projections + forward scan + backward shortcut +
    # output.  gi1 reuses the VMEM just freed by gi0f/gi0b (sequential scope).
    # ------------------------------------------------------------------
    def phase_layer1(gi1):
        wih1a = wih1a_ref[...]
        wih1b = wih1b_ref[...]

        af = l0f[...].reshape(S * TB, H).astype(pdt)
        ab = l0b[...].reshape(S * TB, H).astype(pdt)
        gi1[...] = (jnp.dot(af, wih1a[0], preferred_element_type=f32)
                    + jnp.dot(ab, wih1b[0], preferred_element_type=f32)
                    + bin1_ref[0]).reshape(S, TB, H3)

        w1f = whh1f_ref[...]
        bhn1f = bhn1_ref[0]

        def body1(t, h):
            gh = jnp.dot(h, w1f, preferred_element_type=f32)
            return gru_elem(gi1[t], gh, bhn1f, h)

        h1f = lax.fori_loop(0, S, body1, h0, unroll=unroll)

        # Layer-1 backward direction: only the LAST timestep feeds the output,
        # which is the first step of the reverse scan with h=0 (the hidden
        # matmul vanishes; only b_hh_n survives inside r*(.)).
        xa = l0f[S - 1].astype(pdt)
        xb = l0b[S - 1].astype(pdt)
        gb = (jnp.dot(xa, wih1a[1], preferred_element_type=f32)
              + jnp.dot(xb, wih1b[1], preferred_element_type=f32)
              + bin1_ref[1])
        r = jax.nn.sigmoid(gb[:, 0:H])
        z = jax.nn.sigmoid(gb[:, H:2 * H])
        n = jnp.tanh(gb[:, 2 * H:H3] + r * bhn1_ref[1])
        h1b = (1.0 - z) * n

        hout_ref[...] = jnp.concatenate([h1f, h1b], axis=-1)

    pl.run_scoped(phase_layer1, pltpu.VMEM((S, TB, H3), f32))


def _round_up(n, m):
    return -(-n // m) * m


def gru_forward(x, params, *, hidden_dim, output_dim,
                batch_tile=128, proj_dtype=jnp.bfloat16):
    """x: (B, S, D) batch_first float32. Returns (B, output_dim) float32."""
    B, S, D = x.shape
    H = hidden_dim
    O = output_dim
    H3 = 3 * H
    f32 = jnp.float32

    # Batch tile: big tiles (default 128 rows) fill the MXU rows; tiny batches
    # round up to a single sublane-aligned tile.
    TB = min(_round_up(batch_tile, 8), _round_up(B, 8))
    B_pad = _round_up(B, TB)

    x_t = jnp.transpose(x.astype(f32), (1, 0, 2))               # (S, B, D)
    x_t = jnp.pad(x_t, ((0, 0), (0, B_pad - B), (0, 0)))        # (S, B_pad, D)

    def gates_T(w):      # torch (3H, Din) -> (Din, 3H) with [r|z|n] columns
        return jnp.asarray(w, f32).T

    def bias_in(b_ih, b_hh):   # folded input-side bias: [r_ih+r_hh, z_ih+z_hh, n_ih]
        b_ih = jnp.asarray(b_ih, f32)
        b_hh = jnp.asarray(b_hh, f32)
        return jnp.concatenate([b_ih[0:H] + b_hh[0:H],
                                b_ih[H:2 * H] + b_hh[H:2 * H],
                                b_ih[2 * H:H3]]).reshape(1, H3)

    def bias_hn(b_hh):
        return jnp.asarray(b_hh, f32)[2 * H:H3].reshape(1, H)

    w0 = jnp.asarray(params["w_init"], f32).T.astype(proj_dtype)          # (D, D)
    b0 = jnp.asarray(params["b_init"], f32).reshape(1, D)

    wih0 = jnp.stack([gates_T(params["w_ih_l0"]),
                      gates_T(params["w_ih_l0_r"])]).astype(proj_dtype)   # (2, D, 3H)
    whh0 = jnp.stack([gates_T(params["w_hh_l0"]),
                      gates_T(params["w_hh_l0_r"])])                      # (2, H, 3H)
    bin0 = jnp.stack([bias_in(params["b_ih_l0"], params["b_hh_l0"]),
                      bias_in(params["b_ih_l0_r"], params["b_hh_l0_r"])])
    bhn0 = jnp.stack([bias_hn(params["b_hh_l0"]),
                      bias_hn(params["b_hh_l0_r"])])

    g1f = gates_T(params["w_ih_l1"])                                      # (2H, 3H)
    g1b = gates_T(params["w_ih_l1_r"])
    wih1a = jnp.stack([g1f[0:H], g1b[0:H]]).astype(proj_dtype)            # (2, H, 3H)
    wih1b = jnp.stack([g1f[H:2 * H], g1b[H:2 * H]]).astype(proj_dtype)    # (2, H, 3H)
    whh1f = gates_T(params["w_hh_l1"])                                    # (H, 3H)
    bin1 = jnp.stack([bias_in(params["b_ih_l1"], params["b_hh_l1"]),
                      bias_in(params["b_ih_l1_r"], params["b_hh_l1_r"])])
    bhn1 = jnp.stack([bias_hn(params["b_hh_l1"]),
                      bias_hn(params["b_hh_l1_r"])])

    wout = jnp.asarray(params["w_out"], f32).T                            # (2H, O)
    bout = jnp.asarray(params["b_out"], f32).reshape(1, O)

    unroll = max(1, min(8, S))
    kernel = functools.partial(_gru_kernel, S=S, TB=TB, D=D, H=H, unroll=unroll)

    def full(shape):
        return pl.BlockSpec(shape, lambda b, _z=(0,) * len(shape): _z)

    in_specs = [
        pl.BlockSpec((S, TB, D), lambda b: (0, b, 0)),      # x, blocked on batch
        full((D, D)), full((1, D)),
        full((2, D, H3)), full((2, H, H3)), full((2, 1, H3)), full((2, 1, H)),
        full((2, H, H3)), full((2, H, H3)), full((H, H3)),
        full((2, 1, H3)), full((2, 1, H)),
    ]
    out_specs = pl.BlockSpec((TB, 2 * H), lambda b: (b, 0))

    scratch = [pltpu.VMEM((S, TB, H), f32), pltpu.VMEM((S, TB, H), f32)]

    # Explicit VMEM budget: resident scratch + peak run_scoped region +
    # double-buffered input/weight/output blocks + slack.
    pbytes = jnp.dtype(proj_dtype).itemsize
    est = (2 * S * TB * H * 4                  # l0f, l0b
           + 2 * S * TB * H3 * 4               # peak scoped region (gi0f + gi0b)
           + 2 * S * TB * D * 4                # x block (double-buffered)
           + 2 * TB * 2 * H * 4                # output block (double-buffered)
           + 2 * (D * D * pbytes + 2 * D * H3 * pbytes + 4 * H * H3 * pbytes
                  + 3 * H * H3 * 4 + (4 * H3 + 4 * H + D) * 4))
    vmem_limit = int(min(128 * 1024 * 1024,
                         max(32 * 1024 * 1024, est + (4 << 20))))

    hout = pl.pallas_call(
        kernel,
        grid=(B_pad // TB,),
        out_shape=jax.ShapeDtypeStruct((B_pad, 2 * H), f32),
        in_specs=in_specs,
        out_specs=out_specs,
        scratch_shapes=scratch,
        compiler_params=pltpu.CompilerParams(
            dimension_semantics=("parallel",),
            vmem_limit_bytes=vmem_limit),
    )(x_t, w0, b0, wih0, whh0, bin0, bhn0, wih1a, wih1b, whh1f, bin1, bhn1)

    # Lane-dense kernel output; the tiny (2H -> O) projection stays in XLA.
    return hout[:B] @ wout + bout


# ---------------------------------------------------------------------------
# Pure-JAX reference (mirrors PyTorch semantics) for correctness checks.
# ---------------------------------------------------------------------------
def _ref_gru_dir(inp, h0, wih, whh, bih, bhh, H, reverse):
    B, S, _ = inp.shape
    order = range(S - 1, -1, -1) if reverse else range(S)
    h = h0
    outs = [None] * S
    for t in order:
        x_t = inp[:, t, :]
        gi = x_t @ wih.T + bih
        gh = h @ whh.T + bhh
        r = jax.nn.sigmoid(gi[:, :H] + gh[:, :H])
        z = jax.nn.sigmoid(gi[:, H:2 * H] + gh[:, H:2 * H])
        n = jnp.tanh(gi[:, 2 * H:] + r * gh[:, 2 * H:])
        h = (1 - z) * n + z * h
        outs[t] = h
    return jnp.stack(outs, axis=1)


def reference_forward(x, p, H):
    xh = jax.nn.relu(x @ p["w_init"].T + p["b_init"])
    B = x.shape[0]
    h0 = jnp.zeros((B, H), jnp.float32)
    o0f = _ref_gru_dir(xh, h0, p["w_ih_l0"], p["w_hh_l0"], p["b_ih_l0"], p["b_hh_l0"], H, False)
    o0b = _ref_gru_dir(xh, h0, p["w_ih_l0_r"], p["w_hh_l0_r"], p["b_ih_l0_r"], p["b_hh_l0_r"], H, True)
    o0 = jnp.concatenate([o0f, o0b], axis=-1)
    o1f = _ref_gru_dir(o0, h0, p["w_ih_l1"], p["w_hh_l1"], p["b_ih_l1"], p["b_hh_l1"], H, False)
    o1b = _ref_gru_dir(o0, h0, p["w_ih_l1_r"], p["w_hh_l1_r"], p["b_ih_l1_r"], p["b_hh_l1_r"], H, True)
    out = jnp.concatenate([o1f, o1b], axis=-1)
    return out[:, -1, :] @ p["w_out"].T + p["b_out"]


if __name__ == "__main__":
    # Small deterministic configuration consistent with the module's forward():
    #   input  : (batch, seq, input_dim) -> output : (batch, output_dim)
    B, S, D, H, O = 2, 8, 16, 32, 1

    key = jax.random.PRNGKey(0)
    keys = jax.random.split(key, 32)
    ki = iter(range(32))

    def u(k, shape, scale):
        return jax.random.uniform(k, shape, jnp.float32, -scale, scale)

    sH = 1.0 / jnp.sqrt(H)
    sD = 1.0 / jnp.sqrt(D)
    s2H = 1.0 / jnp.sqrt(2 * H)

    params = {
        "w_init": u(keys[next(ki)], (D, D), sD),
        "b_init": u(keys[next(ki)], (D,), sD),
        # GRU layer 0 (fwd / reverse)
        "w_ih_l0":   u(keys[next(ki)], (3 * H, D), sH),
        "w_hh_l0":   u(keys[next(ki)], (3 * H, H), sH),
        "b_ih_l0":   u(keys[next(ki)], (3 * H,), sH),
        "b_hh_l0":   u(keys[next(ki)], (3 * H,), sH),
        "w_ih_l0_r": u(keys[next(ki)], (3 * H, D), sH),
        "w_hh_l0_r": u(keys[next(ki)], (3 * H, H), sH),
        "b_ih_l0_r": u(keys[next(ki)], (3 * H,), sH),
        "b_hh_l0_r": u(keys[next(ki)], (3 * H,), sH),
        # GRU layer 1 (input size 2H)
        "w_ih_l1":   u(keys[next(ki)], (3 * H, 2 * H), sH),
        "w_hh_l1":   u(keys[next(ki)], (3 * H, H), sH),
        "b_ih_l1":   u(keys[next(ki)], (3 * H,), sH),
        "b_hh_l1":   u(keys[next(ki)], (3 * H,), sH),
        "w_ih_l1_r": u(keys[next(ki)], (3 * H, 2 * H), sH),
        "w_hh_l1_r": u(keys[next(ki)], (3 * H, H), sH),
        "b_ih_l1_r": u(keys[next(ki)], (3 * H,), sH),
        "b_hh_l1_r": u(keys[next(ki)], (3 * H,), sH),
        # final linear
        "w_out": u(keys[next(ki)], (O, 2 * H), s2H),
        "b_out": u(keys[next(ki)], (O,), s2H),
    }

    x = jax.random.normal(keys[next(ki)], (B, S, D), jnp.float32)

    y_ref = jax.block_until_ready(reference_forward(x, params, H))

    # Performance path: bf16 operands on the hoisted (non-recurrent) matmuls.
    y_bf16 = jax.block_until_ready(
        gru_forward(x, params, hidden_dim=H, output_dim=O))
    assert y_bf16.shape == (B, O), y_bf16.shape
    assert jnp.allclose(y_bf16, y_ref, rtol=1e-2, atol=1e-2), (y_bf16, y_ref)

    # Exact-semantics check: full-f32 path against the pure-JAX reference.
    y_f32 = jax.block_until_ready(
        gru_forward(x, params, hidden_dim=H, output_dim=O,
                    proj_dtype=jnp.float32))
    assert y_f32.shape == (B, O), y_f32.shape
    assert jnp.allclose(y_f32, y_ref, rtol=1e-3, atol=1e-3), (y_f32, y_ref)

    print("KERNEL_OK")
</pallas_src>

<mosaic_0001>
module attributes {stable_mosaic.version = 11 : i64} {
  func.func @_gru_kernel(%arg0: i32, %arg1: memref<8x8x16xf32, #tpu.memory_space<vmem>>, %arg2: memref<16x16xbf16, #tpu.memory_space<vmem>>, %arg3: memref<1x16xf32, #tpu.memory_space<vmem>>, %arg4: memref<2x16x96xbf16, #tpu.memory_space<vmem>>, %arg5: memref<2x32x96xf32, #tpu.memory_space<vmem>>, %arg6: memref<2x1x96xf32, #tpu.memory_space<vmem>>, %arg7: memref<2x1x32xf32, #tpu.memory_space<vmem>>, %arg8: memref<2x32x96xbf16, #tpu.memory_space<vmem>>, %arg9: memref<2x32x96xbf16, #tpu.memory_space<vmem>>, %arg10: memref<32x96xf32, #tpu.memory_space<vmem>>, %arg11: memref<2x1x96xf32, #tpu.memory_space<vmem>>, %arg12: memref<2x1x32xf32, #tpu.memory_space<vmem>>, %arg13: memref<8x64xf32, #tpu.memory_space<vmem>>, %arg14: memref<8x8x32xf32, #tpu.memory_space<vmem>>, %arg15: memref<8x8x32xf32, #tpu.memory_space<vmem>>) attributes {dimension_semantics = [#tpu.dimension_semantics<parallel>], iteration_bounds = array<i64: 1>, scalar_prefetch = 0 : i64, scratch_operands = 2 : i64, tpu.core_type = #tpu.core_type<tc>, window_params = [{transform_indices = @transform_0, window_bounds = array<i64: 8, 8, 16>}, {pipeline_mode = #tpu.pipeline_mode<synchronous>, transform_indices = @transform_1, window_bounds = array<i64: 16, 16>}, {pipeline_mode = #tpu.pipeline_mode<synchronous>, transform_indices = @transform_2, window_bounds = array<i64: 1, 16>}, {pipeline_mode = #tpu.pipeline_mode<synchronous>, transform_indices = @transform_3, window_bounds = array<i64: 2, 16, 96>}, {pipeline_mode = #tpu.pipeline_mode<synchronous>, transform_indices = @transform_4, window_bounds = array<i64: 2, 32, 96>}, {pipeline_mode = #tpu.pipeline_mode<synchronous>, transform_indices = @transform_5, window_bounds = array<i64: 2, 1, 96>}, {pipeline_mode = #tpu.pipeline_mode<synchronous>, transform_indices = @transform_6, window_bounds = array<i64: 2, 1, 32>}, {pipeline_mode = #tpu.pipeline_mode<synchronous>, transform_indices = @transform_7, window_bounds = array<i64: 2, 32, 96>}, {pipeline_mode = #tpu.pipeline_mode<synchronous>, transform_indices = @transform_8, window_bounds = array<i64: 2, 32, 96>}, {pipeline_mode = #tpu.pipeline_mode<synchronous>, transform_indices = @transform_9, window_bounds = array<i64: 32, 96>}, {pipeline_mode = #tpu.pipeline_mode<synchronous>, transform_indices = @transform_10, window_bounds = array<i64: 2, 1, 96>}, {pipeline_mode = #tpu.pipeline_mode<synchronous>, transform_indices = @transform_11, window_bounds = array<i64: 2, 1, 32>}, {transform_indices = @transform_12, window_bounds = array<i64: 8, 64>}]} {
    %cst = arith.constant 0.000000e+00 : f32
    %0 = vector.broadcast %cst : f32 to vector<8x32xf32>
    "tpu.region"() ({
      %alloca = memref.alloca() : memref<8x8x96xf32, #tpu.memory_space<vmem>>
      %alloca_0 = memref.alloca() : memref<8x8x96xf32, #tpu.memory_space<vmem>>
      %c0 = arith.constant 0 : index
      %c0_1 = arith.constant 0 : index
      %c0_2 = arith.constant 0 : index
      %1 = vector.load %arg1[%c0, %c0_1, %c0_2] : memref<8x8x16xf32, #tpu.memory_space<vmem>>, vector<8x8x16xf32>
      %2 = arith.truncf %1 : vector<8x8x16xf32> to vector<8x8x16xbf16>
      %3 = vector.shape_cast %2 : vector<8x8x16xbf16> to vector<64x16xbf16>
      %c0_3 = arith.constant 0 : index
      %c0_4 = arith.constant 0 : index
      %4 = vector.load %arg2[%c0_3, %c0_4] : memref<16x16xbf16, #tpu.memory_space<vmem>>, vector<16x16xbf16>
      %cst_5 = arith.constant dense<0.000000e+00> : vector<64x16xf32>
      %5 = tpu.matmul %3, %4, %cst_5 {dimension_numbers = #tpu.dot_dimension_numbers<[1], [0], [0], [1], [0, 0, 1, 1], [], []>} : vector<64x16xbf16>, vector<16x16xbf16>, vector<64x16xf32> -> vector<64x16xf32>
      %c0_6 = arith.constant 0 : index
      %c0_7 = arith.constant 0 : index
      %6 = vector.load %arg3[%c0_6, %c0_7] : memref<1x16xf32, #tpu.memory_space<vmem>>, vector<1x16xf32>
      %7 = vector.broadcast %6 : vector<1x16xf32> to vector<64x16xf32>
      %8 = arith.addf %5, %7 : vector<64x16xf32>
      %cst_8 = arith.constant 0.000000e+00 : f32
      %9 = vector.broadcast %cst_8 : f32 to vector<64x16xf32>
      %10 = arith.maximumf %8, %9 : vector<64x16xf32>
      %11 = arith.truncf %10 : vector<64x16xf32> to vector<64x16xbf16>
      %c0_9 = arith.constant 0 : index
      %c0_10 = arith.constant 0 : index
      %c0_11 = arith.constant 0 : index
      %12 = vector.load %arg4[%c0_9, %c0_10, %c0_11] : memref<2x16x96xbf16, #tpu.memory_space<vmem>>, vector<2x16x96xbf16>
      %13 = vector.extract_strided_slice %12 {offsets = [0, 0, 0], sizes = [1, 16, 96], strides = [1, 1, 1]} : vector<2x16x96xbf16> to vector<1x16x96xbf16>
      %14 = vector.shape_cast %13 : vector<1x16x96xbf16> to vector<16x96xbf16>
      %cst_12 = arith.constant dense<0.000000e+00> : vector<64x96xf32>
      %15 = tpu.matmul %11, %14, %cst_12 {dimension_numbers = #tpu.dot_dimension_numbers<[1], [0], [0], [1], [0, 0, 1, 1], [], []>} : vector<64x16xbf16>, vector<16x96xbf16>, vector<64x96xf32> -> vector<64x96xf32>
      %c0_13 = arith.constant 0 : index
      %c0_14 = arith.constant 0 : index
      %c0_15 = arith.constant 0 : index
      %16 = vector.load %arg6[%c0_13, %c0_14, %c0_15] : memref<2x1x96xf32, #tpu.memory_space<vmem>>, vector<1x1x96xf32>
      %17 = vector.shape_cast %16 : vector<1x1x96xf32> to vector<1x96xf32>
      %18 = vector.broadcast %17 : vector<1x96xf32> to vector<64x96xf32>
      %19 = arith.addf %15, %18 : vector<64x96xf32>
      %20 = vector.shape_cast %19 : vector<64x96xf32> to vector<8x8x96xf32>
      %c0_16 = arith.constant 0 : index
      %c0_17 = arith.constant 0 : index
      %c0_18 = arith.constant 0 : index
      %21 = vector.load %alloca[%c0_16, %c0_17, %c0_18] : memref<8x8x96xf32, #tpu.memory_space<vmem>>, vector<8x8x96xf32>
      tpu.vector_store %alloca[%c0_16, %c0_17, %c0_18], %20 {strides = array<i32>} : memref<8x8x96xf32, #tpu.memory_space<vmem>>, vector<8x8x96xf32>,
      %22 = vector.extract_strided_slice %12 {offsets = [1, 0, 0], sizes = [1, 16, 96], strides = [1, 1, 1]} : vector<2x16x96xbf16> to vector<1x16x96xbf16>
      %23 = vector.shape_cast %22 : vector<1x16x96xbf16> to vector<16x96xbf16>
      %cst_19 = arith.constant dense<0.000000e+00> : vector<64x96xf32>
      %24 = tpu.matmul %11, %23, %cst_19 {dimension_numbers = #tpu.dot_dimension_numbers<[1], [0], [0], [1], [0, 0, 1, 1], [], []>} : vector<64x16xbf16>, vector<16x96xbf16>, vector<64x96xf32> -> vector<64x96xf32>
      %c1 = arith.constant 1 : index
      %c0_20 = arith.constant 0 : index
      %c0_21 = arith.constant 0 : index
      %25 = vector.load %arg6[%c1, %c0_20, %c0_21] : memref<2x1x96xf32, #tpu.memory_space<vmem>>, vector<1x1x96xf32>
      %26 = vector.shape_cast %25 : vector<1x1x96xf32> to vector<1x96xf32>
      %27 = vector.broadcast %26 : vector<1x96xf32> to vector<64x96xf32>
      %28 = arith.addf %24, %27 : vector<64x96xf32>
      %29 = vector.shape_cast %28 : vector<64x96xf32> to vector<8x8x96xf32>
      %c0_22 = arith.constant 0 : index
      %c0_23 = arith.constant 0 : index
      %c0_24 = arith.constant 0 : index
      %30 = vector.load %alloca_0[%c0_22, %c0_23, %c0_24] : memref<8x8x96xf32, #tpu.memory_space<vmem>>, vector<8x8x96xf32>
      tpu.vector_store %alloca_0[%c0_22, %c0_23, %c0_24], %29 {strides = array<i32>} : memref<8x8x96xf32, #tpu.memory_space<vmem>>, vector<8x8x96xf32>,
      %c0_25 = arith.constant 0 : index
      %c0_26 = arith.constant 0 : index
      %c0_27 = arith.constant 0 : index
      %31 = vector.load %arg5[%c0_25, %c0_26, %c0_27] : memref<2x32x96xf32, #tpu.memory_space<vmem>>, vector<2x32x96xf32>
      %32 = vector.extract_strided_slice %31 {offsets = [0, 0, 0], sizes = [1, 32, 96], strides = [1, 1, 1]} : vector<2x32x96xf32> to vector<1x32x96xf32>
      %33 = vector.shape_cast %32 : vector<1x32x96xf32> to vector<32x96xf32>
      %34 = vector.extract_strided_slice %31 {offsets = [1, 0, 0], sizes = [1, 32, 96], strides = [1, 1, 1]} : vector<2x32x96xf32> to vector<1x32x96xf32>
      %35 = vector.shape_cast %34 : vector<1x32x96xf32> to vector<32x96xf32>
      %c0_28 = arith.constant 0 : index
      %c0_29 = arith.constant 0 : index
      %c0_30 = arith.constant 0 : index
      %36 = vector.load %arg7[%c0_28, %c0_29, %c0_30] : memref<2x1x32xf32, #tpu.memory_space<vmem>>, vector<1x1x32xf32>
      %37 = vector.shape_cast %36 : vector<1x1x32xf32> to vector<1x32xf32>
      %c1_31 = arith.constant 1 : index
      %c0_32 = arith.constant 0 : index
      %c0_33 = arith.constant 0 : index
      %38 = vector.load %arg7[%c1_31, %c0_32, %c0_33] : memref<2x1x32xf32, #tpu.memory_space<vmem>>, vector<1x1x32xf32>
      %39 = vector.shape_cast %38 : vector<1x1x32xf32> to vector<1x32xf32>
      %c0_i32 = arith.constant 0 : i32
      %c7_i32 = arith.constant 7 : i32
      %40 = arith.subi %c7_i32, %c0_i32 : i32
      %cst_34 = arith.constant dense<0.000000e+00> : vector<8x96xf32>
      %41 = tpu.matmul %0, %33, %cst_34 {dimension_numbers = #tpu.dot_dimension_numbers<[1], [0], [0], [1], [0, 0, 1, 1], [], []>} : vector<8x32xf32>, vector<32x96xf32>, vector<8x96xf32> -> vector<8x96xf32>
      %cst_35 = arith.constant dense<0.000000e+00> : vector<8x96xf32>
      %42 = tpu.matmul %0, %35, %cst_35 {dimension_numbers = #tpu.dot_dimension_numbers<[1], [0], [0], [1], [0, 0, 1, 1], [], []>} : vector<8x32xf32>, vector<32x96xf32>, vector<8x96xf32> -> vector<8x96xf32>
      %43 = arith.index_cast %c0_i32 : i32 to index
      %c0_36 = arith.constant 0 : index
      %c0_37 = arith.constant 0 : index
      %44 = vector.load %alloca[%43, %c0_36, %c0_37] : memref<8x8x96xf32, #tpu.memory_space<vmem>>, vector<1x8x96xf32>
      %45 = vector.shape_cast %44 : vector<1x8x96xf32> to vector<8x96xf32>
      %46 = vector.extract_strided_slice %45 {offsets = [0, 0], sizes = [8, 32], strides = [1, 1]} : vector<8x96xf32> to vector<8x32xf32>
      %47 = vector.extract_strided_slice %41 {offsets = [0, 0], sizes = [8, 32], strides = [1, 1]} : vector<8x96xf32> to vector<8x32xf32>
      %48 = arith.addf %46, %47 : vector<8x32xf32>
      %49 = arith.negf %48 : vector<8x32xf32>
      %50 = math.exp %49 : vector<8x32xf32>
      %cst_38 = arith.constant 1.000000e+00 : f32
      %51 = vector.broadcast %cst_38 : f32 to vector<8x32xf32>
      %52 = arith.addf %51, %50 : vector<8x32xf32>
      %53 = arith.divf %51, %52 : vector<8x32xf32>
      %54 = vector.extract_strided_slice %45 {offsets = [0, 32], sizes = [8, 32], strides = [1, 1]} : vector<8x96xf32> to vector<8x32xf32>
      %55 = vector.extract_strided_slice %41 {offsets = [0, 32], sizes = [8, 32], strides = [1, 1]} : vector<8x96xf32> to vector<8x32xf32>
      %56 = arith.addf %54, %55 : vector<8x32xf32>
      %57 = arith.negf %56 : vector<8x32xf32>
      %58 = math.exp %57 : vector<8x32xf32>
      %cst_39 = arith.constant 1.000000e+00 : f32
      %59 = vector.broadcast %cst_39 : f32 to vector<8x32xf32>
      %60 = arith.addf %59, %58 : vector<8x32xf32>
      %61 = arith.divf %59, %60 : vector<8x32xf32>
      %62 = vector.extract_strided_slice %45 {offsets = [0, 64], sizes = [8, 32], strides = [1, 1]} : vector<8x96xf32> to vector<8x32xf32>
      %63 = vector.extract_strided_slice %41 {offsets = [0, 64], sizes = [8, 32], strides = [1, 1]} : vector<8x96xf32> to vector<8x32xf32>
      %64 = vector.broadcast %37 : vector<1x32xf32> to vector<8x32xf32>
      %65 = arith.addf %63, %64 : vector<8x32xf32>
      %66 = arith.mulf %53, %65 : vector<8x32xf32>
      %67 = arith.addf %62, %66 : vector<8x32xf32>
      %68 = math.tanh %67 : vector<8x32xf32>
      %cst_40 = arith.constant 1.000000e+00 : f32
      %69 = vector.broadcast %cst_40 : f32 to vector<8x32xf32>
      %70 = arith.subf %69, %61 : vector<8x32xf32>
      %71 = arith.mulf %70, %68 : vector<8x32xf32>
      %72 = arith.mulf %61, %0 : vector<8x32xf32>
      %73 = arith.addf %71, %72 : vector<8x32xf32>
      %74 = arith.index_cast %40 : i32 to index
      %c0_41 = arith.constant 0 : index
      %c0_42 = arith.constant 0 : index
      %75 = vector.load %alloca_0[%74, %c0_41, %c0_42] : memref<8x8x96xf32, #tpu.memory_space<vmem>>, vector<1x8x96xf32>
      %76 = vector.shape_cast %75 : vector<1x8x96xf32> to vector<8x96xf32>
      %77 = vector.extract_strided_slice %76 {offsets = [0, 0], sizes = [8, 32], strides = [1, 1]} : vector<8x96xf32> to vector<8x32xf32>
      %78 = vector.extract_strided_slice %42 {offsets = [0, 0], sizes = [8, 32], strides = [1, 1]} : vector<8x96xf32> to vector<8x32xf32>
      %79 = arith.addf %77, %78 : vector<8x32xf32>
      %80 = arith.negf %79 : vector<8x32xf32>
      %81 = math.exp %80 : vector<8x32xf32>
      %cst_43 = arith.constant 1.000000e+00 : f32
      %82 = vector.broadcast %cst_43 : f32 to vector<8x32xf32>
      %83 = arith.addf %82, %81 : vector<8x32xf32>
      %84 = arith.divf %82, %83 : vector<8x32xf32>
      %85 = vector.extract_strided_slice %76 {offsets = [0, 32], sizes = [8, 32], strides = [1, 1]} : vector<8x96xf32> to vector<8x32xf32>
      %86 = vector.extract_strided_slice %42 {offsets = [0, 32], sizes = [8, 32], strides = [1, 1]} : vector<8x96xf32> to vector<8x32xf32>
      %87 = arith.addf %85, %86 : vector<8x32xf32>
      %88 = arith.negf %87 : vector<8x32xf32>
      %89 = math.exp %88 : vector<8x32xf32>
      %cst_44 = arith.constant 1.000000e+00 : f32
      %90 = vector.broadcast %cst_44 : f32 to vector<8x32xf32>
      %91 = arith.addf %90, %89 : vector<8x32xf32>
      %92 = arith.divf %90, %91 : vector<8x32xf32>
      %93 = vector.extract_strided_slice %76 {offsets = [0, 64], sizes = [8, 32], strides = [1, 1]} : vector<8x96xf32> to vector<8x32xf32>
      %94 = vector.extract_strided_slice %42 {offsets = [0, 64], sizes = [8, 32], strides = [1, 1]} : vector<8x96xf32> to vector<8x32xf32>
      %95 = vector.broadcast %39 : vector<1x32xf32> to vector<8x32xf32>
      %96 = arith.addf %94, %95 : vector<8x32xf32>
      %97 = arith.mulf %84, %96 : vector<8x32xf32>
      %98 = arith.addf %93, %97 : vector<8x32xf32>
      %99 = math.tanh %98 : vector<8x32xf32>
      %cst_45 = arith.constant 1.000000e+00 : f32
      %100 = vector.broadcast %cst_45 : f32 to vector<8x32xf32>
      %101 = arith.subf %100, %92 : vector<8x32xf32>
      %102 = arith.mulf %101, %99 : vector<8x32xf32>
      %103 = arith.mulf %92, %0 : vector<8x32xf32>
      %104 = arith.addf %102, %103 : vector<8x32xf32>
      %105 = arith.index_cast %c0_i32 : i32 to index
      %c0_46 = arith.constant 0 : index
      %c0_47 = arith.constant 0 : index
      %106 = vector.load %arg14[%105, %c0_46, %c0_47] : memref<8x8x32xf32, #tpu.memory_space<vmem>>, vector<1x8x32xf32>
      %107 = vector.shape_cast %106 : vector<1x8x32xf32> to vector<8x32xf32>
      %108 = vector.shape_cast %73 : vector<8x32xf32> to vector<1x8x32xf32>
      tpu.vector_store %arg14[%105, %c0_46, %c0_47], %108 {strides = array<i32>} : memref<8x8x32xf32, #tpu.memory_space<vmem>>, vector<1x8x32xf32>,
      %109 = arith.index_cast %40 : i32 to index
      %c0_48 = arith.constant 0 : index
      %c0_49 = arith.constant 0 : index
      %110 = vector.load %arg15[%109, %c0_48, %c0_49] : memref<8x8x32xf32, #tpu.memory_space<vmem>>, vector<1x8x32xf32>
      %111 = vector.shape_cast %110 : vector<1x8x32xf32> to vector<8x32xf32>
      %112 = vector.shape_cast %104 : vector<8x32xf32> to vector<1x8x32xf32>
      tpu.vector_store %arg15[%109, %c0_48, %c0_49], %112 {strides = array<i32>} : memref<8x8x32xf32, #tpu.memory_space<vmem>>, vector<1x8x32xf32>,
      %c1_i32 = arith.constant 1 : i32
      %c7_i32_50 = arith.constant 7 : i32
      %113 = arith.subi %c7_i32_50, %c1_i32 : i32
      %cst_51 = arith.constant dense<0.000000e+00> : vector<8x96xf32>
      %114 = tpu.matmul %73, %33, %cst_51 {dimension_numbers = #tpu.dot_dimension_numbers<[1], [0], [0], [1], [0, 0, 1, 1], [], []>} : vector<8x32xf32>, vector<32x96xf32>, vector<8x96xf32> -> vector<8x96xf32>
      %cst_52 = arith.constant dense<0.000000e+00> : vector<8x96xf32>
      %115 = tpu.matmul %104, %35, %cst_52 {dimension_numbers = #tpu.dot_dimension_numbers<[1], [0], [0], [1], [0, 0, 1, 1], [], []>} : vector<8x32xf32>, vector<32x96xf32>, vector<8x96xf32> -> vector<8x96xf32>
      %116 = arith.index_cast %c1_i32 : i32 to index
      %c0_53 = arith.constant 0 : index
      %c0_54 = arith.constant 0 : index
      %117 = vector.load %alloca[%116, %c0_53, %c0_54] : memref<8x8x96xf32, #tpu.memory_space<vmem>>, vector<1x8x96xf32>
      %118 = vector.shape_cast %117 : vector<1x8x96xf32> to vector<8x96xf32>
      %119 = vector.extract_strided_slice %118 {offsets = [0, 0], sizes = [8, 32], strides = [1, 1]} : vector<8x96xf32> to vector<8x32xf32>
      %120 = vector.extract_strided_slice %114 {offsets = [0, 0], sizes = [8, 32], strides = [1, 1]} : vector<8x96xf32> to vector<8x32xf32>
      %121 = arith.addf %119, %120 : vector<8x32xf32>
      %122 = arith.negf %121 : vector<8x32xf32>
      %123 = math.exp %122 : vector<8x32xf32>
      %cst_55 = arith.constant 1.000000e+00 : f32
      %124 = vector.broadcast %cst_55 : f32 to vector<8x32xf32>
      %125 = arith.addf %124, %123 : vector<8x32xf32>
      %126 = arith.divf %124, %125 : vector<8x32xf32>
      %127 = vector.extract_strided_slice %118 {offsets = [0, 32], sizes = [8, 32], strides = [1, 1]} : vector<8x96xf32> to vector<8x32xf32>
      %128 = vector.extract_strided_slice %114 {offsets = [0, 32], sizes = [8, 32], strides = [1, 1]} : vector<8x96xf32> to vector<8x32xf32>
      %129 = arith.addf %127, %128 : vector<8x32xf32>
      %130 = arith.negf %129 : vector<8x32xf32>
      %131 = math.exp %130 : vector<8x32xf32>
      %cst_56 = arith.constant 1.000000e+00 : f32
      %132 = vector.broadcast %cst_56 : f32 to vector<8x32xf32>
      %133 = arith.addf %132, %131 : vector<8x32xf32>
      %134 = arith.divf %132, %133 : vector<8x32xf32>
      %135 = vector.extract_strided_slice %118 {offsets = [0, 64], sizes = [8, 32], strides = [1, 1]} : vector<8x96xf32> to vector<8x32xf32>
      %136 = vector.extract_strided_slice %114 {offsets = [0, 64], sizes = [8, 32], strides = [1, 1]} : vector<8x96xf32> to vector<8x32xf32>
      %137 = vector.broadcast %37 : vector<1x32xf32> to vector<8x32xf32>
      %138 = arith.addf %136, %137 : vector<8x32xf32>
      %139 = arith.mulf %126, %138 : vector<8x32xf32>
      %140 = arith.addf %135, %139 : vector<8x32xf32>
      %141 = math.tanh %140 : vector<8x32xf32>
      %cst_57 = arith.constant 1.000000e+00 : f32
      %142 = vector.broadcast %cst_57 : f32 to vector<8x32xf32>
      %143 = arith.subf %142, %134 : vector<8x32xf32>
      %144 = arith.mulf %143, %141 : vector<8x32xf32>
      %145 = arith.mulf %134, %73 : vector<8x32xf32>
      %146 = arith.addf %144, %145 : vector<8x32xf32>
      %147 = arith.index_cast %113 : i32 to index
      %c0_58 = arith.constant 0 : index
      %c0_59 = arith.constant 0 : index
      %148 = vector.load %alloca_0[%147, %c0_58, %c0_59] : memref<8x8x96xf32, #tpu.memory_space<vmem>>, vector<1x8x96xf32>
      %149 = vector.shape_cast %148 : vector<1x8x96xf32> to vector<8x96xf32>
      %150 = vector.extract_strided_slice %149 {offsets = [0, 0], sizes = [8, 32], strides = [1, 1]} : vector<8x96xf32> to vector<8x32xf32>
      %151 = vector.extract_strided_slice %115 {offsets = [0, 0], sizes = [8, 32], strides = [1, 1]} : vector<8x96xf32> to vector<8x32xf32>
      %152 = arith.addf %150, %151 : vector<8x32xf32>
      %153 = arith.negf %152 : vector<8x32xf32>
      %154 = math.exp %153 : vector<8x32xf32>
      %cst_60 = arith.constant 1.000000e+00 : f32
      %155 = vector.broadcast %cst_60 : f32 to vector<8x32xf32>
      %156 = arith.addf %155, %154 : vector<8x32xf32>
      %157 = arith.divf %155, %156 : vector<8x32xf32>
      %158 = vector.extract_strided_slice %149 {offsets = [0, 32], sizes = [8, 32], strides = [1, 1]} : vector<8x96xf32> to vector<8x32xf32>
      %159 = vector.extract_strided_slice %115 {offsets = [0, 32], sizes = [8, 32], strides = [1, 1]} : vector<8x96xf32> to vector<8x32xf32>
      %160 = arith.addf %158, %159 : vector<8x32xf32>
      %161 = arith.negf %160 : vector<8x32xf32>
      %162 = math.exp %161 : vector<8x32xf32>
      %cst_61 = arith.constant 1.000000e+00 : f32
      %163 = vector.broadcast %cst_61 : f32 to vector<8x32xf32>
      %164 = arith.addf %163, %162 : vector<8x32xf32>
      %165 = arith.divf %163, %164 : vector<8x32xf32>
      %166 = vector.extract_strided_slice %149 {offsets = [0, 64], sizes = [8, 32], strides = [1, 1]} : vector<8x96xf32> to vector<8x32xf32>
      %167 = vector.extract_strided_slice %115 {offsets = [0, 64], sizes = [8, 32], strides = [1, 1]} : vector<8x96xf32> to vector<8x32xf32>
      %168 = vector.broadcast %39 : vector<1x32xf32> to vector<8x32xf32>
      %169 = arith.addf %167, %168 : vector<8x32xf32>
      %170 = arith.mulf %157, %169 : vector<8x32xf32>
      %171 = arith.addf %166, %170 : vector<8x32xf32>
      %172 = math.tanh %171 : vector<8x32xf32>
      %cst_62 = arith.constant 1.000000e+00 : f32
      %173 = vector.broadcast %cst_62 : f32 to vector<8x32xf32>
      %174 = arith.subf %173, %165 : vector<8x32xf32>
      %175 = arith.mulf %174, %172 : vector<8x32xf32>
      %176 = arith.mulf %165, %104 : vector<8x32xf32>
      %177 = arith.addf %175, %176 : vector<8x32xf32>
      %178 = arith.index_cast %c1_i32 : i32 to index
      %c0_63 = arith.constant 0 : index
      %c0_64 = arith.constant 0 : index
      %179 = vector.load %arg14[%178, %c0_63, %c0_64] : memref<8x8x32xf32, #tpu.memory_space<vmem>>, vector<1x8x32xf32>
      %180 = vector.shape_cast %179 : vector<1x8x32xf32> to vector<8x32xf32>
      %181 = vector.shape_cast %146 : vector<8x32xf32> to vector<1x8x32xf32>
      tpu.vector_store %arg14[%178, %c0_63, %c0_64], %181 {strides = array<i32>} : memref<8x8x32xf32, #tpu.memory_space<vmem>>, vector<1x8x32xf32>,
      %182 = arith.index_cast %113 : i32 to index
      %c0_65 = arith.constant 0 : index
      %c0_66 = arith.constant 0 : index
      %183 = vector.load %arg15[%182, %c0_65, %c0_66] : memref<8x8x32xf32, #tpu.memory_space<vmem>>, vector<1x8x32xf32>
      %184 = vector.shape_cast %183 : vector<1x8x32xf32> to vector<8x32xf32>
      %185 = vector.shape_cast %177 : vector<8x32xf32> to vector<1x8x32xf32>
      tpu.vector_store %arg15[%182, %c0_65, %c0_66], %185 {strides = array<i32>} : memref<8x8x32xf32, #tpu.memory_space<vmem>>, vector<1x8x32xf32>,
      %c2_i32 = arith.constant 2 : i32
      %c7_i32_67 = arith.constant 7 : i32
      %186 = arith.subi %c7_i32_67, %c2_i32 : i32
      %cst_68 = arith.constant dense<0.000000e+00> : vector<8x96xf32>
      %187 = tpu.matmul %146, %33, %cst_68 {dimension_numbers = #tpu.dot_dimension_numbers<[1], [0], [0], [1], [0, 0, 1, 1], [], []>} : vector<8x32xf32>, vector<32x96xf32>, vector<8x96xf32> -> vector<8x96xf32>
      %cst_69 = arith.constant dense<0.000000e+00> : vector<8x96xf32>
      %188 = tpu.matmul %177, %35, %cst_69 {dimension_numbers = #tpu.dot_dimension_numbers<[1], [0], [0], [1], [0, 0, 1, 1], [], []>} : vector<8x32xf32>, vector<32x96xf32>, vector<8x96xf32> -> vector<8x96xf32>
      %189 = arith.index_cast %c2_i32 : i32 to index
      %c0_70 = arith.constant 0 : index
      %c0_71 = arith.constant 0 : index
      %190 = vector.load %alloca[%189, %c0_70, %c0_71] : memref<8x8x96xf32, #tpu.memory_space<vmem>>, vector<1x8x96xf32>
      %191 = vector.shape_cast %190 : vector<1x8x96xf32> to vector<8x96xf32>
      %192 = vector.extract_strided_slice %191 {offsets = [0, 0], sizes = [8, 32], strides = [1, 1]} : vector<8x96xf32> to vector<8x32xf32>
      %193 = vector.extract_strided_slice %187 {offsets = [0, 0], sizes = [8, 32], strides = [1, 1]} : vector<8x96xf32> to vector<8x32xf32>
      %194 = arith.addf %192, %193 : vector<8x32xf32>
      %195 = arith.negf %194 : vector<8x32xf32>
      %196 = math.exp %195 : vector<8x32xf32>
      %cst_72 = arith.constant 1.000000e+00 : f32
      %197 = vector.broadcast %cst_72 : f32 to vector<8x32xf32>
      %198 = arith.addf %197, %196 : vector<8x32xf32>
      %199 = arith.divf %197, %198 : vector<8x32xf32>
      %200 = vector.extract_strided_slice %191 {offsets = [0, 32], sizes = [8, 32], strides = [1, 1]} : vector<8x96xf32> to vector<8x32xf32>
      %201 = vector.extract_strided_slice %187 {offsets = [0, 32], sizes = [8, 32], strides = [1, 1]} : vector<8x96xf32> to vector<8x32xf32>
      %202 = arith.addf %200, %201 : vector<8x32xf32>
      %203 = arith.negf %202 : vector<8x32xf32>
      %204 = math.exp %203 : vector<8x32xf32>
      %cst_73 = arith.constant 1.000000e+00 : f32
      %205 = vector.broadcast %cst_73 : f32 to vector<8x32xf32>
      %206 = arith.addf %205, %204 : vector<8x32xf32>
      %207 = arith.divf %205, %206 : vector<8x32xf32>
      %208 = vector.extract_strided_slice %191 {offsets = [0, 64], sizes = [8, 32], strides = [1, 1]} : vector<8x96xf32> to vector<8x32xf32>
      %209 = vector.extract_strided_slice %187 {offsets = [0, 64], sizes = [8, 32], strides = [1, 1]} : vector<8x96xf32> to vector<8x32xf32>
      %210 = vector.broadcast %37 : vector<1x32xf32> to vector<8x32xf32>
      %211 = arith.addf %209, %210 : vector<8x32xf32>
      %212 = arith.mulf %199, %211 : vector<8x32xf32>
      %213 = arith.addf %208, %212 : vector<8x32xf32>
      %214 = math.tanh %213 : vector<8x32xf32>
      %cst_74 = arith.constant 1.000000e+00 : f32
      %215 = vector.broadcast %cst_74 : f32 to vector<8x32xf32>
      %216 = arith.subf %215, %207 : vector<8x32xf32>
      %217 = arith.mulf %216, %214 : vector<8x32xf32>
      %218 = arith.mulf %207, %146 : vector<8x32xf32>
      %219 = arith.addf %217, %218 : vector<8x32xf32>
      %220 = arith.index_cast %186 : i32 to index
      %c0_75 = arith.constant 0 : index
      %c0_76 = arith.constant 0 : index
      %221 = vector.load %alloca_0[%220, %c0_75, %c0_76] : memref<8x8x96xf32, #tpu.memory_space<vmem>>, vector<1x8x96xf32>
      %222 = vector.shape_cast %221 : vector<1x8x96xf32> to vector<8x96xf32>
      %223 = vector.extract_strided_slice %222 {offsets = [0, 0], sizes = [8, 32], strides = [1, 1]} : vector<8x96xf32> to vector<8x32xf32>
      %224 = vector.extract_strided_slice %188 {offsets = [0, 0], sizes = [8, 32], strides = [1, 1]} : vector<8x96xf32> to vector<8x32xf32>
      %225 = arith.addf %223, %224 : vector<8x32xf32>
      %226 = arith.negf %225 : vector<8x32xf32>
      %227 = math.exp %226 : vector<8x32xf32>
      %cst_77 = arith.constant 1.000000e+00 : f32
      %228 = vector.broadcast %cst_77 : f32 to vector<8x32xf32>
      %229 = arith.addf %228, %227 : vector<8x32xf32>
      %230 = arith.divf %228, %229 : vector<8x32xf32>
      %231 = vector.extract_strided_slice %222 {offsets = [0, 32], sizes = [8, 32], strides = [1, 1]} : vector<8x96xf32> to vector<8x32xf32>
      %232 = vector.extract_strided_slice %188 {offsets = [0, 32], sizes = [8, 32], strides = [1, 1]} : vector<8x96xf32> to vector<8x32xf32>
      %233 = arith.addf %231, %232 : vector<8x32xf32>
      %234 = arith.negf %233 : vector<8x32xf32>
      %235 = math.exp %234 : vector<8x32xf32>
      %cst_78 = arith.constant 1.000000e+00 : f32
      %236 = vector.broadcast %cst_78 : f32 to vector<8x32xf32>
      %237 = arith.addf %236, %235 : vector<8x32xf32>
      %238 = arith.divf %236, %237 : vector<8x32xf32>
      %239 = vector.extract_strided_slice %222 {offsets = [0, 64], sizes = [8, 32], strides = [1, 1]} : vector<8x96xf32> to vector<8x32xf32>
      %240 = vector.extract_strided_slice %188 {offsets = [0, 64], sizes = [8, 32], strides = [1, 1]} : vector<8x96xf32> to vector<8x32xf32>
      %241 = vector.broadcast %39 : vector<1x32xf32> to vector<8x32xf32>
      %242 = arith.addf %240, %241 : vector<8x32xf32>
      %243 = arith.mulf %230, %242 : vector<8x32xf32>
      %244 = arith.addf %239, %243 : vector<8x32xf32>
      %245 = math.tanh %244 : vector<8x32xf32>
      %cst_79 = arith.constant 1.000000e+00 : f32
      %246 = vector.broadcast %cst_79 : f32 to vector<8x32xf32>
      %247 = arith.subf %246, %238 : vector<8x32xf32>
      %248 = arith.mulf %247, %245 : vector<8x32xf32>
      %249 = arith.mulf %238, %177 : vector<8x32xf32>
      %250 = arith.addf %248, %249 : vector<8x32xf32>
      %251 = arith.index_cast %c2_i32 : i32 to index
      %c0_80 = arith.constant 0 : index
      %c0_81 = arith.constant 0 : index
      %252 = vector.load %arg14[%251, %c0_80, %c0_81] : memref<8x8x32xf32, #tpu.memory_space<vmem>>, vector<1x8x32xf32>
      %253 = vector.shape_cast %252 : vector<1x8x32xf32> to vector<8x32xf32>
      %254 = vector.shape_cast %219 : vector<8x32xf32> to vector<1x8x32xf32>
      tpu.vector_store %arg14[%251, %c0_80, %c0_81], %254 {strides = array<i32>} : memref<8x8x32xf32, #tpu.memory_space<vmem>>, vector<1x8x32xf32>,
      %255 = arith.index_cast %186 : i32 to index
      %c0_82 = arith.constant 0 : index
      %c0_83 = arith.constant 0 : index
      %256 = vector.load %arg15[%255, %c0_82, %c0_83] : memref<8x8x32xf32, #tpu.memory_space<vmem>>, vector<1x8x32xf32>
      %257 = vector.shape_cast %256 : vector<1x8x32xf32> to vector<8x32xf32>
      %258 = vector.shape_cast %250 : vector<8x32xf32> to vector<1x8x32xf32>
      tpu.vector_store %arg15[%255, %c0_82, %c0_83], %258 {strides = array<i32>} : memref<8x8x32xf32, #tpu.memory_space<vmem>>, vector<1x8x32xf32>,
      %c3_i32 = arith.constant 3 : i32
      %c7_i32_84 = arith.constant 7 : i32
      %259 = arith.subi %c7_i32_84, %c3_i32 : i32
      %cst_85 = arith.constant dense<0.000000e+00> : vector<8x96xf32>
      %260 = tpu.matmul %219, %33, %cst_85 {dimension_numbers = #tpu.dot_dimension_numbers<[1], [0], [0], [1], [0, 0, 1, 1], [], []>} : vector<8x32xf32>, vector<32x96xf32>, vector<8x96xf32> -> vector<8x96xf32>
      %cst_86 = arith.constant dense<0.000000e+00> : vector<8x96xf32>
      %261 = tpu.matmul %250, %35, %cst_86 {dimension_numbers = #tpu.dot_dimension_numbers<[1], [0], [0], [1], [0, 0, 1, 1], [], []>} : vector<8x32xf32>, vector<32x96xf32>, vector<8x96xf32> -> vector<8x96xf32>
      %262 = arith.index_cast %c3_i32 : i32 to index
      %c0_87 = arith.constant 0 : index
      %c0_88 = arith.constant 0 : index
      %263 = vector.load %alloca[%262, %c0_87, %c0_88] : memref<8x8x96xf32, #tpu.memory_space<vmem>>, vector<1x8x96xf32>
      %264 = vector.shape_cast %263 : vector<1x8x96xf32> to vector<8x96xf32>
      %265 = vector.extract_strided_slice %264 {offsets = [0, 0], sizes = [8, 32], strides = [1, 1]} : vector<8x96xf32> to vector<8x32xf32>
      %266 = vector.extract_strided_slice %260 {offsets = [0, 0], sizes = [8, 32], strides = [1, 1]} : vector<8x96xf32> to vector<8x32xf32>
      %267 = arith.addf %265, %266 : vector<8x32xf32>
      %268 = arith.negf %267 : vector<8x32xf32>
      %269 = math.exp %268 : vector<8x32xf32>
      %cst_89 = arith.constant 1.000000e+00 : f32
      %270 = vector.broadcast %cst_89 : f32 to vector<8x32xf32>
      %271 = arith.addf %270, %269 : vector<8x32xf32>
      %272 = arith.divf %270, %271 : vector<8x32xf32>
      %273 = vector.extract_strided_slice %264 {offsets = [0, 32], sizes = [8, 32], strides = [1, 1]} : vector<8x96xf32> to vector<8x32xf32>
      %274 = vector.extract_strided_slice %260 {offsets = [0, 32], sizes = [8, 32], strides = [1, 1]} : vector<8x96xf32> to vector<8x32xf32>
      %275 = arith.addf %273, %274 : vector<8x32xf32>
      %276 = arith.negf %275 : vector<8x32xf32>
      %277 = math.exp %276 : vector<8x32xf32>
      %cst_90 = arith.constant 1.000000e+00 : f32
      %278 = vector.broadcast %cst_90 : f32 to vector<8x32xf32>
      %279 = arith.addf %278, %277 : vector<8x32xf32>
      %280 = arith.divf %278, %279 : vector<8x32xf32>
      %281 = vector.extract_strided_slice %264 {offsets = [0, 64], sizes = [8, 32], strides = [1, 1]} : vector<8x96xf32> to vector<8x32xf32>
      %282 = vector.extract_strided_slice %260 {offsets = [0, 64], sizes = [8, 32], strides = [1, 1]} : vector<8x96xf32> to vector<8x32xf32>
      %283 = vector.broadcast %37 : vector<1x32xf32> to vector<8x32xf32>
      %284 = arith.addf %282, %283 : vector<8x32xf32>
      %285 = arith.mulf %272, %284 : vector<8x32xf32>
      %286 = arith.addf %281, %285 : vector<8x32xf32>
      %287 = math.tanh %286 : vector<8x32xf32>
      %cst_91 = arith.constant 1.000000e+00 : f32
      %288 = vector.broadcast %cst_91 : f32 to vector<8x32xf32>
      %289 = arith.subf %288, %280 : vector<8x32xf32>
      %290 = arith.mulf %289, %287 : vector<8x32xf32>
      %291 = arith.mulf %280, %219 : vector<8x32xf32>
      %292 = arith.addf %290, %291 : vector<8x32xf32>
      %293 = arith.index_cast %259 : i32 to index
      %c0_92 = arith.constant 0 : index
      %c0_93 = arith.constant 0 : index
      %294 = vector.load %alloca_0[%293, %c0_92, %c0_93] : memref<8x8x96xf32, #tpu.memory_space<vmem>>, vector<1x8x96xf32>
      %295 = vector.shape_cast %294 : vector<1x8x96xf32> to vector<8x96xf32>
      %296 = vector.extract_strided_slice %295 {offsets = [0, 0], sizes = [8, 32], strides = [1, 1]} : vector<8x96xf32> to vector<8x32xf32>
      %297 = vector.extract_strided_slice %261 {offsets = [0, 0], sizes = [8, 32], strides = [1, 1]} : vector<8x96xf32> to vector<8x32xf32>
      %298 = arith.addf %296, %297 : vector<8x32xf32>
      %299 = arith.negf %298 : vector<8x32xf32>
      %300 = math.exp %299 : vector<8x32xf32>
      %cst_94 = arith.constant 1.000000e+00 : f32
      %301 = vector.broadcast %cst_94 : f32 to vector<8x32xf32>
      %302 = arith.addf %301, %300 : vector<8x32xf32>
      %303 = arith.divf %301, %302 : vector<8x32xf32>
      %304 = vector.extract_strided_slice %295 {offsets = [0, 32], sizes = [8, 32], strides = [1, 1]} : vector<8x96xf32> to vector<8x32xf32>
      %305 = vector.extract_strided_slice %261 {offsets = [0, 32], sizes = [8, 32], strides = [1, 1]} : vector<8x96xf32> to vector<8x32xf32>
      %306 = arith.addf %304, %305 : vector<8x32xf32>
      %307 = arith.negf %306 : vector<8x32xf32>
      %308 = math.exp %307 : vector<8x32xf32>
      %cst_95 = arith.constant 1.000000e+00 : f32
      %309 = vector.broadcast %cst_95 : f32 to vector<8x32xf32>
      %310 = arith.addf %309, %308 : vector<8x32xf32>
      %311 = arith.divf %309, %310 : vector<8x32xf32>
      %312 = vector.extract_strided_slice %295 {offsets = [0, 64], sizes = [8, 32], strides = [1, 1]} : vector<8x96xf32> to vector<8x32xf32>
      %313 = vector.extract_strided_slice %261 {offsets = [0, 64], sizes = [8, 32], strides = [1, 1]} : vector<8x96xf32> to vector<8x32xf32>
      %314 = vector.broadcast %39 : vector<1x32xf32> to vector<8x32xf32>
      %315 = arith.addf %313, %314 : vector<8x32xf32>
      %316 = arith.mulf %303, %315 : vector<8x32xf32>
      %317 = arith.addf %312, %316 : vector<8x32xf32>
      %318 = math.tanh %317 : vector<8x32xf32>
      %cst_96 = arith.constant 1.000000e+00 : f32
      %319 = vector.broadcast %cst_96 : f32 to vector<8x32xf32>
      %320 = arith.subf %319, %311 : vector<8x32xf32>
      %321 = arith.mulf %320, %318 : vector<8x32xf32>
      %322 = arith.mulf %311, %250 : vector<8x32xf32>
      %323 = arith.addf %321, %322 : vector<8x32xf32>
      %324 = arith.index_cast %c3_i32 : i32 to index
      %c0_97 = arith.constant 0 : index
      %c0_98 = arith.constant 0 : index
      %325 = vector.load %arg14[%324, %c0_97, %c0_98] : memref<8x8x32xf32, #tpu.memory_space<vmem>>, vector<1x8x32xf32>
      %326 = vector.shape_cast %325 : vector<1x8x32xf32> to vector<8x32xf32>
      %327 = vector.shape_cast %292 : vector<8x32xf32> to vector<1x8x32xf32>
      tpu.vector_store %arg14[%324, %c0_97, %c0_98], %327 {strides = array<i32>} : memref<8x8x32xf32, #tpu.memory_space<vmem>>, vector<1x8x32xf32>,
      %328 = arith.index_cast %259 : i32 to index
      %c0_99 = arith.constant 0 : index
      %c0_100 = arith.constant 0 : index
      %329 = vector.load %arg15[%328, %c0_99, %c0_100] : memref<8x8x32xf32, #tpu.memory_space<vmem>>, vector<1x8x32xf32>
      %330 = vector.shape_cast %329 : vector<1x8x32xf32> to vector<8x32xf32>
      %331 = vector.shape_cast %323 : vector<8x32xf32> to vector<1x8x32xf32>
      tpu.vector_store %arg15[%328, %c0_99, %c0_100], %331 {strides = array<i32>} : memref<8x8x32xf32, #tpu.memory_space<vmem>>, vector<1x8x32xf32>,
      %c4_i32 = arith.constant 4 : i32
      %c7_i32_101 = arith.constant 7 : i32
      %332 = arith.subi %c7_i32_101, %c4_i32 : i32
      %cst_102 = arith.constant dense<0.000000e+00> : vector<8x96xf32>
      %333 = tpu.matmul %292, %33, %cst_102 {dimension_numbers = #tpu.dot_dimension_numbers<[1], [0], [0], [1], [0, 0, 1, 1], [], []>} : vector<8x32xf32>, vector<32x96xf32>, vector<8x96xf32> -> vector<8x96xf32>
      %cst_103 = arith.constant dense<0.000000e+00> : vector<8x96xf32>
      %334 = tpu.matmul %323, %35, %cst_103 {dimension_numbers = #tpu.dot_dimension_numbers<[1], [0], [0], [1], [0, 0, 1, 1], [], []>} : vector<8x32xf32>, vector<32x96xf32>, vector<8x96xf32> -> vector<8x96xf32>
      %335 = arith.index_cast %c4_i32 : i32 to index
      %c0_104 = arith.constant 0 : index
      %c0_105 = arith.constant 0 : index
      %336 = vector.load %alloca[%335, %c0_104, %c0_105] : memref<8x8x96xf32, #tpu.memory_space<vmem>>, vector<1x8x96xf32>
      %337 = vector.shape_cast %336 : vector<1x8x96xf32> to vector<8x96xf32>
      %338 = vector.extract_strided_slice %337 {offsets = [0, 0], sizes = [8, 32], strides = [1, 1]} : vector<8x96xf32> to vector<8x32xf32>
      %339 = vector.extract_strided_slice %333 {offsets = [0, 0], sizes = [8, 32], strides = [1, 1]} : vector<8x96xf32> to vector<8x32xf32>
      %340 = arith.addf %338, %339 : vector<8x32xf32>
      %341 = arith.negf %340 : vector<8x32xf32>
      %342 = math.exp %341 : vector<8x32xf32>
      %cst_106 = arith.constant 1.000000e+00 : f32
      %343 = vector.broadcast %cst_106 : f32 to vector<8x32xf32>
      %344 = arith.addf %343, %342 : vector<8x32xf32>
      %345 = arith.divf %343, %344 : vector<8x32xf32>
      %346 = vector.extract_strided_slice %337 {offsets = [0, 32], sizes = [8, 32], strides = [1, 1]} : vector<8x96xf32> to vector<8x32xf32>
      %347 = vector.extract_strided_slice %333 {offsets = [0, 32], sizes = [8, 32], strides = [1, 1]} : vector<8x96xf32> to vector<8x32xf32>
      %348 = arith.addf %346, %347 : vector<8x32xf32>
      %349 = arith.negf %348 : vector<8x32xf32>
      %350 = math.exp %349 : vector<8x32xf32>
      %cst_107 = arith.constant 1.000000e+00 : f32
      %351 = vector.broadcast %cst_107 : f32 to vector<8x32xf32>
      %352 = arith.addf %351, %350 : vector<8x32xf32>
      %353 = arith.divf %351, %352 : vector<8x32xf32>
      %354 = vector.extract_strided_slice %337 {offsets = [0, 64], sizes = [8, 32], strides = [1, 1]} : vector<8x96xf32> to vector<8x32xf32>
      %355 = vector.extract_strided_slice %333 {offsets = [0, 64], sizes = [8, 32], strides = [1, 1]} : vector<8x96xf32> to vector<8x32xf32>
      %356 = vector.broadcast %37 : vector<1x32xf32> to vector<8x32xf32>
      %357 = arith.addf %355, %356 : vector<8x32xf32>
      %358 = arith.mulf %345, %357 : vector<8x32xf32>
      %359 = arith.addf %354, %358 : vector<8x32xf32>
      %360 = math.tanh %359 : vector<8x32xf32>
      %cst_108 = arith.constant 1.000000e+00 : f32
      %361 = vector.broadcast %cst_108 : f32 to vector<8x32xf32>
      %362 = arith.subf %361, %353 : vector<8x32xf32>
      %363 = arith.mulf %362, %360 : vector<8x32xf32>
      %364 = arith.mulf %353, %292 : vector<8x32xf32>
      %365 = arith.addf %363, %364 : vector<8x32xf32>
      %366 = arith.index_cast %332 : i32 to index
      %c0_109 = arith.constant 0 : index
      %c0_110 = arith.constant 0 : index
      %367 = vector.load %alloca_0[%366, %c0_109, %c0_110] : memref<8x8x96xf32, #tpu.memory_space<vmem>>, vector<1x8x96xf32>
      %368 = vector.shape_cast %367 : vector<1x8x96xf32> to vector<8x96xf32>
      %369 = vector.extract_strided_slice %368 {offsets = [0, 0], sizes = [8, 32], strides = [1, 1]} : vector<8x96xf32> to vector<8x32xf32>
      %370 = vector.extract_strided_slice %334 {offsets = [0, 0], sizes = [8, 32], strides = [1, 1]} : vector<8x96xf32> to vector<8x32xf32>
      %371 = arith.addf %369, %370 : vector<8x32xf32>
      %372 = arith.negf %371 : vector<8x32xf32>
      %373 = math.exp %372 : vector<8x32xf32>
      %cst_111 = arith.constant 1.000000e+00 : f32
      %374 = vector.broadcast %cst_111 : f32 to vector<8x32xf32>
      %375 = arith.addf %374, %373 : vector<8x32xf32>
      %376 = arith.divf %374, %375 : vector<8x32xf32>
      %377 = vector.extract_strided_slice %368 {offsets = [0, 32], sizes = [8, 32], strides = [1, 1]} : vector<8x96xf32> to vector<8x32xf32>
      %378 = vector.extract_strided_slice %334 {offsets = [0, 32], sizes = [8, 32], strides = [1, 1]} : vector<8x96xf32> to vector<8x32xf32>
      %379 = arith.addf %377, %378 : vector<8x32xf32>
      %380 = arith.negf %379 : vector<8x32xf32>
      %381 = math.exp %380 : vector<8x32xf32>
      %cst_112 = arith.constant 1.000000e+00 : f32
      %382 = vector.broadcast %cst_112 : f32 to vector<8x32xf32>
      %383 = arith.addf %382, %381 : vector<8x32xf32>
      %384 = arith.divf %382, %383 : vector<8x32xf32>
      %385 = vector.extract_strided_slice %368 {offsets = [0, 64], sizes = [8, 32], strides = [1, 1]} : vector<8x96xf32> to vector<8x32xf32>
      %386 = vector.extract_strided_slice %334 {offsets = [0, 64], sizes = [8, 32], strides = [1, 1]} : vector<8x96xf32> to vector<8x32xf32>
      %387 = vector.broadcast %39 : vector<1x32xf32> to vector<8x32xf32>
      %388 = arith.addf %386, %387 : vector<8x32xf32>
      %389 = arith.mulf %376, %388 : vector<8x32xf32>
      %390 = arith.addf %385, %389 : vector<8x32xf32>
      %391 = math.tanh %390 : vector<8x32xf32>
      %cst_113 = arith.constant 1.000000e+00 : f32
      %392 = vector.broadcast %cst_113 : f32 to vector<8x32xf32>
      %393 = arith.subf %392, %384 : vector<8x32xf32>
      %394 = arith.mulf %393, %391 : vector<8x32xf32>
      %395 = arith.mulf %384, %323 : vector<8x32xf32>
      %396 = arith.addf %394, %395 : vector<8x32xf32>
      %397 = arith.index_cast %c4_i32 : i32 to index
      %c0_114 = arith.constant 0 : index
      %c0_115 = arith.constant 0 : index
      %398 = vector.load %arg14[%397, %c0_114, %c0_115] : memref<8x8x32xf32, #tpu.memory_space<vmem>>, vector<1x8x32xf32>
      %399 = vector.shape_cast %398 : vector<1x8x32xf32> to vector<8x32xf32>
      %400 = vector.shape_cast %365 : vector<8x32xf32> to vector<1x8x32xf32>
      tpu.vector_store %arg14[%397, %c0_114, %c0_115], %400 {strides = array<i32>} : memref<8x8x32xf32, #tpu.memory_space<vmem>>, vector<1x8x32xf32>,
      %401 = arith.index_cast %332 : i32 to index
      %c0_116 = arith.constant 0 : index
      %c0_117 = arith.constant 0 : index
      %402 = vector.load %arg15[%401, %c0_116, %c0_117] : memref<8x8x32xf32, #tpu.memory_space<vmem>>, vector<1x8x32xf32>
      %403 = vector.shape_cast %402 : vector<1x8x32xf32> to vector<8x32xf32>
      %404 = vector.shape_cast %396 : vector<8x32xf32> to vector<1x8x32xf32>
      tpu.vector_store %arg15[%401, %c0_116, %c0_117], %404 {strides = array<i32>} : memref<8x8x32xf32, #tpu.memory_space<vmem>>, vector<1x8x32xf32>,
      %c5_i32 = arith.constant 5 : i32
      %c7_i32_118 = arith.constant 7 : i32
      %405 = arith.subi %c7_i32_118, %c5_i32 : i32
      %cst_119 = arith.constant dense<0.000000e+00> : vector<8x96xf32>
      %406 = tpu.matmul %365, %33, %cst_119 {dimension_numbers = #tpu.dot_dimension_numbers<[1], [0], [0], [1], [0, 0, 1, 1], [], []>} : vector<8x32xf32>, vector<32x96xf32>, vector<8x96xf32> -> vector<8x96xf32>
      %cst_120 = arith.constant dense<0.000000e+00> : vector<8x96xf32>
      %407 = tpu.matmul %396, %35, %cst_120 {dimension_numbers = #tpu.dot_dimension_numbers<[1], [0], [0], [1], [0, 0, 1, 1], [], []>} : vector<8x32xf32>, vector<32x96xf32>, vector<8x96xf32> -> vector<8x96xf32>
      %408 = arith.index_cast %c5_i32 : i32 to index
      %c0_121 = arith.constant 0 : index
      %c0_122 = arith.constant 0 : index
      %409 = vector.load %alloca[%408, %c0_121, %c0_122] : memref<8x8x96xf32, #tpu.memory_space<vmem>>, vector<1x8x96xf32>
      %410 = vector.shape_cast %409 : vector<1x8x96xf32> to vector<8x96xf32>
      %411 = vector.extract_strided_slice %410 {offsets = [0, 0], sizes = [8, 32], strides = [1, 1]} : vector<8x96xf32> to vector<8x32xf32>
      %412 = vector.extract_strided_slice %406 {offsets = [0, 0], sizes = [8, 32], strides = [1, 1]} : vector<8x96xf32> to vector<8x32xf32>
      %413 = arith.addf %411, %412 : vector<8x32xf32>
      %414 = arith.negf %413 : vector<8x32xf32>
      %415 = math.exp %414 : vector<8x32xf32>
      %cst_123 = arith.constant 1.000000e+00 : f32
      %416 = vector.broadcast %cst_123 : f32 to vector<8x32xf32>
      %417 = arith.addf %416, %415 : vector<8x32xf32>
      %418 = arith.divf %416, %417 : vector<8x32xf32>
      %419 = vector.extract_strided_slice %410 {offsets = [0, 32], sizes = [8, 32], strides = [1, 1]} : vector<8x96xf32> to vector<8x32xf32>
      %420 = vector.extract_strided_slice %406 {offsets = [0, 32], sizes = [8, 32], strides = [1, 1]} : vector<8x96xf32> to vector<8x32xf32>
      %421 = arith.addf %419, %420 : vector<8x32xf32>
      %422 = arith.negf %421 : vector<8x32xf32>
      %423 = math.exp %422 : vector<8x32xf32>
      %cst_124 = arith.constant 1.000000e+00 : f32
      %424 = vector.broadcast %cst_124 : f32 to vector<8x32xf32>
      %425 = arith.addf %424, %423 : vector<8x32xf32>
      %426 = arith.divf %424, %425 : vector<8x32xf32>
      %427 = vector.extract_strided_slice %410 {offsets = [0, 64], sizes = [8, 32], strides = [1, 1]} : vector<8x96xf32> to vector<8x32xf32>
      %428 = vector.extract_strided_slice %406 {offsets = [0, 64], sizes = [8, 32], strides = [1, 1]} : vector<8x96xf32> to vector<8x32xf32>
      %429 = vector.broadcast %37 : vector<1x32xf32> to vector<8x32xf32>
      %430 = arith.addf %428, %429 : vector<8x32xf32>
      %431 = arith.mulf %418, %430 : vector<8x32xf32>
      %432 = arith.addf %427, %431 : vector<8x32xf32>
      %433 = math.tanh %432 : vector<8x32xf32>
      %cst_125 = arith.constant 1.000000e+00 : f32
      %434 = vector.broadcast %cst_125 : f32 to vector<8x32xf32>
      %435 = arith.subf %434, %426 : vector<8x32xf32>
      %436 = arith.mulf %435, %433 : vector<8x32xf32>
      %437 = arith.mulf %426, %365 : vector<8x32xf32>
      %438 = arith.addf %436, %437 : vector<8x32xf32>
      %439 = arith.index_cast %405 : i32 to index
      %c0_126 = arith.constant 0 : index
      %c0_127 = arith.constant 0 : index
      %440 = vector.load %alloca_0[%439, %c0_126, %c0_127] : memref<8x8x96xf32, #tpu.memory_space<vmem>>, vector<1x8x96xf32>
      %441 = vector.shape_cast %440 : vector<1x8x96xf32> to vector<8x96xf32>
      %442 = vector.extract_strided_slice %441 {offsets = [0, 0], sizes = [8, 32], strides = [1, 1]} : vector<8x96xf32> to vector<8x32xf32>
      %443 = vector.extract_strided_slice %407 {offsets = [0, 0], sizes = [8, 32], strides = [1, 1]} : vector<8x96xf32> to vector<8x32xf32>
      %444 = arith.addf %442, %443 : vector<8x32xf32>
      %445 = arith.negf %444 : vector<8x32xf32>
      %446 = math.exp %445 : vector<8x32xf32>
      %cst_128 = arith.constant 1.000000e+00 : f32
      %447 = vector.broadcast %cst_128 : f32 to vector<8x32xf32>
      %448 = arith.addf %447, %446 : vector<8x32xf32>
      %449 = arith.divf %447, %448 : vector<8x32xf32>
      %450 = vector.extract_strided_slice %441 {offsets = [0, 32], sizes = [8, 32], strides = [1, 1]} : vector<8x96xf32> to vector<8x32xf32>
      %451 = vector.extract_strided_slice %407 {offsets = [0, 32], sizes = [8, 32], strides = [1, 1]} : vector<8x96xf32> to vector<8x32xf32>
      %452 = arith.addf %450, %451 : vector<8x32xf32>
      %453 = arith.negf %452 : vector<8x32xf32>
      %454 = math.exp %453 : vector<8x32xf32>
      %cst_129 = arith.constant 1.000000e+00 : f32
      %455 = vector.broadcast %cst_129 : f32 to vector<8x32xf32>
      %456 = arith.addf %455, %454 : vector<8x32xf32>
      %457 = arith.divf %455, %456 : vector<8x32xf32>
      %458 = vector.extract_strided_slice %441 {offsets = [0, 64], sizes = [8, 32], strides = [1, 1]} : vector<8x96xf32> to vector<8x32xf32>
      %459 = vector.extract_strided_slice %407 {offsets = [0, 64], sizes = [8, 32], strides = [1, 1]} : vector<8x96xf32> to vector<8x32xf32>
      %460 = vector.broadcast %39 : vector<1x32xf32> to vector<8x32xf32>
      %461 = arith.addf %459, %460 : vector<8x32xf32>
      %462 = arith.mulf %449, %461 : vector<8x32xf32>
      %463 = arith.addf %458, %462 : vector<8x32xf32>
      %464 = math.tanh %463 : vector<8x32xf32>
      %cst_130 = arith.constant 1.000000e+00 : f32
      %465 = vector.broadcast %cst_130 : f32 to vector<8x32xf32>
      %466 = arith.subf %465, %457 : vector<8x32xf32>
      %467 = arith.mulf %466, %464 : vector<8x32xf32>
      %468 = arith.mulf %457, %396 : vector<8x32xf32>
      %469 = arith.addf %467, %468 : vector<8x32xf32>
      %470 = arith.index_cast %c5_i32 : i32 to index
      %c0_131 = arith.constant 0 : index
      %c0_132 = arith.constant 0 : index
      %471 = vector.load %arg14[%470, %c0_131, %c0_132] : memref<8x8x32xf32, #tpu.memory_space<vmem>>, vector<1x8x32xf32>
      %472 = vector.shape_cast %471 : vector<1x8x32xf32> to vector<8x32xf32>
      %473 = vector.shape_cast %438 : vector<8x32xf32> to vector<1x8x32xf32>
      tpu.vector_store %arg14[%470, %c0_131, %c0_132], %473 {strides = array<i32>} : memref<8x8x32xf32, #tpu.memory_space<vmem>>, vector<1x8x32xf32>,
      %474 = arith.index_cast %405 : i32 to index
      %c0_133 = arith.constant 0 : index
      %c0_134 = arith.constant 0 : index
      %475 = vector.load %arg15[%474, %c0_133, %c0_134] : memref<8x8x32xf32, #tpu.memory_space<vmem>>, vector<1x8x32xf32>
      %476 = vector.shape_cast %475 : vector<1x8x32xf32> to vector<8x32xf32>
      %477 = vector.shape_cast %469 : vector<8x32xf32> to vector<1x8x32xf32>
      tpu.vector_store %arg15[%474, %c0_133, %c0_134], %477 {strides = array<i32>} : memref<8x8x32xf32, #tpu.memory_space<vmem>>, vector<1x8x32xf32>,
      %c6_i32 = arith.constant 6 : i32
      %c7_i32_135 = arith.constant 7 : i32
      %478 = arith.subi %c7_i32_135, %c6_i32 : i32
      %cst_136 = arith.constant dense<0.000000e+00> : vector<8x96xf32>
      %479 = tpu.matmul %438, %33, %cst_136 {dimension_numbers = #tpu.dot_dimension_numbers<[1], [0], [0], [1], [0, 0, 1, 1], [], []>} : vector<8x32xf32>, vector<32x96xf32>, vector<8x96xf32> -> vector<8x96xf32>
      %cst_137 = arith.constant dense<0.000000e+00> : vector<8x96xf32>
      %480 = tpu.matmul %469, %35, %cst_137 {dimension_numbers = #tpu.dot_dimension_numbers<[1], [0], [0], [1], [0, 0, 1, 1], [], []>} : vector<8x32xf32>, vector<32x96xf32>, vector<8x96xf32> -> vector<8x96xf32>
      %481 = arith.index_cast %c6_i32 : i32 to index
      %c0_138 = arith.constant 0 : index
      %c0_139 = arith.constant 0 : index
      %482 = vector.load %alloca[%481, %c0_138, %c0_139] : memref<8x8x96xf32, #tpu.memory_space<vmem>>, vector<1x8x96xf32>
      %483 = vector.shape_cast %482 : vector<1x8x96xf32> to vector<8x96xf32>
      %484 = vector.extract_strided_slice %483 {offsets = [0, 0], sizes = [8, 32], strides = [1, 1]} : vector<8x96xf32> to vector<8x32xf32>
      %485 = vector.extract_strided_slice %479 {offsets = [0, 0], sizes = [8, 32], strides = [1, 1]} : vector<8x96xf32> to vector<8x32xf32>
      %486 = arith.addf %484, %485 : vector<8x32xf32>
      %487 = arith.negf %486 : vector<8x32xf32>
      %488 = math.exp %487 : vector<8x32xf32>
      %cst_140 = arith.constant 1.000000e+00 : f32
      %489 = vector.broadcast %cst_140 : f32 to vector<8x32xf32>
      %490 = arith.addf %489, %488 : vector<8x32xf32>
      %491 = arith.divf %489, %490 : vector<8x32xf32>
      %492 = vector.extract_strided_slice %483 {offsets = [0, 32], sizes = [8, 32], strides = [1, 1]} : vector<8x96xf32> to vector<8x32xf32>
      %493 = vector.extract_strided_slice %479 {offsets = [0, 32], sizes = [8, 32], strides = [1, 1]} : vector<8x96xf32> to vector<8x32xf32>
      %494 = arith.addf %492, %493 : vector<8x32xf32>
      %495 = arith.negf %494 : vector<8x32xf32>
      %496 = math.exp %495 : vector<8x32xf32>
      %cst_141 = arith.constant 1.000000e+00 : f32
      %497 = vector.broadcast %cst_141 : f32 to vector<8x32xf32>
      %498 = arith.addf %497, %496 : vector<8x32xf32>
      %499 = arith.divf %497, %498 : vector<8x32xf32>
      %500 = vector.extract_strided_slice %483 {offsets = [0, 64], sizes = [8, 32], strides = [1, 1]} : vector<8x96xf32> to vector<8x32xf32>
      %501 = vector.extract_strided_slice %479 {offsets = [0, 64], sizes = [8, 32], strides = [1, 1]} : vector<8x96xf32> to vector<8x32xf32>
      %502 = vector.broadcast %37 : vector<1x32xf32> to vector<8x32xf32>
      %503 = arith.addf %501, %502 : vector<8x32xf32>
      %504 = arith.mulf %491, %503 : vector<8x32xf32>
      %505 = arith.addf %500, %504 : vector<8x32xf32>
      %506 = math.tanh %505 : vector<8x32xf32>
      %cst_142 = arith.constant 1.000000e+00 : f32
      %507 = vector.broadcast %cst_142 : f32 to vector<8x32xf32>
      %508 = arith.subf %507, %499 : vector<8x32xf32>
      %509 = arith.mulf %508, %506 : vector<8x32xf32>
      %510 = arith.mulf %499, %438 : vector<8x32xf32>
      %511 = arith.addf %509, %510 : vector<8x32xf32>
      %512 = arith.index_cast %478 : i32 to index
      %c0_143 = arith.constant 0 : index
      %c0_144 = arith.constant 0 : index
      %513 = vector.load %alloca_0[%512, %c0_143, %c0_144] : memref<8x8x96xf32, #tpu.memory_space<vmem>>, vector<1x8x96xf32>
      %514 = vector.shape_cast %513 : vector<1x8x96xf32> to vector<8x96xf32>
      %515 = vector.extract_strided_slice %514 {offsets = [0, 0], sizes = [8, 32], strides = [1, 1]} : vector<8x96xf32> to vector<8x32xf32>
      %516 = vector.extract_strided_slice %480 {offsets = [0, 0], sizes = [8, 32], strides = [1, 1]} : vector<8x96xf32> to vector<8x32xf32>
      %517 = arith.addf %515, %516 : vector<8x32xf32>
      %518 = arith.negf %517 : vector<8x32xf32>
      %519 = math.exp %518 : vector<8x32xf32>
      %cst_145 = arith.constant 1.000000e+00 : f32
      %520 = vector.broadcast %cst_145 : f32 to vector<8x32xf32>
      %521 = arith.addf %520, %519 : vector<8x32xf32>
      %522 = arith.divf %520, %521 : vector<8x32xf32>
      %523 = vector.extract_strided_slice %514 {offsets = [0, 32], sizes = [8, 32], strides = [1, 1]} : vector<8x96xf32> to vector<8x32xf32>
      %524 = vector.extract_strided_slice %480 {offsets = [0, 32], sizes = [8, 32], strides = [1, 1]} : vector<8x96xf32> to vector<8x32xf32>
      %525 = arith.addf %523, %524 : vector<8x32xf32>
      %526 = arith.negf %525 : vector<8x32xf32>
      %527 = math.exp %526 : vector<8x32xf32>
      %cst_146 = arith.constant 1.000000e+00 : f32
      %528 = vector.broadcast %cst_146 : f32 to vector<8x32xf32>
      %529 = arith.addf %528, %527 : vector<8x32xf32>
      %530 = arith.divf %528, %529 : vector<8x32xf32>
      %531 = vector.extract_strided_slice %514 {offsets = [0, 64], sizes = [8, 32], strides = [1, 1]} : vector<8x96xf32> to vector<8x32xf32>
      %532 = vector.extract_strided_slice %480 {offsets = [0, 64], sizes = [8, 32], strides = [1, 1]} : vector<8x96xf32> to vector<8x32xf32>
      %533 = vector.broadcast %39 : vector<1x32xf32> to vector<8x32xf32>
      %534 = arith.addf %532, %533 : vector<8x32xf32>
      %535 = arith.mulf %522, %534 : vector<8x32xf32>
      %536 = arith.addf %531, %535 : vector<8x32xf32>
      %537 = math.tanh %536 : vector<8x32xf32>
      %cst_147 = arith.constant 1.000000e+00 : f32
      %538 = vector.broadcast %cst_147 : f32 to vector<8x32xf32>
      %539 = arith.subf %538, %530 : vector<8x32xf32>
      %540 = arith.mulf %539, %537 : vector<8x32xf32>
      %541 = arith.mulf %530, %469 : vector<8x32xf32>
      %542 = arith.addf %540, %541 : vector<8x32xf32>
      %543 = arith.index_cast %c6_i32 : i32 to index
      %c0_148 = arith.constant 0 : index
      %c0_149 = arith.constant 0 : index
      %544 = vector.load %arg14[%543, %c0_148, %c0_149] : memref<8x8x32xf32, #tpu.memory_space<vmem>>, vector<1x8x32xf32>
      %545 = vector.shape_cast %544 : vector<1x8x32xf32> to vector<8x32xf32>
      %546 = vector.shape_cast %511 : vector<8x32xf32> to vector<1x8x32xf32>
      tpu.vector_store %arg14[%543, %c0_148, %c0_149], %546 {strides = array<i32>} : memref<8x8x32xf32, #tpu.memory_space<vmem>>, vector<1x8x32xf32>,
      %547 = arith.index_cast %478 : i32 to index
      %c0_150 = arith.constant 0 : index
      %c0_151 = arith.constant 0 : index
      %548 = vector.load %arg15[%547, %c0_150, %c0_151] : memref<8x8x32xf32, #tpu.memory_space<vmem>>, vector<1x8x32xf32>
      %549 = vector.shape_cast %548 : vector<1x8x32xf32> to vector<8x32xf32>
      %550 = vector.shape_cast %542 : vector<8x32xf32> to vector<1x8x32xf32>
      tpu.vector_store %arg15[%547, %c0_150, %c0_151], %550 {strides = array<i32>} : memref<8x8x32xf32, #tpu.memory_space<vmem>>, vector<1x8x32xf32>,
      %c7_i32_152 = arith.constant 7 : i32
      %c7_i32_153 = arith.constant 7 : i32
      %551 = arith.subi %c7_i32_153, %c7_i32_152 : i32
      %cst_154 = arith.constant dense<0.000000e+00> : vector<8x96xf32>
      %552 = tpu.matmul %511, %33, %cst_154 {dimension_numbers = #tpu.dot_dimension_numbers<[1], [0], [0], [1], [0, 0, 1, 1], [], []>} : vector<8x32xf32>, vector<32x96xf32>, vector<8x96xf32> -> vector<8x96xf32>
      %cst_155 = arith.constant dense<0.000000e+00> : vector<8x96xf32>
      %553 = tpu.matmul %542, %35, %cst_155 {dimension_numbers = #tpu.dot_dimension_numbers<[1], [0], [0], [1], [0, 0, 1, 1], [], []>} : vector<8x32xf32>, vector<32x96xf32>, vector<8x96xf32> -> vector<8x96xf32>
      %554 = arith.index_cast %c7_i32_152 : i32 to index
      %c0_156 = arith.constant 0 : index
      %c0_157 = arith.constant 0 : index
      %555 = vector.load %alloca[%554, %c0_156, %c0_157] : memref<8x8x96xf32, #tpu.memory_space<vmem>>, vector<1x8x96xf32>
      %556 = vector.shape_cast %555 : vector<1x8x96xf32> to vector<8x96xf32>
      %557 = vector.extract_strided_slice %556 {offsets = [0, 0], sizes = [8, 32], strides = [1, 1]} : vector<8x96xf32> to vector<8x32xf32>
      %558 = vector.extract_strided_slice %552 {offsets = [0, 0], sizes = [8, 32], strides = [1, 1]} : vector<8x96xf32> to vector<8x32xf32>
      %559 = arith.addf %557, %558 : vector<8x32xf32>
      %560 = arith.negf %559 : vector<8x32xf32>
      %561 = math.exp %560 : vector<8x32xf32>
      %cst_158 = arith.constant 1.000000e+00 : f32
      %562 = vector.broadcast %cst_158 : f32 to vector<8x32xf32>
      %563 = arith.addf %562, %561 : vector<8x32xf32>
      %564 = arith.divf %562, %563 : vector<8x32xf32>
      %565 = vector.extract_strided_slice %556 {offsets = [0, 32], sizes = [8, 32], strides = [1, 1]} : vector<8x96xf32> to vector<8x32xf32>
      %566 = vector.extract_strided_slice %552 {offsets = [0, 32], sizes = [8, 32], strides = [1, 1]} : vector<8x96xf32> to vector<8x32xf32>
      %567 = arith.addf %565, %566 : vector<8x32xf32>
      %568 = arith.negf %567 : vector<8x32xf32>
      %569 = math.exp %568 : vector<8x32xf32>
      %cst_159 = arith.constant 1.000000e+00 : f32
      %570 = vector.broadcast %cst_159 : f32 to vector<8x32xf32>
      %571 = arith.addf %570, %569 : vector<8x32xf32>
      %572 = arith.divf %570, %571 : vector<8x32xf32>
      %573 = vector.extract_strided_slice %556 {offsets = [0, 64], sizes = [8, 32], strides = [1, 1]} : vector<8x96xf32> to vector<8x32xf32>
      %574 = vector.extract_strided_slice %552 {offsets = [0, 64], sizes = [8, 32], strides = [1, 1]} : vector<8x96xf32> to vector<8x32xf32>
      %575 = vector.broadcast %37 : vector<1x32xf32> to vector<8x32xf32>
      %576 = arith.addf %574, %575 : vector<8x32xf32>
      %577 = arith.mulf %564, %576 : vector<8x32xf32>
      %578 = arith.addf %573, %577 : vector<8x32xf32>
      %579 = math.tanh %578 : vector<8x32xf32>
      %cst_160 = arith.constant 1.000000e+00 : f32
      %580 = vector.broadcast %cst_160 : f32 to vector<8x32xf32>
      %581 = arith.subf %580, %572 : vector<8x32xf32>
      %582 = arith.mulf %581, %579 : vector<8x32xf32>
      %583 = arith.mulf %572, %511 : vector<8x32xf32>
      %584 = arith.addf %582, %583 : vector<8x32xf32>
      %585 = arith.index_cast %551 : i32 to index
      %c0_161 = arith.constant 0 : index
      %c0_162 = arith.constant 0 : index
      %586 = vector.load %alloca_0[%585, %c0_161, %c0_162] : memref<8x8x96xf32, #tpu.memory_space<vmem>>, vector<1x8x96xf32>
      %587 = vector.shape_cast %586 : vector<1x8x96xf32> to vector<8x96xf32>
      %588 = vector.extract_strided_slice %587 {offsets = [0, 0], sizes = [8, 32], strides = [1, 1]} : vector<8x96xf32> to vector<8x32xf32>
      %589 = vector.extract_strided_slice %553 {offsets = [0, 0], sizes = [8, 32], strides = [1, 1]} : vector<8x96xf32> to vector<8x32xf32>
      %590 = arith.addf %588, %589 : vector<8x32xf32>
      %591 = arith.negf %590 : vector<8x32xf32>
      %592 = math.exp %591 : vector<8x32xf32>
      %cst_163 = arith.constant 1.000000e+00 : f32
      %593 = vector.broadcast %cst_163 : f32 to vector<8x32xf32>
      %594 = arith.addf %593, %592 : vector<8x32xf32>
      %595 = arith.divf %593, %594 : vector<8x32xf32>
      %596 = vector.extract_strided_slice %587 {offsets = [0, 32], sizes = [8, 32], strides = [1, 1]} : vector<8x96xf32> to vector<8x32xf32>
      %597 = vector.extract_strided_slice %553 {offsets = [0, 32], sizes = [8, 32], strides = [1, 1]} : vector<8x96xf32> to vector<8x32xf32>
      %598 = arith.addf %596, %597 : vector<8x32xf32>
      %599 = arith.negf %598 : vector<8x32xf32>
      %600 = math.exp %599 : vector<8x32xf32>
      %cst_164 = arith.constant 1.000000e+00 : f32
      %601 = vector.broadcast %cst_164 : f32 to vector<8x32xf32>
      %602 = arith.addf %601, %600 : vector<8x32xf32>
      %603 = arith.divf %601, %602 : vector<8x32xf32>
      %604 = vector.extract_strided_slice %587 {offsets = [0, 64], sizes = [8, 32], strides = [1, 1]} : vector<8x96xf32> to vector<8x32xf32>
      %605 = vector.extract_strided_slice %553 {offsets = [0, 64], sizes = [8, 32], strides = [1, 1]} : vector<8x96xf32> to vector<8x32xf32>
      %606 = vector.broadcast %39 : vector<1x32xf32> to vector<8x32xf32>
      %607 = arith.addf %605, %606 : vector<8x32xf32>
      %608 = arith.mulf %595, %607 : vector<8x32xf32>
      %609 = arith.addf %604, %608 : vector<8x32xf32>
      %610 = math.tanh %609 : vector<8x32xf32>
      %cst_165 = arith.constant 1.000000e+00 : f32
      %611 = vector.broadcast %cst_165 : f32 to vector<8x32xf32>
      %612 = arith.subf %611, %603 : vector<8x32xf32>
      %613 = arith.mulf %612, %610 : vector<8x32xf32>
      %614 = arith.mulf %603, %542 : vector<8x32xf32>
      %615 = arith.addf %613, %614 : vector<8x32xf32>
      %616 = arith.index_cast %c7_i32_152 : i32 to index
      %c0_166 = arith.constant 0 : index
      %c0_167 = arith.constant 0 : index
      %617 = vector.load %arg14[%616, %c0_166, %c0_167] : memref<8x8x32xf32, #tpu.memory_space<vmem>>, vector<1x8x32xf32>
      %618 = vector.shape_cast %617 : vector<1x8x32xf32> to vector<8x32xf32>
      %619 = vector.shape_cast %584 : vector<8x32xf32> to vector<1x8x32xf32>
      tpu.vector_store %arg14[%616, %c0_166, %c0_167], %619 {strides = array<i32>} : memref<8x8x32xf32, #tpu.memory_space<vmem>>, vector<1x8x32xf32>,
      %620 = arith.index_cast %551 : i32 to index
      %c0_168 = arith.constant 0 : index
      %c0_169 = arith.constant 0 : index
      %621 = vector.load %arg15[%620, %c0_168, %c0_169] : memref<8x8x32xf32, #tpu.memory_space<vmem>>, vector<1x8x32xf32>
      %622 = vector.shape_cast %621 : vector<1x8x32xf32> to vector<8x32xf32>
      %623 = vector.shape_cast %615 : vector<8x32xf32> to vector<1x8x32xf32>
      tpu.vector_store %arg15[%620, %c0_168, %c0_169], %623 {strides = array<i32>} : memref<8x8x32xf32, #tpu.memory_space<vmem>>, vector<1x8x32xf32>,
      %c8_i32 = arith.constant 8 : i32
      tpu.yield
    }) : () -> ()
    "tpu.region"() ({
      %alloca = memref.alloca() : memref<8x8x96xf32, #tpu.memory_space<vmem>>
      %c0 = arith.constant 0 : index
      %c0_0 = arith.constant 0 : index
      %c0_1 = arith.constant 0 : index
      %1 = vector.load %arg8[%c0, %c0_0, %c0_1] : memref<2x32x96xbf16, #tpu.memory_space<vmem>>, vector<2x32x96xbf16>
      %c0_2 = arith.constant 0 : index
      %c0_3 = arith.constant 0 : index
      %c0_4 = arith.constant 0 : index
      %2 = vector.load %arg9[%c0_2, %c0_3, %c0_4] : memref<2x32x96xbf16, #tpu.memory_space<vmem>>, vector<2x32x96xbf16>
      %c0_5 = arith.constant 0 : index
      %c0_6 = arith.constant 0 : index
      %c0_7 = arith.constant 0 : index
      %3 = vector.load %arg14[%c0_5, %c0_6, %c0_7] : memref<8x8x32xf32, #tpu.memory_space<vmem>>, vector<8x8x32xf32>
      %4 = vector.shape_cast %3 : vector<8x8x32xf32> to vector<64x32xf32>
      %5 = arith.truncf %4 : vector<64x32xf32> to vector<64x32xbf16>
      %c0_8 = arith.constant 0 : index
      %c0_9 = arith.constant 0 : index
      %c0_10 = arith.constant 0 : index
      %6 = vector.load %arg15[%c0_8, %c0_9, %c0_10] : memref<8x8x32xf32, #tpu.memory_space<vmem>>, vector<8x8x32xf32>
      %7 = vector.shape_cast %6 : vector<8x8x32xf32> to vector<64x32xf32>
      %8 = arith.truncf %7 : vector<64x32xf32> to vector<64x32xbf16>
      %9 = vector.extract_strided_slice %1 {offsets = [0, 0, 0], sizes = [1, 32, 96], strides = [1, 1, 1]} : vector<2x32x96xbf16> to vector<1x32x96xbf16>
      %10 = vector.shape_cast %9 : vector<1x32x96xbf16> to vector<32x96xbf16>
      %cst_11 = arith.constant dense<0.000000e+00> : vector<64x96xf32>
      %11 = tpu.matmul %5, %10, %cst_11 {dimension_numbers = #tpu.dot_dimension_numbers<[1], [0], [0], [1], [0, 0, 1, 1], [], []>} : vector<64x32xbf16>, vector<32x96xbf16>, vector<64x96xf32> -> vector<64x96xf32>
      %12 = vector.extract_strided_slice %2 {offsets = [0, 0, 0], sizes = [1, 32, 96], strides = [1, 1, 1]} : vector<2x32x96xbf16> to vector<1x32x96xbf16>
      %13 = vector.shape_cast %12 : vector<1x32x96xbf16> to vector<32x96xbf16>
      %cst_12 = arith.constant dense<0.000000e+00> : vector<64x96xf32>
      %14 = tpu.matmul %8, %13, %cst_12 {dimension_numbers = #tpu.dot_dimension_numbers<[1], [0], [0], [1], [0, 0, 1, 1], [], []>} : vector<64x32xbf16>, vector<32x96xbf16>, vector<64x96xf32> -> vector<64x96xf32>
      %15 = arith.addf %11, %14 : vector<64x96xf32>
      %c0_13 = arith.constant 0 : index
      %c0_14 = arith.constant 0 : index
      %c0_15 = arith.constant 0 : index
      %16 = vector.load %arg11[%c0_13, %c0_14, %c0_15] : memref<2x1x96xf32, #tpu.memory_space<vmem>>, vector<1x1x96xf32>
      %17 = vector.shape_cast %16 : vector<1x1x96xf32> to vector<1x96xf32>
      %18 = vector.broadcast %17 : vector<1x96xf32> to vector<64x96xf32>
      %19 = arith.addf %15, %18 : vector<64x96xf32>
      %20 = vector.shape_cast %19 : vector<64x96xf32> to vector<8x8x96xf32>
      %c0_16 = arith.constant 0 : index
      %c0_17 = arith.constant 0 : index
      %c0_18 = arith.constant 0 : index
      %21 = vector.load %alloca[%c0_16, %c0_17, %c0_18] : memref<8x8x96xf32, #tpu.memory_space<vmem>>, vector<8x8x96xf32>
      tpu.vector_store %alloca[%c0_16, %c0_17, %c0_18], %20 {strides = array<i32>} : memref<8x8x96xf32, #tpu.memory_space<vmem>>, vector<8x8x96xf32>,
      %c0_19 = arith.constant 0 : index
      %c0_20 = arith.constant 0 : index
      %22 = vector.load %arg10[%c0_19, %c0_20] : memref<32x96xf32, #tpu.memory_space<vmem>>, vector<32x96xf32>
      %c0_21 = arith.constant 0 : index
      %c0_22 = arith.constant 0 : index
      %c0_23 = arith.constant 0 : index
      %23 = vector.load %arg12[%c0_21, %c0_22, %c0_23] : memref<2x1x32xf32, #tpu.memory_space<vmem>>, vector<1x1x32xf32>
      %24 = vector.shape_cast %23 : vector<1x1x32xf32> to vector<1x32xf32>
      %c0_i32 = arith.constant 0 : i32
      %cst_24 = arith.constant dense<0.000000e+00> : vector<8x96xf32>
      %25 = tpu.matmul %0, %22, %cst_24 {dimension_numbers = #tpu.dot_dimension_numbers<[1], [0], [0], [1], [0, 0, 1, 1], [], []>} : vector<8x32xf32>, vector<32x96xf32>, vector<8x96xf32> -> vector<8x96xf32>
      %26 = arith.index_cast %c0_i32 : i32 to index
      %c0_25 = arith.constant 0 : index
      %c0_26 = arith.constant 0 : index
      %27 = vector.load %alloca[%26, %c0_25, %c0_26] : memref<8x8x96xf32, #tpu.memory_space<vmem>>, vector<1x8x96xf32>
      %28 = vector.shape_cast %27 : vector<1x8x96xf32> to vector<8x96xf32>
      %29 = vector.extract_strided_slice %28 {offsets = [0, 0], sizes = [8, 32], strides = [1, 1]} : vector<8x96xf32> to vector<8x32xf32>
      %30 = vector.extract_strided_slice %25 {offsets = [0, 0], sizes = [8, 32], strides = [1, 1]} : vector<8x96xf32> to vector<8x32xf32>
      %31 = arith.addf %29, %30 : vector<8x32xf32>
      %32 = arith.negf %31 : vector<8x32xf32>
      %33 = math.exp %32 : vector<8x32xf32>
      %cst_27 = arith.constant 1.000000e+00 : f32
      %34 = vector.broadcast %cst_27 : f32 to vector<8x32xf32>
      %35 = arith.addf %34, %33 : vector<8x32xf32>
      %36 = arith.divf %34, %35 : vector<8x32xf32>
      %37 = vector.extract_strided_slice %28 {offsets = [0, 32], sizes = [8, 32], strides = [1, 1]} : vector<8x96xf32> to vector<8x32xf32>
      %38 = vector.extract_strided_slice %25 {offsets = [0, 32], sizes = [8, 32], strides = [1, 1]} : vector<8x96xf32> to vector<8x32xf32>
      %39 = arith.addf %37, %38 : vector<8x32xf32>
      %40 = arith.negf %39 : vector<8x32xf32>
      %41 = math.exp %40 : vector<8x32xf32>
      %cst_28 = arith.constant 1.000000e+00 : f32
      %42 = vector.broadcast %cst_28 : f32 to vector<8x32xf32>
      %43 = arith.addf %42, %41 : vector<8x32xf32>
      %44 = arith.divf %42, %43 : vector<8x32xf32>
      %45 = vector.extract_strided_slice %28 {offsets = [0, 64], sizes = [8, 32], strides = [1, 1]} : vector<8x96xf32> to vector<8x32xf32>
      %46 = vector.extract_strided_slice %25 {offsets = [0, 64], sizes = [8, 32], strides = [1, 1]} : vector<8x96xf32> to vector<8x32xf32>
      %47 = vector.broadcast %24 : vector<1x32xf32> to vector<8x32xf32>
      %48 = arith.addf %46, %47 : vector<8x32xf32>
      %49 = arith.mulf %36, %48 : vector<8x32xf32>
      %50 = arith.addf %45, %49 : vector<8x32xf32>
      %51 = math.tanh %50 : vector<8x32xf32>
      %cst_29 = arith.constant 1.000000e+00 : f32
      %52 = vector.broadcast %cst_29 : f32 to vector<8x32xf32>
      %53 = arith.subf %52, %44 : vector<8x32xf32>
      %54 = arith.mulf %53, %51 : vector<8x32xf32>
      %55 = arith.mulf %44, %0 : vector<8x32xf32>
      %56 = arith.addf %54, %55 : vector<8x32xf32>
      %c1_i32 = arith.constant 1 : i32
      %cst_30 = arith.constant dense<0.000000e+00> : vector<8x96xf32>
      %57 = tpu.matmul %56, %22, %cst_30 {dimension_numbers = #tpu.dot_dimension_numbers<[1], [0], [0], [1], [0, 0, 1, 1], [], []>} : vector<8x32xf32>, vector<32x96xf32>, vector<8x96xf32> -> vector<8x96xf32>
      %58 = arith.index_cast %c1_i32 : i32 to index
      %c0_31 = arith.constant 0 : index
      %c0_32 = arith.constant 0 : index
      %59 = vector.load %alloca[%58, %c0_31, %c0_32] : memref<8x8x96xf32, #tpu.memory_space<vmem>>, vector<1x8x96xf32>
      %60 = vector.shape_cast %59 : vector<1x8x96xf32> to vector<8x96xf32>
      %61 = vector.extract_strided_slice %60 {offsets = [0, 0], sizes = [8, 32], strides = [1, 1]} : vector<8x96xf32> to vector<8x32xf32>
      %62 = vector.extract_strided_slice %57 {offsets = [0, 0], sizes = [8, 32], strides = [1, 1]} : vector<8x96xf32> to vector<8x32xf32>
      %63 = arith.addf %61, %62 : vector<8x32xf32>
      %64 = arith.negf %63 : vector<8x32xf32>
      %65 = math.exp %64 : vector<8x32xf32>
      %cst_33 = arith.constant 1.000000e+00 : f32
      %66 = vector.broadcast %cst_33 : f32 to vector<8x32xf32>
      %67 = arith.addf %66, %65 : vector<8x32xf32>
      %68 = arith.divf %66, %67 : vector<8x32xf32>
      %69 = vector.extract_strided_slice %60 {offsets = [0, 32], sizes = [8, 32], strides = [1, 1]} : vector<8x96xf32> to vector<8x32xf32>
      %70 = vector.extract_strided_slice %57 {offsets = [0, 32], sizes = [8, 32], strides = [1, 1]} : vector<8x96xf32> to vector<8x32xf32>
      %71 = arith.addf %69, %70 : vector<8x32xf32>
      %72 = arith.negf %71 : vector<8x32xf32>
      %73 = math.exp %72 : vector<8x32xf32>
      %cst_34 = arith.constant 1.000000e+00 : f32
      %74 = vector.broadcast %cst_34 : f32 to vector<8x32xf32>
      %75 = arith.addf %74, %73 : vector<8x32xf32>
      %76 = arith.divf %74, %75 : vector<8x32xf32>
      %77 = vector.extract_strided_slice %60 {offsets = [0, 64], sizes = [8, 32], strides = [1, 1]} : vector<8x96xf32> to vector<8x32xf32>
      %78 = vector.extract_strided_slice %57 {offsets = [0, 64], sizes = [8, 32], strides = [1, 1]} : vector<8x96xf32> to vector<8x32xf32>
      %79 = vector.broadcast %24 : vector<1x32xf32> to vector<8x32xf32>
      %80 = arith.addf %78, %79 : vector<8x32xf32>
      %81 = arith.mulf %68, %80 : vector<8x32xf32>
      %82 = arith.addf %77, %81 : vector<8x32xf32>
      %83 = math.tanh %82 : vector<8x32xf32>
      %cst_35 = arith.constant 1.000000e+00 : f32
      %84 = vector.broadcast %cst_35 : f32 to vector<8x32xf32>
      %85 = arith.subf %84, %76 : vector<8x32xf32>
      %86 = arith.mulf %85, %83 : vector<8x32xf32>
      %87 = arith.mulf %76, %56 : vector<8x32xf32>
      %88 = arith.addf %86, %87 : vector<8x32xf32>
      %c2_i32 = arith.constant 2 : i32
      %cst_36 = arith.constant dense<0.000000e+00> : vector<8x96xf32>
      %89 = tpu.matmul %88, %22, %cst_36 {dimension_numbers = #tpu.dot_dimension_numbers<[1], [0], [0], [1], [0, 0, 1, 1], [], []>} : vector<8x32xf32>, vector<32x96xf32>, vector<8x96xf32> -> vector<8x96xf32>
      %90 = arith.index_cast %c2_i32 : i32 to index
      %c0_37 = arith.constant 0 : index
      %c0_38 = arith.constant 0 : index
      %91 = vector.load %alloca[%90, %c0_37, %c0_38] : memref<8x8x96xf32, #tpu.memory_space<vmem>>, vector<1x8x96xf32>
      %92 = vector.shape_cast %91 : vector<1x8x96xf32> to vector<8x96xf32>
      %93 = vector.extract_strided_slice %92 {offsets = [0, 0], sizes = [8, 32], strides = [1, 1]} : vector<8x96xf32> to vector<8x32xf32>
      %94 = vector.extract_strided_slice %89 {offsets = [0, 0], sizes = [8, 32], strides = [1, 1]} : vector<8x96xf32> to vector<8x32xf32>
      %95 = arith.addf %93, %94 : vector<8x32xf32>
      %96 = arith.negf %95 : vector<8x32xf32>
      %97 = math.exp %96 : vector<8x32xf32>
      %cst_39 = arith.constant 1.000000e+00 : f32
      %98 = vector.broadcast %cst_39 : f32 to vector<8x32xf32>
      %99 = arith.addf %98, %97 : vector<8x32xf32>
      %100 = arith.divf %98, %99 : vector<8x32xf32>
      %101 = vector.extract_strided_slice %92 {offsets = [0, 32], sizes = [8, 32], strides = [1, 1]} : vector<8x96xf32> to vector<8x32xf32>
      %102 = vector.extract_strided_slice %89 {offsets = [0, 32], sizes = [8, 32], strides = [1, 1]} : vector<8x96xf32> to vector<8x32xf32>
      %103 = arith.addf %101, %102 : vector<8x32xf32>
      %104 = arith.negf %103 : vector<8x32xf32>
      %105 = math.exp %104 : vector<8x32xf32>
      %cst_40 = arith.constant 1.000000e+00 : f32
      %106 = vector.broadcast %cst_40 : f32 to vector<8x32xf32>
      %107 = arith.addf %106, %105 : vector<8x32xf32>
      %108 = arith.divf %106, %107 : vector<8x32xf32>
      %109 = vector.extract_strided_slice %92 {offsets = [0, 64], sizes = [8, 32], strides = [1, 1]} : vector<8x96xf32> to vector<8x32xf32>
      %110 = vector.extract_strided_slice %89 {offsets = [0, 64], sizes = [8, 32], strides = [1, 1]} : vector<8x96xf32> to vector<8x32xf32>
      %111 = vector.broadcast %24 : vector<1x32xf32> to vector<8x32xf32>
      %112 = arith.addf %110, %111 : vector<8x32xf32>
      %113 = arith.mulf %100, %112 : vector<8x32xf32>
      %114 = arith.addf %109, %113 : vector<8x32xf32>
      %115 = math.tanh %114 : vector<8x32xf32>
      %cst_41 = arith.constant 1.000000e+00 : f32
      %116 = vector.broadcast %cst_41 : f32 to vector<8x32xf32>
      %117 = arith.subf %116, %108 : vector<8x32xf32>
      %118 = arith.mulf %117, %115 : vector<8x32xf32>
      %119 = arith.mulf %108, %88 : vector<8x32xf32>
      %120 = arith.addf %118, %119 : vector<8x32xf32>
      %c3_i32 = arith.constant 3 : i32
      %cst_42 = arith.constant dense<0.000000e+00> : vector<8x96xf32>
      %121 = tpu.matmul %120, %22, %cst_42 {dimension_numbers = #tpu.dot_dimension_numbers<[1], [0], [0], [1], [0, 0, 1, 1], [], []>} : vector<8x32xf32>, vector<32x96xf32>, vector<8x96xf32> -> vector<8x96xf32>
      %122 = arith.index_cast %c3_i32 : i32 to index
      %c0_43 = arith.constant 0 : index
      %c0_44 = arith.constant 0 : index
      %123 = vector.load %alloca[%122, %c0_43, %c0_44] : memref<8x8x96xf32, #tpu.memory_space<vmem>>, vector<1x8x96xf32>
      %124 = vector.shape_cast %123 : vector<1x8x96xf32> to vector<8x96xf32>
      %125 = vector.extract_strided_slice %124 {offsets = [0, 0], sizes = [8, 32], strides = [1, 1]} : vector<8x96xf32> to vector<8x32xf32>
      %126 = vector.extract_strided_slice %121 {offsets = [0, 0], sizes = [8, 32], strides = [1, 1]} : vector<8x96xf32> to vector<8x32xf32>
      %127 = arith.addf %125, %126 : vector<8x32xf32>
      %128 = arith.negf %127 : vector<8x32xf32>
      %129 = math.exp %128 : vector<8x32xf32>
      %cst_45 = arith.constant 1.000000e+00 : f32
      %130 = vector.broadcast %cst_45 : f32 to vector<8x32xf32>
      %131 = arith.addf %130, %129 : vector<8x32xf32>
      %132 = arith.divf %130, %131 : vector<8x32xf32>
      %133 = vector.extract_strided_slice %124 {offsets = [0, 32], sizes = [8, 32], strides = [1, 1]} : vector<8x96xf32> to vector<8x32xf32>
      %134 = vector.extract_strided_slice %121 {offsets = [0, 32], sizes = [8, 32], strides = [1, 1]} : vector<8x96xf32> to vector<8x32xf32>
      %135 = arith.addf %133, %134 : vector<8x32xf32>
      %136 = arith.negf %135 : vector<8x32xf32>
      %137 = math.exp %136 : vector<8x32xf32>
      %cst_46 = arith.constant 1.000000e+00 : f32
      %138 = vector.broadcast %cst_46 : f32 to vector<8x32xf32>
      %139 = arith.addf %138, %137 : vector<8x32xf32>
      %140 = arith.divf %138, %139 : vector<8x32xf32>
      %141 = vector.extract_strided_slice %124 {offsets = [0, 64], sizes = [8, 32], strides = [1, 1]} : vector<8x96xf32> to vector<8x32xf32>
      %142 = vector.extract_strided_slice %121 {offsets = [0, 64], sizes = [8, 32], strides = [1, 1]} : vector<8x96xf32> to vector<8x32xf32>
      %143 = vector.broadcast %24 : vector<1x32xf32> to vector<8x32xf32>
      %144 = arith.addf %142, %143 : vector<8x32xf32>
      %145 = arith.mulf %132, %144 : vector<8x32xf32>
      %146 = arith.addf %141, %145 : vector<8x32xf32>
      %147 = math.tanh %146 : vector<8x32xf32>
      %cst_47 = arith.constant 1.000000e+00 : f32
      %148 = vector.broadcast %cst_47 : f32 to vector<8x32xf32>
      %149 = arith.subf %148, %140 : vector<8x32xf32>
      %150 = arith.mulf %149, %147 : vector<8x32xf32>
      %151 = arith.mulf %140, %120 : vector<8x32xf32>
      %152 = arith.addf %150, %151 : vector<8x32xf32>
      %c4_i32 = arith.constant 4 : i32
      %cst_48 = arith.constant dense<0.000000e+00> : vector<8x96xf32>
      %153 = tpu.matmul %152, %22, %cst_48 {dimension_numbers = #tpu.dot_dimension_numbers<[1], [0], [0], [1], [0, 0, 1, 1], [], []>} : vector<8x32xf32>, vector<32x96xf32>, vector<8x96xf32> -> vector<8x96xf32>
      %154 = arith.index_cast %c4_i32 : i32 to index
      %c0_49 = arith.constant 0 : index
      %c0_50 = arith.constant 0 : index
      %155 = vector.load %alloca[%154, %c0_49, %c0_50] : memref<8x8x96xf32, #tpu.memory_space<vmem>>, vector<1x8x96xf32>
      %156 = vector.shape_cast %155 : vector<1x8x96xf32> to vector<8x96xf32>
      %157 = vector.extract_strided_slice %156 {offsets = [0, 0], sizes = [8, 32], strides = [1, 1]} : vector<8x96xf32> to vector<8x32xf32>
      %158 = vector.extract_strided_slice %153 {offsets = [0, 0], sizes = [8, 32], strides = [1, 1]} : vector<8x96xf32> to vector<8x32xf32>
      %159 = arith.addf %157, %158 : vector<8x32xf32>
      %160 = arith.negf %159 : vector<8x32xf32>
      %161 = math.exp %160 : vector<8x32xf32>
      %cst_51 = arith.constant 1.000000e+00 : f32
      %162 = vector.broadcast %cst_51 : f32 to vector<8x32xf32>
      %163 = arith.addf %162, %161 : vector<8x32xf32>
      %164 = arith.divf %162, %163 : vector<8x32xf32>
      %165 = vector.extract_strided_slice %156 {offsets = [0, 32], sizes = [8, 32], strides = [1, 1]} : vector<8x96xf32> to vector<8x32xf32>
      %166 = vector.extract_strided_slice %153 {offsets = [0, 32], sizes = [8, 32], strides = [1, 1]} : vector<8x96xf32> to vector<8x32xf32>
      %167 = arith.addf %165, %166 : vector<8x32xf32>
      %168 = arith.negf %167 : vector<8x32xf32>
      %169 = math.exp %168 : vector<8x32xf32>
      %cst_52 = arith.constant 1.000000e+00 : f32
      %170 = vector.broadcast %cst_52 : f32 to vector<8x32xf32>
      %171 = arith.addf %170, %169 : vector<8x32xf32>
      %172 = arith.divf %170, %171 : vector<8x32xf32>
      %173 = vector.extract_strided_slice %156 {offsets = [0, 64], sizes = [8, 32], strides = [1, 1]} : vector<8x96xf32> to vector<8x32xf32>
      %174 = vector.extract_strided_slice %153 {offsets = [0, 64], sizes = [8, 32], strides = [1, 1]} : vector<8x96xf32> to vector<8x32xf32>
      %175 = vector.broadcast %24 : vector<1x32xf32> to vector<8x32xf32>
      %176 = arith.addf %174, %175 : vector<8x32xf32>
      %177 = arith.mulf %164, %176 : vector<8x32xf32>
      %178 = arith.addf %173, %177 : vector<8x32xf32>
      %179 = math.tanh %178 : vector<8x32xf32>
      %cst_53 = arith.constant 1.000000e+00 : f32
      %180 = vector.broadcast %cst_53 : f32 to vector<8x32xf32>
      %181 = arith.subf %180, %172 : vector<8x32xf32>
      %182 = arith.mulf %181, %179 : vector<8x32xf32>
      %183 = arith.mulf %172, %152 : vector<8x32xf32>
      %184 = arith.addf %182, %183 : vector<8x32xf32>
      %c5_i32 = arith.constant 5 : i32
      %cst_54 = arith.constant dense<0.000000e+00> : vector<8x96xf32>
      %185 = tpu.matmul %184, %22, %cst_54 {dimension_numbers = #tpu.dot_dimension_numbers<[1], [0], [0], [1], [0, 0, 1, 1], [], []>} : vector<8x32xf32>, vector<32x96xf32>, vector<8x96xf32> -> vector<8x96xf32>
      %186 = arith.index_cast %c5_i32 : i32 to index
      %c0_55 = arith.constant 0 : index
      %c0_56 = arith.constant 0 : index
      %187 = vector.load %alloca[%186, %c0_55, %c0_56] : memref<8x8x96xf32, #tpu.memory_space<vmem>>, vector<1x8x96xf32>
      %188 = vector.shape_cast %187 : vector<1x8x96xf32> to vector<8x96xf32>
      %189 = vector.extract_strided_slice %188 {offsets = [0, 0], sizes = [8, 32], strides = [1, 1]} : vector<8x96xf32> to vector<8x32xf32>
      %190 = vector.extract_strided_slice %185 {offsets = [0, 0], sizes = [8, 32], strides = [1, 1]} : vector<8x96xf32> to vector<8x32xf32>
      %191 = arith.addf %189, %190 : vector<8x32xf32>
      %192 = arith.negf %191 : vector<8x32xf32>
      %193 = math.exp %192 : vector<8x32xf32>
      %cst_57 = arith.constant 1.000000e+00 : f32
      %194 = vector.broadcast %cst_57 : f32 to vector<8x32xf32>
      %195 = arith.addf %194, %193 : vector<8x32xf32>
      %196 = arith.divf %194, %195 : vector<8x32xf32>
      %197 = vector.extract_strided_slice %188 {offsets = [0, 32], sizes = [8, 32], strides = [1, 1]} : vector<8x96xf32> to vector<8x32xf32>
      %198 = vector.extract_strided_slice %185 {offsets = [0, 32], sizes = [8, 32], strides = [1, 1]} : vector<8x96xf32> to vector<8x32xf32>
      %199 = arith.addf %197, %198 : vector<8x32xf32>
      %200 = arith.negf %199 : vector<8x32xf32>
      %201 = math.exp %200 : vector<8x32xf32>
      %cst_58 = arith.constant 1.000000e+00 : f32
      %202 = vector.broadcast %cst_58 : f32 to vector<8x32xf32>
      %203 = arith.addf %202, %201 : vector<8x32xf32>
      %204 = arith.divf %202, %203 : vector<8x32xf32>
      %205 = vector.extract_strided_slice %188 {offsets = [0, 64], sizes = [8, 32], strides = [1, 1]} : vector<8x96xf32> to vector<8x32xf32>
      %206 = vector.extract_strided_slice %185 {offsets = [0, 64], sizes = [8, 32], strides = [1, 1]} : vector<8x96xf32> to vector<8x32xf32>
      %207 = vector.broadcast %24 : vector<1x32xf32> to vector<8x32xf32>
      %208 = arith.addf %206, %207 : vector<8x32xf32>
      %209 = arith.mulf %196, %208 : vector<8x32xf32>
      %210 = arith.addf %205, %209 : vector<8x32xf32>
      %211 = math.tanh %210 : vector<8x32xf32>
      %cst_59 = arith.constant 1.000000e+00 : f32
      %212 = vector.broadcast %cst_59 : f32 to vector<8x32xf32>
      %213 = arith.subf %212, %204 : vector<8x32xf32>
      %214 = arith.mulf %213, %211 : vector<8x32xf32>
      %215 = arith.mulf %204, %184 : vector<8x32xf32>
      %216 = arith.addf %214, %215 : vector<8x32xf32>
      %c6_i32 = arith.constant 6 : i32
      %cst_60 = arith.constant dense<0.000000e+00> : vector<8x96xf32>
      %217 = tpu.matmul %216, %22, %cst_60 {dimension_numbers = #tpu.dot_dimension_numbers<[1], [0], [0], [1], [0, 0, 1, 1], [], []>} : vector<8x32xf32>, vector<32x96xf32>, vector<8x96xf32> -> vector<8x96xf32>
      %218 = arith.index_cast %c6_i32 : i32 to index
      %c0_61 = arith.constant 0 : index
      %c0_62 = arith.constant 0 : index
      %219 = vector.load %alloca[%218, %c0_61, %c0_62] : memref<8x8x96xf32, #tpu.memory_space<vmem>>, vector<1x8x96xf32>
      %220 = vector.shape_cast %219 : vector<1x8x96xf32> to vector<8x96xf32>
      %221 = vector.extract_strided_slice %220 {offsets = [0, 0], sizes = [8, 32], strides = [1, 1]} : vector<8x96xf32> to vector<8x32xf32>
      %222 = vector.extract_strided_slice %217 {offsets = [0, 0], sizes = [8, 32], strides = [1, 1]} : vector<8x96xf32> to vector<8x32xf32>
      %223 = arith.addf %221, %222 : vector<8x32xf32>
      %224 = arith.negf %223 : vector<8x32xf32>
      %225 = math.exp %224 : vector<8x32xf32>
      %cst_63 = arith.constant 1.000000e+00 : f32
      %226 = vector.broadcast %cst_63 : f32 to vector<8x32xf32>
      %227 = arith.addf %226, %225 : vector<8x32xf32>
      %228 = arith.divf %226, %227 : vector<8x32xf32>
      %229 = vector.extract_strided_slice %220 {offsets = [0, 32], sizes = [8, 32], strides = [1, 1]} : vector<8x96xf32> to vector<8x32xf32>
      %230 = vector.extract_strided_slice %217 {offsets = [0, 32], sizes = [8, 32], strides = [1, 1]} : vector<8x96xf32> to vector<8x32xf32>
      %231 = arith.addf %229, %230 : vector<8x32xf32>
      %232 = arith.negf %231 : vector<8x32xf32>
      %233 = math.exp %232 : vector<8x32xf32>
      %cst_64 = arith.constant 1.000000e+00 : f32
      %234 = vector.broadcast %cst_64 : f32 to vector<8x32xf32>
      %235 = arith.addf %234, %233 : vector<8x32xf32>
      %236 = arith.divf %234, %235 : vector<8x32xf32>
      %237 = vector.extract_strided_slice %220 {offsets = [0, 64], sizes = [8, 32], strides = [1, 1]} : vector<8x96xf32> to vector<8x32xf32>
      %238 = vector.extract_strided_slice %217 {offsets = [0, 64], sizes = [8, 32], strides = [1, 1]} : vector<8x96xf32> to vector<8x32xf32>
      %239 = vector.broadcast %24 : vector<1x32xf32> to vector<8x32xf32>
      %240 = arith.addf %238, %239 : vector<8x32xf32>
      %241 = arith.mulf %228, %240 : vector<8x32xf32>
      %242 = arith.addf %237, %241 : vector<8x32xf32>
      %243 = math.tanh %242 : vector<8x32xf32>
      %cst_65 = arith.constant 1.000000e+00 : f32
      %244 = vector.broadcast %cst_65 : f32 to vector<8x32xf32>
      %245 = arith.subf %244, %236 : vector<8x32xf32>
      %246 = arith.mulf %245, %243 : vector<8x32xf32>
      %247 = arith.mulf %236, %216 : vector<8x32xf32>
      %248 = arith.addf %246, %247 : vector<8x32xf32>
      %c7_i32 = arith.constant 7 : i32
      %cst_66 = arith.constant dense<0.000000e+00> : vector<8x96xf32>
      %249 = tpu.matmul %248, %22, %cst_66 {dimension_numbers = #tpu.dot_dimension_numbers<[1], [0], [0], [1], [0, 0, 1, 1], [], []>} : vector<8x32xf32>, vector<32x96xf32>, vector<8x96xf32> -> vector<8x96xf32>
      %250 = arith.index_cast %c7_i32 : i32 to index
      %c0_67 = arith.constant 0 : index
      %c0_68 = arith.constant 0 : index
      %251 = vector.load %alloca[%250, %c0_67, %c0_68] : memref<8x8x96xf32, #tpu.memory_space<vmem>>, vector<1x8x96xf32>
      %252 = vector.shape_cast %251 : vector<1x8x96xf32> to vector<8x96xf32>
      %253 = vector.extract_strided_slice %252 {offsets = [0, 0], sizes = [8, 32], strides = [1, 1]} : vector<8x96xf32> to vector<8x32xf32>
      %254 = vector.extract_strided_slice %249 {offsets = [0, 0], sizes = [8, 32], strides = [1, 1]} : vector<8x96xf32> to vector<8x32xf32>
      %255 = arith.addf %253, %254 : vector<8x32xf32>
      %256 = arith.negf %255 : vector<8x32xf32>
      %257 = math.exp %256 : vector<8x32xf32>
      %cst_69 = arith.constant 1.000000e+00 : f32
      %258 = vector.broadcast %cst_69 : f32 to vector<8x32xf32>
      %259 = arith.addf %258, %257 : vector<8x32xf32>
      %260 = arith.divf %258, %259 : vector<8x32xf32>
      %261 = vector.extract_strided_slice %252 {offsets = [0, 32], sizes = [8, 32], strides = [1, 1]} : vector<8x96xf32> to vector<8x32xf32>
      %262 = vector.extract_strided_slice %249 {offsets = [0, 32], sizes = [8, 32], strides = [1, 1]} : vector<8x96xf32> to vector<8x32xf32>
      %263 = arith.addf %261, %262 : vector<8x32xf32>
      %264 = arith.negf %263 : vector<8x32xf32>
      %265 = math.exp %264 : vector<8x32xf32>
      %cst_70 = arith.constant 1.000000e+00 : f32
      %266 = vector.broadcast %cst_70 : f32 to vector<8x32xf32>
      %267 = arith.addf %266, %265 : vector<8x32xf32>
      %268 = arith.divf %266, %267 : vector<8x32xf32>
      %269 = vector.extract_strided_slice %252 {offsets = [0, 64], sizes = [8, 32], strides = [1, 1]} : vector<8x96xf32> to vector<8x32xf32>
      %270 = vector.extract_strided_slice %249 {offsets = [0, 64], sizes = [8, 32], strides = [1, 1]} : vector<8x96xf32> to vector<8x32xf32>
      %271 = vector.broadcast %24 : vector<1x32xf32> to vector<8x32xf32>
      %272 = arith.addf %270, %271 : vector<8x32xf32>
      %273 = arith.mulf %260, %272 : vector<8x32xf32>
      %274 = arith.addf %269, %273 : vector<8x32xf32>
      %275 = math.tanh %274 : vector<8x32xf32>
      %cst_71 = arith.constant 1.000000e+00 : f32
      %276 = vector.broadcast %cst_71 : f32 to vector<8x32xf32>
      %277 = arith.subf %276, %268 : vector<8x32xf32>
      %278 = arith.mulf %277, %275 : vector<8x32xf32>
      %279 = arith.mulf %268, %248 : vector<8x32xf32>
      %280 = arith.addf %278, %279 : vector<8x32xf32>
      %c8_i32 = arith.constant 8 : i32
      %c7 = arith.constant 7 : index
      %c0_72 = arith.constant 0 : index
      %c0_73 = arith.constant 0 : index
      %281 = vector.load %arg14[%c7, %c0_72, %c0_73] : memref<8x8x32xf32, #tpu.memory_space<vmem>>, vector<1x8x32xf32>
      %282 = vector.shape_cast %281 : vector<1x8x32xf32> to vector<8x32xf32>
      %283 = arith.truncf %282 : vector<8x32xf32> to vector<8x32xbf16>
      %c7_74 = arith.constant 7 : index
      %c0_75 = arith.constant 0 : index
      %c0_76 = arith.constant 0 : index
      %284 = vector.load %arg15[%c7_74, %c0_75, %c0_76] : memref<8x8x32xf32, #tpu.memory_space<vmem>>, vector<1x8x32xf32>
      %285 = vector.shape_cast %284 : vector<1x8x32xf32> to vector<8x32xf32>
      %286 = arith.truncf %285 : vector<8x32xf32> to vector<8x32xbf16>
      %287 = vector.extract_strided_slice %1 {offsets = [1, 0, 0], sizes = [1, 32, 96], strides = [1, 1, 1]} : vector<2x32x96xbf16> to vector<1x32x96xbf16>
      %288 = vector.shape_cast %287 : vector<1x32x96xbf16> to vector<32x96xbf16>
      %cst_77 = arith.constant dense<0.000000e+00> : vector<8x96xf32>
      %289 = tpu.matmul %283, %288, %cst_77 {dimension_numbers = #tpu.dot_dimension_numbers<[1], [0], [0], [1], [0, 0, 1, 1], [], []>} : vector<8x32xbf16>, vector<32x96xbf16>, vector<8x96xf32> -> vector<8x96xf32>
      %290 = vector.extract_strided_slice %2 {offsets = [1, 0, 0], sizes = [1, 32, 96], strides = [1, 1, 1]} : vector<2x32x96xbf16> to vector<1x32x96xbf16>
      %291 = vector.shape_cast %290 : vector<1x32x96xbf16> to vector<32x96xbf16>
      %cst_78 = arith.constant dense<0.000000e+00> : vector<8x96xf32>
      %292 = tpu.matmul %286, %291, %cst_78 {dimension_numbers = #tpu.dot_dimension_numbers<[1], [0], [0], [1], [0, 0, 1, 1], [], []>} : vector<8x32xbf16>, vector<32x96xbf16>, vector<8x96xf32> -> vector<8x96xf32>
      %293 = arith.addf %289, %292 : vector<8x96xf32>
      %c1 = arith.constant 1 : index
      %c0_79 = arith.constant 0 : index
      %c0_80 = arith.constant 0 : index
      %294 = vector.load %arg11[%c1, %c0_79, %c0_80] : memref<2x1x96xf32, #tpu.memory_space<vmem>>, vector<1x1x96xf32>
      %295 = vector.shape_cast %294 : vector<1x1x96xf32> to vector<1x96xf32>
      %296 = vector.broadcast %295 : vector<1x96xf32> to vector<8x96xf32>
      %297 = arith.addf %293, %296 : vector<8x96xf32>
      %298 = vector.extract_strided_slice %297 {offsets = [0, 0], sizes = [8, 32], strides = [1, 1]} : vector<8x96xf32> to vector<8x32xf32>
      %299 = arith.negf %298 : vector<8x32xf32>
      %300 = math.exp %299 : vector<8x32xf32>
      %cst_81 = arith.constant 1.000000e+00 : f32
      %301 = vector.broadcast %cst_81 : f32 to vector<8x32xf32>
      %302 = arith.addf %301, %300 : vector<8x32xf32>
      %303 = arith.divf %301, %302 : vector<8x32xf32>
      %304 = vector.extract_strided_slice %297 {offsets = [0, 32], sizes = [8, 32], strides = [1, 1]} : vector<8x96xf32> to vector<8x32xf32>
      %305 = arith.negf %304 : vector<8x32xf32>
      %306 = math.exp %305 : vector<8x32xf32>
      %cst_82 = arith.constant 1.000000e+00 : f32
      %307 = vector.broadcast %cst_82 : f32 to vector<8x32xf32>
      %308 = arith.addf %307, %306 : vector<8x32xf32>
      %309 = arith.divf %307, %308 : vector<8x32xf32>
      %310 = vector.extract_strided_slice %297 {offsets = [0, 64], sizes = [8, 32], strides = [1, 1]} : vector<8x96xf32> to vector<8x32xf32>
      %c1_83 = arith.constant 1 : index
      %c0_84 = arith.constant 0 : index
      %c0_85 = arith.constant 0 : index
      %311 = vector.load %arg12[%c1_83, %c0_84, %c0_85] : memref<2x1x32xf32, #tpu.memory_space<vmem>>, vector<1x1x32xf32>
      %312 = vector.shape_cast %311 : vector<1x1x32xf32> to vector<1x32xf32>
      %313 = vector.broadcast %312 : vector<1x32xf32> to vector<8x32xf32>
      %314 = arith.mulf %303, %313 : vector<8x32xf32>
      %315 = arith.addf %310, %314 : vector<8x32xf32>
      %316 = math.tanh %315 : vector<8x32xf32>
      %cst_86 = arith.constant 1.000000e+00 : f32
      %317 = vector.broadcast %cst_86 : f32 to vector<8x32xf32>
      %318 = arith.subf %317, %309 : vector<8x32xf32>
      %319 = arith.mulf %318, %316 : vector<8x32xf32>
      %320 = tpu.concatenate %280, %319 in 1 : vector<8x32xf32>, vector<8x32xf32> -> vector<8x64xf32>
      %c0_87 = arith.constant 0 : index
      %c0_88 = arith.constant 0 : index
      %321 = vector.load %arg13[%c0_87, %c0_88] : memref<8x64xf32, #tpu.memory_space<vmem>>, vector<8x64xf32>
      tpu.vector_store %arg13[%c0_87, %c0_88], %320 {strides = array<i32>} : memref<8x64xf32, #tpu.memory_space<vmem>>, vector<8x64xf32>,
      tpu.yield
    }) : () -> ()
    return
  }
  func.func @transform_0(%arg0: i32) -> (i32, i32, i32) {
    %c0_i32 = arith.constant 0 : i32
    %c0_i32_0 = arith.constant 0 : i32
    %c0_i32_1 = arith.constant 0 : i32
    return %c0_i32, %arg0, %c0_i32_0 : i32, i32, i32
  }
  func.func @transform_1(%arg0: i32) -> (i32, i32) {
    %c0_i32 = arith.constant 0 : i32
    %c0_i32_0 = arith.constant 0 : i32
    %c0_i32_1 = arith.constant 0 : i32
    return %c0_i32, %c0_i32_0 : i32, i32
  }
  func.func @transform_2(%arg0: i32) -> (i32, i32) {
    %c0_i32 = arith.constant 0 : i32
    %c0_i32_0 = arith.constant 0 : i32
    %c0_i32_1 = arith.constant 0 : i32
    return %c0_i32, %c0_i32_0 : i32, i32
  }
  func.func @transform_3(%arg0: i32) -> (i32, i32, i32) {
    %c0_i32 = arith.constant 0 : i32
    %c0_i32_0 = arith.constant 0 : i32
    %c0_i32_1 = arith.constant 0 : i32
    %c0_i32_2 = arith.constant 0 : i32
    return %c0_i32, %c0_i32_0, %c0_i32_1 : i32, i32, i32
  }
  func.func @transform_4(%arg0: i32) -> (i32, i32, i32) {
    %c0_i32 = arith.constant 0 : i32
    %c0_i32_0 = arith.constant 0 : i32
    %c0_i32_1 = arith.constant 0 : i32
    %c0_i32_2 = arith.constant 0 : i32
    return %c0_i32, %c0_i32_0, %c0_i32_1 : i32, i32, i32
  }
  func.func @transform_5(%arg0: i32) -> (i32, i32, i32) {
    %c0_i32 = arith.constant 0 : i32
    %c0_i32_0 = arith.constant 0 : i32
    %c0_i32_1 = arith.constant 0 : i32
    %c0_i32_2 = arith.constant 0 : i32
    return %c0_i32, %c0_i32_0, %c0_i32_1 : i32, i32, i32
  }
  func.func @transform_6(%arg0: i32) -> (i32, i32, i32) {
    %c0_i32 = arith.constant 0 : i32
    %c0_i32_0 = arith.constant 0 : i32
    %c0_i32_1 = arith.constant 0 : i32
    %c0_i32_2 = arith.constant 0 : i32
    return %c0_i32, %c0_i32_0, %c0_i32_1 : i32, i32, i32
  }
  func.func @transform_7(%arg0: i32) -> (i32, i32, i32) {
    %c0_i32 = arith.constant 0 : i32
    %c0_i32_0 = arith.constant 0 : i32
    %c0_i32_1 = arith.constant 0 : i32
    %c0_i32_2 = arith.constant 0 : i32
    return %c0_i32, %c0_i32_0, %c0_i32_1 : i32, i32, i32
  }
  func.func @transform_8(%arg0: i32) -> (i32, i32, i32) {
    %c0_i32 = arith.constant 0 : i32
    %c0_i32_0 = arith.constant 0 : i32
    %c0_i32_1 = arith.constant 0 : i32
    %c0_i32_2 = arith.constant 0 : i32
    return %c0_i32, %c0_i32_0, %c0_i32_1 : i32, i32, i32
  }
  func.func @transform_9(%arg0: i32) -> (i32, i32) {
    %c0_i32 = arith.constant 0 : i32
    %c0_i32_0 = arith.constant 0 : i32
    %c0_i32_1 = arith.constant 0 : i32
    return %c0_i32, %c0_i32_0 : i32, i32
  }
  func.func @transform_10(%arg0: i32) -> (i32, i32, i32) {
    %c0_i32 = arith.constant 0 : i32
    %c0_i32_0 = arith.constant 0 : i32
    %c0_i32_1 = arith.constant 0 : i32
    %c0_i32_2 = arith.constant 0 : i32
    return %c0_i32, %c0_i32_0, %c0_i32_1 : i32, i32, i32
  }
  func.func @transform_11(%arg0: i32) -> (i32, i32, i32) {
    %c0_i32 = arith.constant 0 : i32
    %c0_i32_0 = arith.constant 0 : i32
    %c0_i32_1 = arith.constant 0 : i32
    %c0_i32_2 = arith.constant 0 : i32
    return %c0_i32, %c0_i32_0, %c0_i32_1 : i32, i32, i32
  }
  func.func @transform_12(%arg0: i32) -> (i32, i32) {
    %c0_i32 = arith.constant 0 : i32
    %c0_i32_0 = arith.constant 0 : i32
    return %arg0, %c0_i32 : i32, i32
  }
}

</mosaic_0001>

<llo_original>
// kernel: tpu_custom_call.1
$region0: #{tpu_custom_call.1}
  #allocation0 [shape = 'u32[]', space=smem, size = 0x4, offset = 0x4, fixed_abs, tag = 'smem constant byte address 0x4 - core index']
  #allocation1 [shape = 'u32[72,128]{1,0:T(1,128)}', space=vmem, size = 0x9000, scoped, tag = 'internal scratch']
  #allocation2 [shape = 'f32[8,8,32]{2,1,0:T(8,128)}', space=vmem, size = 0x8000, scoped, tag = 'scratch operand']
  #allocation3 [shape = 'f32[8,8,32]{2,1,0:T(8,128)}', space=vmem, size = 0x8000, scoped, tag = 'scratch operand']
  %s0 = inlined_call_operand.hbm [shape: f32[8,8,16], index: 0, kind: input, shape index: {}]
  %s1 = inlined_call_operand.hbm [shape: bf16[16,16], index: 1, kind: input, shape index: {}]
  %s2 = inlined_call_operand.hbm [shape: f32[1,16], index: 2, kind: input, shape index: {}]
  %s3 = inlined_call_operand.hbm [shape: bf16[2,16,96], index: 3, kind: input, shape index: {}]
  %s4 = inlined_call_operand.hbm [shape: f32[2,32,96], index: 4, kind: input, shape index: {}]
  %s5 = inlined_call_operand.vmem [shape: f32[2,1,96], index: 5, kind: input, shape index: {}]
  %s6 = inlined_call_operand.vmem [shape: f32[2,1,32], index: 6, kind: input, shape index: {}]
  %s7 = inlined_call_operand.hbm [shape: bf16[2,32,96], index: 7, kind: input, shape index: {}]
  %s8 = inlined_call_operand.hbm [shape: bf16[2,32,96], index: 8, kind: input, shape index: {}]
  %s9 = inlined_call_operand.hbm [shape: f32[32,96], index: 9, kind: input, shape index: {}]
  %s10 = inlined_call_operand.vmem [shape: f32[2,1,96], index: 10, kind: input, shape index: {}]
  %s11 = inlined_call_operand.vmem [shape: f32[2,1,32], index: 11, kind: input, shape index: {}]
  %s12 = inlined_call_operand.hbm [shape: f32[8,64], index: 12, kind: output, shape index: {}]
  %s13 = sld [smem:[#allocation0]]
  $region92: #{tpu_custom_call.1} parent=0
    _
  %s15 = ssub.s32 1, %s13
  %s16 = scalar_select 0, %s15, %s13
  $region1: #{tpu_custom_call.1} parent=0
    #allocation4 [shape = 'u8[32768]{0}', space=vmem, size = 0x8000, scoped, tag = 'input window, operand 0, single buffered']
    #allocation5 [shape = 's32[1]{0}', space=sflag, size = 0x4, scoped, tag = 'scoped memory for tpu_custom_call.1']
    #allocation6 [shape = 's32[1]{0}', space=sflag, size = 0x4, scoped, tag = 'scoped memory for tpu_custom_call.1']
    #allocation7 [shape = 'u8[4096]{0}', space=vmem, size = 0x1000, scoped, tag = 'input window, operand 1, single buffered']
    #allocation8 [shape = 's32[1]{0}', space=sflag, size = 0x4, scoped, tag = 'scoped memory for tpu_custom_call.1']
    #allocation9 [shape = 'u8[512]{0}', space=vmem, size = 0x400, scoped, tag = 'input window, operand 2, single buffered']
    #allocation10 [shape = 'u8[8192]{0}', space=vmem, size = 0x2000, scoped, tag = 'input window, operand 3, single buffered']
    #allocation11 [shape = 's32[1]{0}', space=sflag, size = 0x4, scoped, tag = 'scoped memory for tpu_custom_call.1']
    #allocation12 [shape = 'u8[32768]{0}', space=vmem, size = 0x8000, scoped, tag = 'input window, operand 4, single buffered']
    #allocation13 [shape = 'u8[16384]{0}', space=vmem, size = 0x4000, scoped, tag = 'input window, operand 7, single buffered']
    #allocation14 [shape = 's32[1]{0}', space=sflag, size = 0x4, scoped, tag = 'scoped memory for tpu_custom_call.1']
    #allocation15 [shape = 'u8[16384]{0}', space=vmem, size = 0x4000, scoped, tag = 'input window, operand 8, single buffered']
    #allocation16 [shape = 'u8[16384]{0}', space=vmem, size = 0x4000, scoped, tag = 'input window, operand 9, single buffered']
    #allocation17 [shape = 's32[1]{0}', space=sflag, size = 0x4, scoped, tag = 'scoped memory for tpu_custom_call.1']
    #allocation18 [shape = 'u8[4096]{0}', space=vmem, size = 0x1000, scoped, tag = 'output window, operand 0, single buffered']
    %17 = vsyncpa [#allocation5], 0
    %18 = vsyncpa [#allocation8], 0
    %19 = vsyncpa [#allocation11], 0
    %20 = vsyncpa [#allocation14], 0
    %21 = vsyncpa [#allocation17], 0
    %22 = vsyncpa [#allocation6], 0
    // Predicated region
    $region2: #{tpu_custom_call.1} parent=1 // pred_check
      _
    $region3: #{tpu_custom_call.1} parent=1 // pred_check_branch
      %24 = sbr.rel (0) target = $region5
    $region4: #{tpu_custom_call.1} parent=1 // pred_region
      %26 = vsyncadd [#allocation5], 0
      %s27 = sshll.u32 %s0, 4
      %s28 = int_to_ptr.hbm [resolvable:$true] %s27
      %s29 = sshll.u32 [#allocation4], 4
      %s30 = int_to_ptr.vmem [resolvable:$true] %s29
      %35 = dma.hbm_to_vmem [thread:$0]  %s28, 1024, %s30, [#allocation5], 128, 128, 8
    $region5: #{tpu_custom_call.1} parent=1 // pred_fallthru
      _
    // Predicated region
    $region6: #{tpu_custom_call.1} parent=1 // pred_check
      _
    $region7: #{tpu_custom_call.1} parent=1 // pred_check_branch
      %37 = sbr.rel (0) target = $region9
    $region8: #{tpu_custom_call.1} parent=1 // pred_region
      %39 = vsyncadd [#allocation8], 0
      %s40 = sshll.u32 %s1, 4
      %s41 = int_to_ptr.hbm [resolvable:$true] %s40
      %s42 = sshll.u32 [#allocation7], 4
      %s43 = int_to_ptr.vmem [resolvable:$true] %s42
      %48 = dma.hbm_to_vmem [thread:$0]  %s41, 128, %s43, [#allocation8], 64, 64, 4
    $region9: #{tpu_custom_call.1} parent=1 // pred_fallthru
      _
    // Predicated region
    $region10: #{tpu_custom_call.1} parent=1 // pred_check
      _
    $region11: #{tpu_custom_call.1} parent=1 // pred_check_branch
      %50 = sbr.rel (0) target = $region13
    $region12: #{tpu_custom_call.1} parent=1 // pred_region
      %52 = vsyncadd [#allocation8], 0
      %s54 = sshll.u32 %s2, 4
      %s55 = int_to_ptr.hbm [resolvable:$true] %s54
      %s56 = sshll.u32 [#allocation9], 4
      %s57 = int_to_ptr.vmem [resolvable:$true] %s56
      %59 = dma.hbm_to_vmem [thread:$0]  %s55, 16, %s57, [#allocation8]
    $region13: #{tpu_custom_call.1} parent=1 // pred_fallthru
      _
    // Predicated region
    $region14: #{tpu_custom_call.1} parent=1 // pred_check
      _
    $region15: #{tpu_custom_call.1} parent=1 // pred_check_branch
      %61 = sbr.rel (0) target = $region17
    $region16: #{tpu_custom_call.1} parent=1 // pred_region
      %63 = vsyncadd [#allocation11], 0
      %s64 = sshll.u32 %s3, 4
      %s65 = int_to_ptr.hbm [resolvable:$true] %s64
      %s66 = sshll.u32 [#allocation10], 4
      %s67 = int_to_ptr.vmem [resolvable:$true] %s66
      %72 = dma.hbm_to_vmem [thread:$0]  %s65, 256, %s67, [#allocation11], 64, 64, 4
    $region17: #{tpu_custom_call.1} parent=1 // pred_fallthru
      _
    // Predicated region
    $region18: #{tpu_custom_call.1} parent=1 // pred_check
      _
    $region19: #{tpu_custom_call.1} parent=1 // pred_check_branch
      %74 = sbr.rel (0) target = $region21
    $region20: #{tpu_custom_call.1} parent=1 // pred_region
      %76 = vsyncadd [#allocation11], 0
      %s77 = sshll.u32 %s4, 4
      %s78 = int_to_ptr.hbm [resolvable:$true] %s77
      %s79 = sshll.u32 [#allocation12], 4
      %s80 = int_to_ptr.vmem [resolvable:$true] %s79
      %85 = dma.hbm_to_vmem [thread:$0]  %s78, 1024, %s80, [#allocation11], 128, 128, 8
    $region21: #{tpu_custom_call.1} parent=1 // pred_fallthru
      _
    // Predicated region
    $region22: #{tpu_custom_call.1} parent=1 // pred_check
      _
    $region23: #{tpu_custom_call.1} parent=1 // pred_check_branch
      %87 = sbr.rel (0) target = $region25
    $region24: #{tpu_custom_call.1} parent=1 // pred_region
      _
    $region25: #{tpu_custom_call.1} parent=1 // pred_fallthru
      _
    // Predicated region
    $region26: #{tpu_custom_call.1} parent=1 // pred_check
      _
    $region27: #{tpu_custom_call.1} parent=1 // pred_check_branch
      %89 = sbr.rel (0) target = $region29
    $region28: #{tpu_custom_call.1} parent=1 // pred_region
      _
    $region29: #{tpu_custom_call.1} parent=1 // pred_fallthru
      _
    // Predicated region
    $region30: #{tpu_custom_call.1} parent=1 // pred_check
      _
    $region31: #{tpu_custom_call.1} parent=1 // pred_check_branch
      %91 = sbr.rel (0) target = $region33
    $region32: #{tpu_custom_call.1} parent=1 // pred_region
      %93 = vsyncadd [#allocation14], 0
      %s94 = sshll.u32 %s7, 4
      %s95 = int_to_ptr.hbm [resolvable:$true] %s94
      %s96 = sshll.u32 [#allocation13], 4
      %s97 = int_to_ptr.vmem [resolvable:$true] %s96
      %102 = dma.hbm_to_vmem [thread:$0]  %s95, 512, %s97, [#allocation14], 64, 64, 4
    $region33: #{tpu_custom_call.1} parent=1 // pred_fallthru
      _
    // Predicated region
    $region34: #{tpu_custom_call.1} parent=1 // pred_check
      _
    $region35: #{tpu_custom_call.1} parent=1 // pred_check_branch
      %104 = sbr.rel (0) target = $region37
    $region36: #{tpu_custom_call.1} parent=1 // pred_region
      %106 = vsyncadd [#allocation14], 0
      %s107 = sshll.u32 %s8, 4
      %s108 = int_to_ptr.hbm [resolvable:$true] %s107
      %s109 = sshll.u32 [#allocation15], 4
      %s110 = int_to_ptr.vmem [resolvable:$true] %s109
      %115 = dma.hbm_to_vmem [thread:$0]  %s108, 512, %s110, [#allocation14], 64, 64, 4
    $region37: #{tpu_custom_call.1} parent=1 // pred_fallthru
      _
    // Predicated region
    $region38: #{tpu_custom_call.1} parent=1 // pred_check
      _
    $region39: #{tpu_custom_call.1} parent=1 // pred_check_branch
      %117 = sbr.rel (0) target = $region41
    $region40: #{tpu_custom_call.1} parent=1 // pred_region
      %119 = vsyncadd [#allocation17], 0
      %s120 = sshll.u32 %s9, 4
      %s121 = int_to_ptr.hbm [resolvable:$true] %s120
      %s122 = sshll.u32 [#allocation16], 4
      %s123 = int_to_ptr.vmem [resolvable:$true] %s122
      %128 = dma.hbm_to_vmem [thread:$0]  %s121, 512, %s123, [#allocation17], 128, 128, 8
    $region41: #{tpu_custom_call.1} parent=1 // pred_fallthru
      _
    // Predicated region
    $region42: #{tpu_custom_call.1} parent=1 // pred_check
      _
    $region43: #{tpu_custom_call.1} parent=1 // pred_check_branch
      %130 = sbr.rel (0) target = $region45
    $region44: #{tpu_custom_call.1} parent=1 // pred_region
      _
    $region45: #{tpu_custom_call.1} parent=1 // pred_fallthru
      _
    // Predicated region
    $region46: #{tpu_custom_call.1} parent=1 // pred_check
      _
    $region47: #{tpu_custom_call.1} parent=1 // pred_check_branch
      %132 = sbr.rel (0) target = $region49
    $region48: #{tpu_custom_call.1} parent=1 // pred_region
      _
    $region49: #{tpu_custom_call.1} parent=1 // pred_fallthru
      _
    // Predicated region
    $region50: #{tpu_custom_call.1} parent=1 // pred_check
      _
    $region51: #{tpu_custom_call.1} parent=1 // pred_check_branch
      %134 = sbr.rel (0) target = $region53
    $region52: #{tpu_custom_call.1} parent=1 // pred_region
      %136 = dma.done [#allocation5], 1024
    $region53: #{tpu_custom_call.1} parent=1 // pred_fallthru
      _
    // Predicated region
    $region54: #{tpu_custom_call.1} parent=1 // pred_check
      _
    $region55: #{tpu_custom_call.1} parent=1 // pred_check_branch
      %138 = sbr.rel (0) target = $region57
    $region56: #{tpu_custom_call.1} parent=1 // pred_region
      %140 = dma.done [#allocation8], 128
    $region57: #{tpu_custom_call.1} parent=1 // pred_fallthru
      _
    // Predicated region
    $region58: #{tpu_custom_call.1} parent=1 // pred_check
      _
    $region59: #{tpu_custom_call.1} parent=1 // pred_check_branch
      %142 = sbr.rel (0) target = $region61
    $region60: #{tpu_custom_call.1} parent=1 // pred_region
      %144 = dma.done [#allocation8], 16
    $region61: #{tpu_custom_call.1} parent=1 // pred_fallthru
      _
    // Predicated region
    $region62: #{tpu_custom_call.1} parent=1 // pred_check
      _
    $region63: #{tpu_custom_call.1} parent=1 // pred_check_branch
      %146 = sbr.rel (0) target = $region65
    $region64: #{tpu_custom_call.1} parent=1 // pred_region
      %148 = dma.done [#allocation11], 256
    $region65: #{tpu_custom_call.1} parent=1 // pred_fallthru
      _
    // Predicated region
    $region66: #{tpu_custom_call.1} parent=1 // pred_check
      _
    $region67: #{tpu_custom_call.1} parent=1 // pred_check_branch
      %150 = sbr.rel (0) target = $region69
    $region68: #{tpu_custom_call.1} parent=1 // pred_region
      %152 = dma.done [#allocation11], 1024
    $region69: #{tpu_custom_call.1} parent=1 // pred_fallthru
      _
    // Predicated region
    $region70: #{tpu_custom_call.1} parent=1 // pred_check
      _
    $region71: #{tpu_custom_call.1} parent=1 // pred_check_branch
      %154 = sbr.rel (0) target = $region73
    $region72: #{tpu_custom_call.1} parent=1 // pred_region
      %156 = dma.done [#allocation14], 512
    $region73: #{tpu_custom_call.1} parent=1 // pred_fallthru
      _
    // Predicated region
    $region74: #{tpu_custom_call.1} parent=1 // pred_check
      _
    $region75: #{tpu_custom_call.1} parent=1 // pred_check_branch
      %158 = sbr.rel (0) target = $region77
    $region76: #{tpu_custom_call.1} parent=1 // pred_region
      %160 = dma.done [#allocation14], 512
    $region77: #{tpu_custom_call.1} parent=1 // pred_fallthru
      _
    // Predicated region
    $region78: #{tpu_custom_call.1} parent=1 // pred_check
      _
    $region79: #{tpu_custom_call.1} parent=1 // pred_check_branch
      %162 = sbr.rel (0) target = $region81
    $region80: #{tpu_custom_call.1} parent=1 // pred_region
      %164 = dma.done [#allocation17], 512
    $region81: #{tpu_custom_call.1} parent=1 // pred_fallthru
      _
    $region82: #{tpu_custom_call.1} parent=1
      #allocation19 [shape = 'u8[32768]{0}', space=vmem, size = 0x8000, scoped, tag = 'scoped memory for tpu_custom_call.1']
      #allocation20 [shape = 'u8[32768]{0}', space=vmem, size = 0x8000, scoped, tag = 'scoped memory for tpu_custom_call.1']
      %v166 = vld [vmem:[#allocation4] sm:$0xff]
      %v167 = vld [vmem:[#allocation4 + $0x8] sm:$0xff]
      %v168 = vld [vmem:[#allocation4 + $0x10] sm:$0xff]
      %v169 = vld [vmem:[#allocation4 + $0x18] sm:$0xff]
      %v170 = vld [vmem:[#allocation4 + $0x20] sm:$0xff]
      %v171 = vld [vmem:[#allocation4 + $0x28] sm:$0xff]
      %v172 = vld [vmem:[#allocation4 + $0x30] sm:$0xff]
      %v173 = vld [vmem:[#allocation4 + $0x38] sm:$0xff]
      %v174 = vpack.c.bf16 %v166, %v166
      %v175 = vpack.c.bf16 %v167, %v167
      %v176 = vpack.c.bf16 %v168, %v168
      %v177 = vpack.c.bf16 %v169, %v169
      %v178 = vpack.c.bf16 %v170, %v170
      %v179 = vpack.c.bf16 %v171, %v171
      %v180 = vpack.c.bf16 %v172, %v172
      %v181 = vpack.c.bf16 %v173, %v173
      %v182 = vld [vmem:[#allocation7] sm:$0xf]
      %v183 = vld [vmem:[#allocation7 + $0x4] sm:$0xf]
      %v184 = vld [vmem:[#allocation9] sm:$0x1]
      %v186 = vperm.slane %v184, 0
      %v196 = vunpack.c.l.b16 %v174
      %v197 = vunpack.c.l.b16 %v175
      %v198 = vunpack.c.l.b16 %v176
      %v199 = vunpack.c.l.b16 %v177
      %v200 = vunpack.c.l.b16 %v178
      %v201 = vunpack.c.l.b16 %v179
      %v202 = vunpack.c.l.b16 %v180
      %v203 = vunpack.c.l.b16 %v181
      %v204 = vpack.c.b16 %v197, %v196
      %v205 = vpack.c.b16 %v199, %v198
      %v206 = vpack.c.b16 %v201, %v200
      %v207 = vpack.c.b16 %v203, %v202
      %v210 = vunpack.c.l.b16 %v182
      %v211 = vunpack.c.l.b16 %v183
      %v212 = vpack.c.b16 %v211, %v210
      %vm214 = vcmask 130048
      %v216 = vsel %vm214, %v204, 0
      %v219 = vsel %vm214, %v205, 0
      %v222 = vsel %vm214, %v206, 0
      %v225 = vsel %vm214, %v207, 0
      %227 = vmatpush.bf16.msra.mxu0 0
      %228 = vmatpush.bf16.msra.mxu0 0
      %229 = vmatpush.bf16.msra.mxu0 0
      %230 = vmatpush.bf16.msra.mxu0 0
      %231 = vmatpush.bf16.msra.mxu0 0
      %232 = vmatpush.bf16.msra.mxu0 0
      %233 = vmatpush.bf16.msra.mxu0 0
      %234 = vmatpush.bf16.msra.mxu0 %v212
      %235 = vmatmul.bf16.gmra.mxu0 %v216
      %v236 = vpop.f32.mrf.mxu0
      %v237 = vadd.f32 %v186, %v236
      %v238 = vpop.f32.mrf.mxu0
      %v239 = vadd.f32 %v186, %v238
      %240 = vmatmul.bf16.gmra.mxu0 %v219
      %v241 = vpop.f32.mrf.mxu0
      %v242 = vadd.f32 %v186, %v241
      %v243 = vpop.f32.mrf.mxu0
      %v244 = vadd.f32 %v186, %v243
      %245 = vmatmul.bf16.gmra.mxu0 %v222
      %v246 = vpop.f32.mrf.mxu0
      %v247 = vadd.f32 %v186, %v246
      %v248 = vpop.f32.mrf.mxu0
      %v249 = vadd.f32 %v186, %v248
      %250 = vmatmul.bf16.gmra.mxu0 %v225
      %v251 = vpop.f32.mrf.mxu0
      %v252 = vadd.f32 %v186, %v251
      %v253 = vpop.f32.mrf.mxu0
      %v254 = vadd.f32 %v186, %v253
      %255 = vdwg.mxu0
      %v256 = vmax.f32 %v237, 0.0
      %v257 = vmax.f32 %v239, 0.0
      %v258 = vmax.f32 %v242, 0.0
      %v259 = vmax.f32 %v244, 0.0
      %v260 = vmax.f32 %v247, 0.0
      %v261 = vmax.f32 %v249, 0.0
      %v262 = vmax.f32 %v252, 0.0
      %v263 = vmax.f32 %v254, 0.0
      %v264 = vpack.c.bf16 %v257, %v256
      %v265 = vpack.c.bf16 %v259, %v258
      %v266 = vpack.c.bf16 %v261, %v260
      %v267 = vpack.c.bf16 %v263, %v262
      %v268 = vld [vmem:[#allocation10] sm:$0xf]
      %v269 = vld [vmem:[#allocation10 + $0x4] sm:$0xf]
      %v270 = vld [vmem:[#allocation10 + $0x8] sm:$0xf]
      %v271 = vld [vmem:[#allocation10 + $0xc] sm:$0xf]
      %v272 = vld [vmem:[%s5] sm:$0x1]
      %v274 = vperm.slane %v272, 0
      %v278 = vunpack.c.l.b16 %v268
      %v279 = vunpack.c.l.b16 %v269
      %v280 = vpack.c.b16 %v279, %v278
      %v283 = vsel %vm214, %v264, 0
      %v286 = vsel %vm214, %v265, 0
      %v289 = vsel %vm214, %v266, 0
      %v292 = vsel %vm214, %v267, 0
      %294 = vmatpush.bf16.msra.mxu0 0
      %295 = vmatpush.bf16.msra.mxu0 0
      %296 = vmatpush.bf16.msra.mxu0 0
      %297 = vmatpush.bf16.msra.mxu0 0
      %298 = vmatpush.bf16.msra.mxu0 0
      %299 = vmatpush.bf16.msra.mxu0 0
      %300 = vmatpush.bf16.msra.mxu0 0
      %301 = vmatpush.bf16.msra.mxu0 %v280
      %302 = vmatmul.bf16.gmra.mxu0 %v283
      %v303 = vpop.f32.mrf.mxu0
      %v304 = vadd.f32 %v274, %v303
      %v305 = vpop.f32.mrf.mxu0
      %v306 = vadd.f32 %v274, %v305
      %307 = vmatmul.bf16.gmra.mxu0 %v286
      %v308 = vpop.f32.mrf.mxu0
      %v309 = vadd.f32 %v274, %v308
      %v310 = vpop.f32.mrf.mxu0
      %v311 = vadd.f32 %v274, %v310
      %312 = vmatmul.bf16.gmra.mxu0 %v289
      %v313 = vpop.f32.mrf.mxu0
      %v314 = vadd.f32 %v274, %v313
      %v315 = vpop.f32.mrf.mxu0
      %v316 = vadd.f32 %v274, %v315
      %317 = vmatmul.bf16.gmra.mxu0 %v292
      %v318 = vpop.f32.mrf.mxu0
      %v319 = vadd.f32 %v274, %v318
      %v320 = vpop.f32.mrf.mxu0
      %v321 = vadd.f32 %v274, %v320
      %322 = vdwg.mxu0
      %vm323 = vcmask 785408
      %324 = vst.msk [vmem:[#allocation19] sm:$0xff] %vm323, %v304
      %325 = vst.msk [vmem:[#allocation19 + $0x8] sm:$0xff] %vm323, %v306
      %326 = vst.msk [vmem:[#allocation19 + $0x10] sm:$0xff] %vm323, %v309
      %327 = vst.msk [vmem:[#allocation19 + $0x18] sm:$0xff] %vm323, %v311
      %328 = vst.msk [vmem:[#allocation19 + $0x20] sm:$0xff] %vm323, %v314
      %329 = vst.msk [vmem:[#allocation19 + $0x28] sm:$0xff] %vm323, %v316
      %330 = vst.msk [vmem:[#allocation19 + $0x30] sm:$0xff] %vm323, %v319
      %331 = vst.msk [vmem:[#allocation19 + $0x38] sm:$0xff] %vm323, %v321
      %s332 = scalar_lea.vmem %s5, 1
      %v333 = vld [vmem:[%s332] sm:$0x1]
      %v335 = vperm.slane %v333, 0
      %v339 = vunpack.c.l.b16 %v270
      %v340 = vunpack.c.l.b16 %v271
      %v341 = vpack.c.b16 %v340, %v339
      %343 = vmatpush.bf16.msra.mxu0 0
      %344 = vmatpush.bf16.msra.mxu0 0
      %345 = vmatpush.bf16.msra.mxu0 0
      %346 = vmatpush.bf16.msra.mxu0 0
      %347 = vmatpush.bf16.msra.mxu0 0
      %348 = vmatpush.bf16.msra.mxu0 0
      %349 = vmatpush.bf16.msra.mxu0 0
      %350 = vmatpush.bf16.msra.mxu0 %v341
      %351 = vmatmul.bf16.gmra.mxu0 %v283
      %v352 = vpop.f32.mrf.mxu0
      %v353 = vadd.f32 %v335, %v352
      %v354 = vpop.f32.mrf.mxu0
      %v355 = vadd.f32 %v335, %v354
      %356 = vmatmul.bf16.gmra.mxu0 %v286
      %v357 = vpop.f32.mrf.mxu0
      %v358 = vadd.f32 %v335, %v357
      %v359 = vpop.f32.mrf.mxu0
      %v360 = vadd.f32 %v335, %v359
      %361 = vmatmul.bf16.gmra.mxu0 %v289
      %v362 = vpop.f32.mrf.mxu0
      %v363 = vadd.f32 %v335, %v362
      %v364 = vpop.f32.mrf.mxu0
      %v365 = vadd.f32 %v335, %v364
      %366 = vmatmul.bf16.gmra.mxu0 %v292
      %v367 = vpop.f32.mrf.mxu0
      %v368 = vadd.f32 %v335, %v367
      %v369 = vpop.f32.mrf.mxu0
      %v370 = vadd.f32 %v335, %v369
      %371 = vdwg.mxu0
      %372 = vst.msk [vmem:[#allocation20] sm:$0xff] %vm323, %v353
      %373 = vst.msk [vmem:[#allocation20 + $0x8] sm:$0xff] %vm323, %v355
      %374 = vst.msk [vmem:[#allocation20 + $0x10] sm:$0xff] %vm323, %v358
      %375 = vst.msk [vmem:[#allocation20 + $0x18] sm:$0xff] %vm323, %v360
      %376 = vst.msk [vmem:[#allocation20 + $0x20] sm:$0xff] %vm323, %v363
      %377 = vst.msk [vmem:[#allocation20 + $0x28] sm:$0xff] %vm323, %v365
      %378 = vst.msk [vmem:[#allocation20 + $0x30] sm:$0xff] %vm323, %v368
      %379 = vst.msk [vmem:[#allocation20 + $0x38] sm:$0xff] %vm323, %v370
      %v380 = vld [vmem:[#allocation12] sm:$0xff]
      %v381 = vld [vmem:[#allocation12 + $0x8] sm:$0xff]
      %v382 = vld [vmem:[#allocation12 + $0x10] sm:$0xff]
      %v383 = vld [vmem:[#allocation12 + $0x18] sm:$0xff]
      %v384 = vld [vmem:[#allocation12 + $0x20] sm:$0xff]
      %v385 = vld [vmem:[#allocation12 + $0x28] sm:$0xff]
      %v386 = vld [vmem:[#allocation12 + $0x30] sm:$0xff]
      %v387 = vld [vmem:[#allocation12 + $0x38] sm:$0xff]
      %v388 = vld [vmem:[%s6] sm:$0x1]
      %s389 = scalar_lea.vmem %s6, 1
      %v390 = vld [vmem:[%s389] sm:$0x1]
      %vm391 = vcmask 261120
      %v393 = vsel %vm391, 0.0, 0
      %395 = vmatpush.msra.mxu0 0.0
      %396 = vmatpush.msra.mxu0 0.0
      %397 = vmatpush.msra.mxu0 0.0
      %398 = vmatpush.msra.mxu0 0.0
      %399 = vmatpush.msra.mxu0 0.0
      %400 = vmatpush.msra.mxu0 0.0
      %401 = vmatpush.msra.mxu0 0.0
      %402 = vmatpush.msra.mxu0 0.0
      %403 = vmatpush.msra.mxu0 0.0
      %404 = vmatpush.msra.mxu0 0.0
      %405 = vmatpush.msra.mxu0 0.0
      %406 = vmatpush.msra.mxu0 0.0
      %407 = vmatpush.msra.mxu0 %v383
      %408 = vmatpush.msra.mxu0 %v382
      %409 = vmatpush.msra.mxu0 %v381
      %410 = vmatpush.msra.mxu0 %v380
      %411 = vmatmul.f32.gmra.mxu0 %v393
      %v412 = vpop.f32.mrf.mxu0
      %v413 = vadd.f32 0.0, %v412
      %414 = vdwg.mxu0
      %415 = vmatpush.msra.mxu0 0.0
      %416 = vmatpush.msra.mxu0 0.0
      %417 = vmatpush.msra.mxu0 0.0
      %418 = vmatpush.msra.mxu0 0.0
      %419 = vmatpush.msra.mxu0 0.0
      %420 = vmatpush.msra.mxu0 0.0
      %421 = vmatpush.msra.mxu0 0.0
      %422 = vmatpush.msra.mxu0 0.0
      %423 = vmatpush.msra.mxu0 0.0
      %424 = vmatpush.msra.mxu0 0.0
      %425 = vmatpush.msra.mxu0 0.0
      %426 = vmatpush.msra.mxu0 0.0
      %427 = vmatpush.msra.mxu0 %v387
      %428 = vmatpush.msra.mxu0 %v386
      %429 = vmatpush.msra.mxu0 %v385
      %430 = vmatpush.msra.mxu0 %v384
      %431 = vmatmul.f32.gmra.mxu0 %v393
      %v432 = vpop.f32.mrf.mxu0
      %v433 = vadd.f32 0.0, %v432
      %434 = vdwg.mxu0
      %v435 = vld [vmem:[#allocation19] sm:$0xff]
      %v436 = vadd.f32 %v435, %v413
      %v437 = vxor.u32 %v436, 2147483648
      %v438 = vmul.f32 %v437, 1.442695
      %v439 = vpow.pop %v438
      %v440 = vadd.f32 %v439, 1.0
      %v441 = vrcp.pop %v440
      %v442 = vmul.f32 %v440, %v441
      %v443 = vsub.f32 1.0, %v442
      %v444 = vmul.f32 %v441, %v443
      %v445 = vadd.f32 %v441, %v444
      %vm446 = vweird.f32 %v440
      %vm447 = vweird.f32 %v441
      %vm448 = vmor %vm446, %vm447
      %v449 = vsel %vm448, %v441, %v445
      %v450 = vand.u32 2147483647, %v440
      %vm451 = vcmp.eq.f32.partialorder %v450, 8.507059e+37
      %v452 = vand.u32 %v440, 2147483648
      %v453 = vor.u32 1.1754944e-38, %v452
      %v454 = vsel %vm451, %v453, %v449
      %v455 = vmul.f32 1.0, %v454
      %v457 = vperm.slane %v388, 0
      %458 = vrot.lane.b32.xlu0 %v457, 64
      %v459 = vpop.permute.xlu0 %458
      %v461 = vadd.f32 %v413, %v459
      %463 = vrot.lane.b32.xlu0 %v461, 64
      %v464 = vpop.permute.xlu0 %463
      %v466 = vmul.f32 %v455, %v464
      %468 = vrot.lane.b32.xlu0 %v466, 64
      %v469 = vpop.permute.xlu0 %468
      %v471 = vadd.f32 %v435, %v469
      %v472 = vtanh.pop %v471
      %v473 = vsub.f32 1.0, %v455
      %475 = vrot.lane.b32.xlu0 %v472, 96
      %v476 = vpop.permute.xlu0 %475
      %v478 = vmul.f32 %v473, %v476
      %v479 = vmul.f32 %v455, 0.0
      %v480 = vadd.f32 %v478, %v479
      %s481 = scalar_lea.vmem [#allocation20], 56
      %v482 = vld [vmem:[%s481] sm:$0xff]
      %v483 = vadd.f32 %v482, %v433
      %v484 = vxor.u32 %v483, 2147483648
      %v485 = vmul.f32 %v484, 1.442695
      %v486 = vpow.pop %v485
      %v487 = vadd.f32 %v486, 1.0
      %v488 = vrcp.pop %v487
      %v489 = vmul.f32 %v487, %v488
      %v490 = vsub.f32 1.0, %v489
      %v491 = vmul.f32 %v488, %v490
      %v492 = vadd.f32 %v488, %v491
      %vm493 = vweird.f32 %v487
      %vm494 = vweird.f32 %v488
      %vm495 = vmor %vm493, %vm494
      %v496 = vsel %vm495, %v488, %v492
      %v497 = vand.u32 2147483647, %v487
      %vm498 = vcmp.eq.f32.partialorder %v497, 8.507059e+37
      %v499 = vand.u32 %v487, 2147483648
      %v500 = vor.u32 1.1754944e-38, %v499
      %v501 = vsel %vm498, %v500, %v496
      %v502 = vmul.f32 1.0, %v501
      %v504 = vperm.slane %v390, 0
      %505 = vrot.lane.b32.xlu0 %v504, 64
      %v506 = vpop.permute.xlu0 %505
      %v508 = vadd.f32 %v433, %v506
      %510 = vrot.lane.b32.xlu0 %v508, 64
      %v511 = vpop.permute.xlu0 %510
      %v513 = vmul.f32 %v502, %v511
      %515 = vrot.lane.b32.xlu0 %v513, 64
      %v516 = vpop.permute.xlu0 %515
      %v518 = vadd.f32 %v482, %v516
      %v519 = vtanh.pop %v518
      %v520 = vsub.f32 1.0, %v502
      %522 = vrot.lane.b32.xlu0 %v519, 96
      %v523 = vpop.permute.xlu0 %522
      %v525 = vmul.f32 %v520, %v523
      %v526 = vmul.f32 %v502, 0.0
      %v527 = vadd.f32 %v525, %v526
      %529 = vrot.lane.b32.xlu0 %v480, 96
      %v530 = vpop.permute.xlu0 %529
      %532 = vst.msk [vmem:[#allocation2] sm:$0xff] %vm391, %v530
      %534 = vrot.lane.b32.xlu0 %v527, 96
      %v535 = vpop.permute.xlu0 %534
      %s537 = scalar_lea.vmem [#allocation3], 56
      %538 = vst.msk [vmem:[%s537] sm:$0xff] %vm391, %v535
      %v539 = vsel %vm391, %v530, 0
      %541 = vmatpush.msra.mxu0 0.0
      %542 = vmatpush.msra.mxu0 0.0
      %543 = vmatpush.msra.mxu0 0.0
      %544 = vmatpush.msra.mxu0 0.0
      %545 = vmatpush.msra.mxu0 0.0
      %546 = vmatpush.msra.mxu0 0.0
      %547 = vmatpush.msra.mxu0 0.0
      %548 = vmatpush.msra.mxu0 0.0
      %549 = vmatpush.msra.mxu0 0.0
      %550 = vmatpush.msra.mxu0 0.0
      %551 = vmatpush.msra.mxu0 0.0
      %552 = vmatpush.msra.mxu0 0.0
      %553 = vmatpush.msra.mxu0 %v383
      %554 = vmatpush.msra.mxu0 %v382
      %555 = vmatpush.msra.mxu0 %v381
      %556 = vmatpush.msra.mxu0 %v380
      %557 = vmatmul.f32.gmra.mxu0 %v539
      %v558 = vpop.f32.mrf.mxu0
      %v559 = vadd.f32 0.0, %v558
      %560 = vdwg.mxu0
      %v561 = vsel %vm391, %v535, 0
      %563 = vmatpush.msra.mxu0 0.0
      %564 = vmatpush.msra.mxu0 0.0
      %565 = vmatpush.msra.mxu0 0.0
      %566 = vmatpush.msra.mxu0 0.0
      %567 = vmatpush.msra.mxu0 0.0
      %568 = vmatpush.msra.mxu0 0.0
      %569 = vmatpush.msra.mxu0 0.0
      %570 = vmatpush.msra.mxu0 0.0
      %571 = vmatpush.msra.mxu0 0.0
      %572 = vmatpush.msra.mxu0 0.0
      %573 = vmatpush.msra.mxu0 0.0
      %574 = vmatpush.msra.mxu0 0.0
      %575 = vmatpush.msra.mxu0 %v387
      %576 = vmatpush.msra.mxu0 %v386
      %577 = vmatpush.msra.mxu0 %v385
      %578 = vmatpush.msra.mxu0 %v384
      %579 = vmatmul.f32.gmra.mxu0 %v561
      %v580 = vpop.f32.mrf.mxu0
      %v581 = vadd.f32 0.0, %v580
      %582 = vdwg.mxu0
      %s583 = scalar_lea.vmem [#allocation19], 8
      %v584 = vld [vmem:[%s583] sm:$0xff]
      %v585 = vadd.f32 %v584, %v559
      %v586 = vxor.u32 %v585, 2147483648
      %v587 = vmul.f32 %v586, 1.442695
      %v588 = vpow.pop %v587
      %v589 = vadd.f32 %v588, 1.0
      %v590 = vrcp.pop %v589
      %v591 = vmul.f32 %v589, %v590
      %v592 = vsub.f32 1.0, %v591
      %v593 = vmul.f32 %v590, %v592
      %v594 = vadd.f32 %v590, %v593
      %vm595 = vweird.f32 %v589
      %vm596 = vweird.f32 %v590
      %vm597 = vmor %vm595, %vm596
      %v598 = vsel %vm597, %v590, %v594
      %v599 = vand.u32 2147483647, %v589
      %vm600 = vcmp.eq.f32.partialorder %v599, 8.507059e+37
      %v601 = vand.u32 %v589, 2147483648
      %v602 = vor.u32 1.1754944e-38, %v601
      %v603 = vsel %vm600, %v602, %v598
      %v604 = vmul.f32 1.0, %v603
      %v605 = vadd.f32 %v559, %v459
      %607 = vrot.lane.b32.xlu0 %v605, 64
      %v608 = vpop.permute.xlu0 %607
      %v610 = vmul.f32 %v604, %v608
      %612 = vrot.lane.b32.xlu0 %v610, 64
      %v613 = vpop.permute.xlu0 %612
      %v615 = vadd.f32 %v584, %v613
      %v616 = vtanh.pop %v615
      %v617 = vsub.f32 1.0, %v604
      %619 = vrot.lane.b32.xlu0 %v616, 96
      %v620 = vpop.permute.xlu0 %619
      %v622 = vmul.f32 %v617, %v620
      %v623 = vmul.f32 %v604, %v480
      %v624 = vadd.f32 %v622, %v623
      %s625 = scalar_lea.vmem [#allocation20], 48
      %v626 = vld [vmem:[%s625] sm:$0xff]
      %v627 = vadd.f32 %v626, %v581
      %v628 = vxor.u32 %v627, 2147483648
      %v629 = vmul.f32 %v628, 1.442695
      %v630 = vpow.pop %v629
      %v631 = vadd.f32 %v630, 1.0
      %v632 = vrcp.pop %v631
      %v633 = vmul.f32 %v631, %v632
      %v634 = vsub.f32 1.0, %v633
      %v635 = vmul.f32 %v632, %v634
      %v636 = vadd.f32 %v632, %v635
      %vm637 = vweird.f32 %v631
      %vm638 = vweird.f32 %v632
      %vm639 = vmor %vm637, %vm638
      %v640 = vsel %vm639, %v632, %v636
      %v641 = vand.u32 2147483647, %v631
      %vm642 = vcmp.eq.f32.partialorder %v641, 8.507059e+37
      %v643 = vand.u32 %v631, 2147483648
      %v644 = vor.u32 1.1754944e-38, %v643
      %v645 = vsel %vm642, %v644, %v640
      %v646 = vmul.f32 1.0, %v645
      %v647 = vadd.f32 %v581, %v506
      %649 = vrot.lane.b32.xlu0 %v647, 64
      %v650 = vpop.permute.xlu0 %649
      %v652 = vmul.f32 %v646, %v650
      %654 = vrot.lane.b32.xlu0 %v652, 64
      %v655 = vpop.permute.xlu0 %654
      %v657 = vadd.f32 %v626, %v655
      %v658 = vtanh.pop %v657
      %v659 = vsub.f32 1.0, %v646
      %661 = vrot.lane.b32.xlu0 %v658, 96
      %v662 = vpop.permute.xlu0 %661
      %v664 = vmul.f32 %v659, %v662
      %v665 = vmul.f32 %v646, %v527
      %v666 = vadd.f32 %v664, %v665
      %668 = vrot.lane.b32.xlu0 %v624, 96
      %v669 = vpop.permute.xlu0 %668
      %s671 = scalar_lea.vmem [#allocation2], 8
      %672 = vst.msk [vmem:[%s671] sm:$0xff] %vm391, %v669
      %674 = vrot.lane.b32.xlu0 %v666, 96
      %v675 = vpop.permute.xlu0 %674
      %s677 = scalar_lea.vmem [#allocation3], 48
      %678 = vst.msk [vmem:[%s677] sm:$0xff] %vm391, %v675
      %v679 = vsel %vm391, %v669, 0
      %681 = vmatpush.msra.mxu0 0.0
      %682 = vmatpush.msra.mxu0 0.0
      %683 = vmatpush.msra.mxu0 0.0
      %684 = vmatpush.msra.mxu0 0.0
      %685 = vmatpush.msra.mxu0 0.0
      %686 = vmatpush.msra.mxu0 0.0
      %687 = vmatpush.msra.mxu0 0.0
      %688 = vmatpush.msra.mxu0 0.0
      %689 = vmatpush.msra.mxu0 0.0
      %690 = vmatpush.msra.mxu0 0.0
      %691 = vmatpush.msra.mxu0 0.0
      %692 = vmatpush.msra.mxu0 0.0
      %693 = vmatpush.msra.mxu0 %v383
      %694 = vmatpush.msra.mxu0 %v382
      %695 = vmatpush.msra.mxu0 %v381
      %696 = vmatpush.msra.mxu0 %v380
      %697 = vmatmul.f32.gmra.mxu0 %v679
      %v698 = vpop.f32.mrf.mxu0
      %v699 = vadd.f32 0.0, %v698
      %700 = vdwg.mxu0
      %v701 = vsel %vm391, %v675, 0
      %703 = vmatpush.msra.mxu0 0.0
      %704 = vmatpush.msra.mxu0 0.0
      %705 = vmatpush.msra.mxu0 0.0
      %706 = vmatpush.msra.mxu0 0.0
      %707 = vmatpush.msra.mxu0 0.0
      %708 = vmatpush.msra.mxu0 0.0
      %709 = vmatpush.msra.mxu0 0.0
      %710 = vmatpush.msra.mxu0 0.0
      %711 = vmatpush.msra.mxu0 0.0
      %712 = vmatpush.msra.mxu0 0.0
      %713 = vmatpush.msra.mxu0 0.0
      %714 = vmatpush.msra.mxu0 0.0
      %715 = vmatpush.msra.mxu0 %v387
      %716 = vmatpush.msra.mxu0 %v386
      %717 = vmatpush.msra.mxu0 %v385
      %718 = vmatpush.msra.mxu0 %v384
      %719 = vmatmul.f32.gmra.mxu0 %v701
      %v720 = vpop.f32.mrf.mxu0
      %v721 = vadd.f32 0.0, %v720
      %722 = vdwg.mxu0
      %s723 = scalar_lea.vmem [#allocation19], 16
      %v724 = vld [vmem:[%s723] sm:$0xff]
      %v725 = vadd.f32 %v724, %v699
      %v726 = vxor.u32 %v725, 2147483648
      %v727 = vmul.f32 %v726, 1.442695
      %v728 = vpow.pop %v727
      %v729 = vadd.f32 %v728, 1.0
      %v730 = vrcp.pop %v729
      %v731 = vmul.f32 %v729, %v730
      %v732 = vsub.f32 1.0, %v731
      %v733 = vmul.f32 %v730, %v732
      %v734 = vadd.f32 %v730, %v733
      %vm735 = vweird.f32 %v729
      %vm736 = vweird.f32 %v730
      %vm737 = vmor %vm735, %vm736
      %v738 = vsel %vm737, %v730, %v734
      %v739 = vand.u32 2147483647, %v729
      %vm740 = vcmp.eq.f32.partialorder %v739, 8.507059e+37
      %v741 = vand.u32 %v729, 2147483648
      %v742 = vor.u32 1.1754944e-38, %v741
      %v743 = vsel %vm740, %v742, %v738
      %v744 = vmul.f32 1.0, %v743
      %v745 = vadd.f32 %v699, %v459
      %747 = vrot.lane.b32.xlu0 %v745, 64
      %v748 = vpop.permute.xlu0 %747
      %v750 = vmul.f32 %v744, %v748
      %752 = vrot.lane.b32.xlu0 %v750, 64
      %v753 = vpop.permute.xlu0 %752
      %v755 = vadd.f32 %v724, %v753
      %v756 = vtanh.pop %v755
      %v757 = vsub.f32 1.0, %v744
      %759 = vrot.lane.b32.xlu0 %v756, 96
      %v760 = vpop.permute.xlu0 %759
      %v762 = vmul.f32 %v757, %v760
      %v763 = vmul.f32 %v744, %v624
      %v764 = vadd.f32 %v762, %v763
      %s765 = scalar_lea.vmem [#allocation20], 40
      %v766 = vld [vmem:[%s765] sm:$0xff]
      %v767 = vadd.f32 %v766, %v721
      %v768 = vxor.u32 %v767, 2147483648
      %v769 = vmul.f32 %v768, 1.442695
      %v770 = vpow.pop %v769
      %v771 = vadd.f32 %v770, 1.0
      %v772 = vrcp.pop %v771
      %v773 = vmul.f32 %v771, %v772
      %v774 = vsub.f32 1.0, %v773
      %v775 = vmul.f32 %v772, %v774
      %v776 = vadd.f32 %v772, %v775
      %vm777 = vweird.f32 %v771
      %vm778 = vweird.f32 %v772
      %vm779 = vmor %vm777, %vm778
      %v780 = vsel %vm779, %v772, %v776
      %v781 = vand.u32 2147483647, %v771
      %vm782 = vcmp.eq.f32.partialorder %v781, 8.507059e+37
      %v783 = vand.u32 %v771, 2147483648
      %v784 = vor.u32 1.1754944e-38, %v783
      %v785 = vsel %vm782, %v784, %v780
      %v786 = vmul.f32 1.0, %v785
      %v787 = vadd.f32 %v721, %v506
      %789 = vrot.lane.b32.xlu0 %v787, 64
      %v790 = vpop.permute.xlu0 %789
      %v792 = vmul.f32 %v786, %v790
      %794 = vrot.lane.b32.xlu0 %v792, 64
      %v795 = vpop.permute.xlu0 %794
      %v797 = vadd.f32 %v766, %v795
      %v798 = vtanh.pop %v797
      %v799 = vsub.f32 1.0, %v786
      %801 = vrot.lane.b32.xlu0 %v798, 96
      %v802 = vpop.permute.xlu0 %801
      %v804 = vmul.f32 %v799, %v802
      %v805 = vmul.f32 %v786, %v666
      %v806 = vadd.f32 %v804, %v805
      %808 = vrot.lane.b32.xlu0 %v764, 96
      %v809 = vpop.permute.xlu0 %808
      %s811 = scalar_lea.vmem [#allocation2], 16
      %812 = vst.msk [vmem:[%s811] sm:$0xff] %vm391, %v809
      %814 = vrot.lane.b32.xlu0 %v806, 96
      %v815 = vpop.permute.xlu0 %814
      %s817 = scalar_lea.vmem [#allocation3], 40
      %818 = vst.msk [vmem:[%s817] sm:$0xff] %vm391, %v815
      %v819 = vsel %vm391, %v809, 0
      %821 = vmatpush.msra.mxu0 0.0
      %822 = vmatpush.msra.mxu0 0.0
      %823 = vmatpush.msra.mxu0 0.0
      %824 = vmatpush.msra.mxu0 0.0
      %825 = vmatpush.msra.mxu0 0.0
      %826 = vmatpush.msra.mxu0 0.0
      %827 = vmatpush.msra.mxu0 0.0
      %828 = vmatpush.msra.mxu0 0.0
      %829 = vmatpush.msra.mxu0 0.0
      %830 = vmatpush.msra.mxu0 0.0
      %831 = vmatpush.msra.mxu0 0.0
      %832 = vmatpush.msra.mxu0 0.0
      %833 = vmatpush.msra.mxu0 %v383
      %834 = vmatpush.msra.mxu0 %v382
      %835 = vmatpush.msra.mxu0 %v381
      %836 = vmatpush.msra.mxu0 %v380
      %837 = vmatmul.f32.gmra.mxu0 %v819
      %v838 = vpop.f32.mrf.mxu0
      %v839 = vadd.f32 0.0, %v838
      %840 = vdwg.mxu0
      %v841 = vsel %vm391, %v815, 0
      %843 = vmatpush.msra.mxu0 0.0
      %844 = vmatpush.msra.mxu0 0.0
      %845 = vmatpush.msra.mxu0 0.0
      %846 = vmatpush.msra.mxu0 0.0
      %847 = vmatpush.msra.mxu0 0.0
      %848 = vmatpush.msra.mxu0 0.0
      %849 = vmatpush.msra.mxu0 0.0
      %850 = vmatpush.msra.mxu0 0.0
      %851 = vmatpush.msra.mxu0 0.0
      %852 = vmatpush.msra.mxu0 0.0
      %853 = vmatpush.msra.mxu0 0.0
      %854 = vmatpush.msra.mxu0 0.0
      %855 = vmatpush.msra.mxu0 %v387
      %856 = vmatpush.msra.mxu0 %v386
      %857 = vmatpush.msra.mxu0 %v385
      %858 = vmatpush.msra.mxu0 %v384
      %859 = vmatmul.f32.gmra.mxu0 %v841
      %v860 = vpop.f32.mrf.mxu0
      %v861 = vadd.f32 0.0, %v860
      %862 = vdwg.mxu0
      %s863 = scalar_lea.vmem [#allocation19], 24
      %v864 = vld [vmem:[%s863] sm:$0xff]
      %v865 = vadd.f32 %v864, %v839
      %v866 = vxor.u32 %v865, 2147483648
      %v867 = vmul.f32 %v866, 1.442695
      %v868 = vpow.pop %v867
      %v869 = vadd.f32 %v868, 1.0
      %v870 = vrcp.pop %v869
      %v871 = vmul.f32 %v869, %v870
      %v872 = vsub.f32 1.0, %v871
      %v873 = vmul.f32 %v870, %v872
      %v874 = vadd.f32 %v870, %v873
      %vm875 = vweird.f32 %v869
      %vm876 = vweird.f32 %v870
      %vm877 = vmor %vm875, %vm876
      %v878 = vsel %vm877, %v870, %v874
      %v879 = vand.u32 2147483647, %v869
      %vm880 = vcmp.eq.f32.partialorder %v879, 8.507059e+37
      %v881 = vand.u32 %v869, 2147483648
      %v882 = vor.u32 1.1754944e-38, %v881
      %v883 = vsel %vm880, %v882, %v878
      %v884 = vmul.f32 1.0, %v883
      %v885 = vadd.f32 %v839, %v459
      %887 = vrot.lane.b32.xlu0 %v885, 64
      %v888 = vpop.permute.xlu0 %887
      %v890 = vmul.f32 %v884, %v888
      %892 = vrot.lane.b32.xlu0 %v890, 64
      %v893 = vpop.permute.xlu0 %892
      %v895 = vadd.f32 %v864, %v893
      %v896 = vtanh.pop %v895
      %v897 = vsub.f32 1.0, %v884
      %899 = vrot.lane.b32.xlu0 %v896, 96
      %v900 = vpop.permute.xlu0 %899
      %v902 = vmul.f32 %v897, %v900
      %v903 = vmul.f32 %v884, %v764
      %v904 = vadd.f32 %v902, %v903
      %s905 = scalar_lea.vmem [#allocation20], 32
      %v906 = vld [vmem:[%s905] sm:$0xff]
      %v907 = vadd.f32 %v906, %v861
      %v908 = vxor.u32 %v907, 2147483648
      %v909 = vmul.f32 %v908, 1.442695
      %v910 = vpow.pop %v909
      %v911 = vadd.f32 %v910, 1.0
      %v912 = vrcp.pop %v911
      %v913 = vmul.f32 %v911, %v912
      %v914 = vsub.f32 1.0, %v913
      %v915 = vmul.f32 %v912, %v914
      %v916 = vadd.f32 %v912, %v915
      %vm917 = vweird.f32 %v911
      %vm918 = vweird.f32 %v912
      %vm919 = vmor %vm917, %vm918
      %v920 = vsel %vm919, %v912, %v916
      %v921 = vand.u32 2147483647, %v911
      %vm922 = vcmp.eq.f32.partialorder %v921, 8.507059e+37
      %v923 = vand.u32 %v911, 2147483648
      %v924 = vor.u32 1.1754944e-38, %v923
      %v925 = vsel %vm922, %v924, %v920
      %v926 = vmul.f32 1.0, %v925
      %v927 = vadd.f32 %v861, %v506
      %929 = vrot.lane.b32.xlu0 %v927, 64
      %v930 = vpop.permute.xlu0 %929
      %v932 = vmul.f32 %v926, %v930
      %934 = vrot.lane.b32.xlu0 %v932, 64
      %v935 = vpop.permute.xlu0 %934
      %v937 = vadd.f32 %v906, %v935
      %v938 = vtanh.pop %v937
      %v939 = vsub.f32 1.0, %v926
      %941 = vrot.lane.b32.xlu0 %v938, 96
      %v942 = vpop.permute.xlu0 %941
      %v944 = vmul.f32 %v939, %v942
      %v945 = vmul.f32 %v926, %v806
      %v946 = vadd.f32 %v944, %v945
      %948 = vrot.lane.b32.xlu0 %v904, 96
      %v949 = vpop.permute.xlu0 %948
      %s951 = scalar_lea.vmem [#allocation2], 24
      %952 = vst.msk [vmem:[%s951] sm:$0xff] %vm391, %v949
      %954 = vrot.lane.b32.xlu0 %v946, 96
      %v955 = vpop.permute.xlu0 %954
      %s957 = scalar_lea.vmem [#allocation3], 32
      %958 = vst.msk [vmem:[%s957] sm:$0xff] %vm391, %v955
      %v959 = vsel %vm391, %v949, 0
      %961 = vmatpush.msra.mxu0 0.0
      %962 = vmatpush.msra.mxu0 0.0
      %963 = vmatpush.msra.mxu0 0.0
      %964 = vmatpush.msra.mxu0 0.0
      %965 = vmatpush.msra.mxu0 0.0
      %966 = vmatpush.msra.mxu0 0.0
      %967 = vmatpush.msra.mxu0 0.0
      %968 = vmatpush.msra.mxu0 0.0
      %969 = vmatpush.msra.mxu0 0.0
      %970 = vmatpush.msra.mxu0 0.0
      %971 = vmatpush.msra.mxu0 0.0
      %972 = vmatpush.msra.mxu0 0.0
      %973 = vmatpush.msra.mxu0 %v383
      %974 = vmatpush.msra.mxu0 %v382
      %975 = vmatpush.msra.mxu0 %v381
      %976 = vmatpush.msra.mxu0 %v380
      %977 = vmatmul.f32.gmra.mxu0 %v959
      %v978 = vpop.f32.mrf.mxu0
      %v979 = vadd.f32 0.0, %v978
      %980 = vdwg.mxu0
      %v981 = vsel %vm391, %v955, 0
      %983 = vmatpush.msra.mxu0 0.0
      %984 = vmatpush.msra.mxu0 0.0
      %985 = vmatpush.msra.mxu0 0.0
      %986 = vmatpush.msra.mxu0 0.0
      %987 = vmatpush.msra.mxu0 0.0
      %988 = vmatpush.msra.mxu0 0.0
      %989 = vmatpush.msra.mxu0 0.0
      %990 = vmatpush.msra.mxu0 0.0
      %991 = vmatpush.msra.mxu0 0.0
      %992 = vmatpush.msra.mxu0 0.0
      %993 = vmatpush.msra.mxu0 0.0
      %994 = vmatpush.msra.mxu0 0.0
      %995 = vmatpush.msra.mxu0 %v387
      %996 = vmatpush.msra.mxu0 %v386
      %997 = vmatpush.msra.mxu0 %v385
      %998 = vmatpush.msra.mxu0 %v384
      %999 = vmatmul.f32.gmra.mxu0 %v981
      %v1000 = vpop.f32.mrf.mxu0
      %v1001 = vadd.f32 0.0, %v1000
      %1002 = vdwg.mxu0
      %s1003 = scalar_lea.vmem [#allocation19], 32
      %v1004 = vld [vmem:[%s1003] sm:$0xff]
      %v1005 = vadd.f32 %v1004, %v979
      %v1006 = vxor.u32 %v1005, 2147483648
      %v1007 = vmul.f32 %v1006, 1.442695
      %v1008 = vpow.pop %v1007
      %v1009 = vadd.f32 %v1008, 1.0
      %v1010 = vrcp.pop %v1009
      %v1011 = vmul.f32 %v1009, %v1010
      %v1012 = vsub.f32 1.0, %v1011
      %v1013 = vmul.f32 %v1010, %v1012
      %v1014 = vadd.f32 %v1010, %v1013
      %vm1015 = vweird.f32 %v1009
      %vm1016 = vweird.f32 %v1010
      %vm1017 = vmor %vm1015, %vm1016
      %v1018 = vsel %vm1017, %v1010, %v1014
      %v1019 = vand.u32 2147483647, %v1009
      %vm1020 = vcmp.eq.f32.partialorder %v1019, 8.507059e+37
      %v1021 = vand.u32 %v1009, 2147483648
      %v1022 = vor.u32 1.1754944e-38, %v1021
      %v1023 = vsel %vm1020, %v1022, %v1018
      %v1024 = vmul.f32 1.0, %v1023
      %v1025 = vadd.f32 %v979, %v459
      %1027 = vrot.lane.b32.xlu0 %v1025, 64
      %v1028 = vpop.permute.xlu0 %1027
      %v1030 = vmul.f32 %v1024, %v1028
      %1032 = vrot.lane.b32.xlu0 %v1030, 64
      %v1033 = vpop.permute.xlu0 %1032
      %v1035 = vadd.f32 %v1004, %v1033
      %v1036 = vtanh.pop %v1035
      %v1037 = vsub.f32 1.0, %v1024
      %1039 = vrot.lane.b32.xlu0 %v1036, 96
      %v1040 = vpop.permute.xlu0 %1039
      %v1042 = vmul.f32 %v1037, %v1040
      %v1043 = vmul.f32 %v1024, %v904
      %v1044 = vadd.f32 %v1042, %v1043
      %s1045 = scalar_lea.vmem [#allocation20], 24
      %v1046 = vld [vmem:[%s1045] sm:$0xff]
      %v1047 = vadd.f32 %v1046, %v1001
      %v1048 = vxor.u32 %v1047, 2147483648
      %v1049 = vmul.f32 %v1048, 1.442695
      %v1050 = vpow.pop %v1049
      %v1051 = vadd.f32 %v1050, 1.0
      %v1052 = vrcp.pop %v1051
      %v1053 = vmul.f32 %v1051, %v1052
      %v1054 = vsub.f32 1.0, %v1053
      %v1055 = vmul.f32 %v1052, %v1054
      %v1056 = vadd.f32 %v1052, %v1055
      %vm1057 = vweird.f32 %v1051
      %vm1058 = vweird.f32 %v1052
      %vm1059 = vmor %vm1057, %vm1058
      %v1060 = vsel %vm1059, %v1052, %v1056
      %v1061 = vand.u32 2147483647, %v1051
      %vm1062 = vcmp.eq.f32.partialorder %v1061, 8.507059e+37
      %v1063 = vand.u32 %v1051, 2147483648
      %v1064 = vor.u32 1.1754944e-38, %v1063
      %v1065 = vsel %vm1062, %v1064, %v1060
      %v1066 = vmul.f32 1.0, %v1065
      %v1067 = vadd.f32 %v1001, %v506
      %1069 = vrot.lane.b32.xlu0 %v1067, 64
      %v1070 = vpop.permute.xlu0 %1069
      %v1072 = vmul.f32 %v1066, %v1070
      %1074 = vrot.lane.b32.xlu0 %v1072, 64
      %v1075 = vpop.permute.xlu0 %1074
      %v1077 = vadd.f32 %v1046, %v1075
      %v1078 = vtanh.pop %v1077
      %v1079 = vsub.f32 1.0, %v1066
      %1081 = vrot.lane.b32.xlu0 %v1078, 96
      %v1082 = vpop.permute.xlu0 %1081
      %v1084 = vmul.f32 %v1079, %v1082
      %v1085 = vmul.f32 %v1066, %v946
      %v1086 = vadd.f32 %v1084, %v1085
      %1088 = vrot.lane.b32.xlu0 %v1044, 96
      %v1089 = vpop.permute.xlu0 %1088
      %s1091 = scalar_lea.vmem [#allocation2], 32
      %1092 = vst.msk [vmem:[%s1091] sm:$0xff] %vm391, %v1089
      %1094 = vrot.lane.b32.xlu0 %v1086, 96
      %v1095 = vpop.permute.xlu0 %1094
      %s1097 = scalar_lea.vmem [#allocation3], 24
      %1098 = vst.msk [vmem:[%s1097] sm:$0xff] %vm391, %v1095
      %v1099 = vsel %vm391, %v1089, 0
      %1101 = vmatpush.msra.mxu0 0.0
      %1102 = vmatpush.msra.mxu0 0.0
      %1103 = vmatpush.msra.mxu0 0.0
      %1104 = vmatpush.msra.mxu0 0.0
      %1105 = vmatpush.msra.mxu0 0.0
      %1106 = vmatpush.msra.mxu0 0.0
      %1107 = vmatpush.msra.mxu0 0.0
      %1108 = vmatpush.msra.mxu0 0.0
      %1109 = vmatpush.msra.mxu0 0.0
      %1110 = vmatpush.msra.mxu0 0.0
      %1111 = vmatpush.msra.mxu0 0.0
      %1112 = vmatpush.msra.mxu0 0.0
      %1113 = vmatpush.msra.mxu0 %v383
      %1114 = vmatpush.msra.mxu0 %v382
      %1115 = vmatpush.msra.mxu0 %v381
      %1116 = vmatpush.msra.mxu0 %v380
      %1117 = vmatmul.f32.gmra.mxu0 %v1099
      %v1118 = vpop.f32.mrf.mxu0
      %v1119 = vadd.f32 0.0, %v1118
      %1120 = vdwg.mxu0
      %v1121 = vsel %vm391, %v1095, 0
      %1123 = vmatpush.msra.mxu0 0.0
      %1124 = vmatpush.msra.mxu0 0.0
      %1125 = vmatpush.msra.mxu0 0.0
      %1126 = vmatpush.msra.mxu0 0.0
      %1127 = vmatpush.msra.mxu0 0.0
      %1128 = vmatpush.msra.mxu0 0.0
      %1129 = vmatpush.msra.mxu0 0.0
      %1130 = vmatpush.msra.mxu0 0.0
      %1131 = vmatpush.msra.mxu0 0.0
      %1132 = vmatpush.msra.mxu0 0.0
      %1133 = vmatpush.msra.mxu0 0.0
      %1134 = vmatpush.msra.mxu0 0.0
      %1135 = vmatpush.msra.mxu0 %v387
      %1136 = vmatpush.msra.mxu0 %v386
      %1137 = vmatpush.msra.mxu0 %v385
      %1138 = vmatpush.msra.mxu0 %v384
      %1139 = vmatmul.f32.gmra.mxu0 %v1121
      %v1140 = vpop.f32.mrf.mxu0
      %v1141 = vadd.f32 0.0, %v1140
      %1142 = vdwg.mxu0
      %s1143 = scalar_lea.vmem [#allocation19], 40
      %v1144 = vld [vmem:[%s1143] sm:$0xff]
      %v1145 = vadd.f32 %v1144, %v1119
      %v1146 = vxor.u32 %v1145, 2147483648
      %v1147 = vmul.f32 %v1146, 1.442695
      %v1148 = vpow.pop %v1147
      %v1149 = vadd.f32 %v1148, 1.0
      %v1150 = vrcp.pop %v1149
      %v1151 = vmul.f32 %v1149, %v1150
      %v1152 = vsub.f32 1.0, %v1151
      %v1153 = vmul.f32 %v1150, %v1152
      %v1154 = vadd.f32 %v1150, %v1153
      %vm1155 = vweird.f32 %v1149
      %vm1156 = vweird.f32 %v1150
      %vm1157 = vmor %vm1155, %vm1156
      %v1158 = vsel %vm1157, %v1150, %v1154
      %v1159 = vand.u32 2147483647, %v1149
      %vm1160 = vcmp.eq.f32.partialorder %v1159, 8.507059e+37
      %v1161 = vand.u32 %v1149, 2147483648
      %v1162 = vor.u32 1.1754944e-38, %v1161
      %v1163 = vsel %vm1160, %v1162, %v1158
      %v1164 = vmul.f32 1.0, %v1163
      %v1165 = vadd.f32 %v1119, %v459
      %1167 = vrot.lane.b32.xlu0 %v1165, 64
      %v1168 = vpop.permute.xlu0 %1167
      %v1170 = vmul.f32 %v1164, %v1168
      %1172 = vrot.lane.b32.xlu0 %v1170, 64
      %v1173 = vpop.permute.xlu0 %1172
      %v1175 = vadd.f32 %v1144, %v1173
      %v1176 = vtanh.pop %v1175
      %v1177 = vsub.f32 1.0, %v1164
      %1179 = vrot.lane.b32.xlu0 %v1176, 96
      %v1180 = vpop.permute.xlu0 %1179
      %v1182 = vmul.f32 %v1177, %v1180
      %v1183 = vmul.f32 %v1164, %v1044
      %v1184 = vadd.f32 %v1182, %v1183
      %s1185 = scalar_lea.vmem [#allocation20], 16
      %v1186 = vld [vmem:[%s1185] sm:$0xff]
      %v1187 = vadd.f32 %v1186, %v1141
      %v1188 = vxor.u32 %v1187, 2147483648
      %v1189 = vmul.f32 %v1188, 1.442695
      %v1190 = vpow.pop %v1189
      %v1191 = vadd.f32 %v1190, 1.0
      %v1192 = vrcp.pop %v1191
      %v1193 = vmul.f32 %v1191, %v1192
      %v1194 = vsub.f32 1.0, %v1193
      %v1195 = vmul.f32 %v1192, %v1194
      %v1196 = vadd.f32 %v1192, %v1195
      %vm1197 = vweird.f32 %v1191
      %vm1198 = vweird.f32 %v1192
      %vm1199 = vmor %vm1197, %vm1198
      %v1200 = vsel %vm1199, %v1192, %v1196
      %v1201 = vand.u32 2147483647, %v1191
      %vm1202 = vcmp.eq.f32.partialorder %v1201, 8.507059e+37
      %v1203 = vand.u32 %v1191, 2147483648
      %v1204 = vor.u32 1.1754944e-38, %v1203
      %v1205 = vsel %vm1202, %v1204, %v1200
      %v1206 = vmul.f32 1.0, %v1205
      %v1207 = vadd.f32 %v1141, %v506
      %1209 = vrot.lane.b32.xlu0 %v1207, 64
      %v1210 = vpop.permute.xlu0 %1209
      %v1212 = vmul.f32 %v1206, %v1210
      %1214 = vrot.lane.b32.xlu0 %v1212, 64
      %v1215 = vpop.permute.xlu0 %1214
      %v1217 = vadd.f32 %v1186, %v1215
      %v1218 = vtanh.pop %v1217
      %v1219 = vsub.f32 1.0, %v1206
      %1221 = vrot.lane.b32.xlu0 %v1218, 96
      %v1222 = vpop.permute.xlu0 %1221
      %v1224 = vmul.f32 %v1219, %v1222
      %v1225 = vmul.f32 %v1206, %v1086
      %v1226 = vadd.f32 %v1224, %v1225
      %1228 = vrot.lane.b32.xlu0 %v1184, 96
      %v1229 = vpop.permute.xlu0 %1228
      %s1231 = scalar_lea.vmem [#allocation2], 40
      %1232 = vst.msk [vmem:[%s1231] sm:$0xff] %vm391, %v1229
      %1234 = vrot.lane.b32.xlu0 %v1226, 96
      %v1235 = vpop.permute.xlu0 %1234
      %s1237 = scalar_lea.vmem [#allocation3], 16
      %1238 = vst.msk [vmem:[%s1237] sm:$0xff] %vm391, %v1235
      %v1239 = vsel %vm391, %v1229, 0
      %1241 = vmatpush.msra.mxu0 0.0
      %1242 = vmatpush.msra.mxu0 0.0
      %1243 = vmatpush.msra.mxu0 0.0
      %1244 = vmatpush.msra.mxu0 0.0
      %1245 = vmatpush.msra.mxu0 0.0
      %1246 = vmatpush.msra.mxu0 0.0
      %1247 = vmatpush.msra.mxu0 0.0
      %1248 = vmatpush.msra.mxu0 0.0
      %1249 = vmatpush.msra.mxu0 0.0
      %1250 = vmatpush.msra.mxu0 0.0
      %1251 = vmatpush.msra.mxu0 0.0
      %1252 = vmatpush.msra.mxu0 0.0
      %1253 = vmatpush.msra.mxu0 %v383
      %1254 = vmatpush.msra.mxu0 %v382
      %1255 = vmatpush.msra.mxu0 %v381
      %1256 = vmatpush.msra.mxu0 %v380
      %1257 = vmatmul.f32.gmra.mxu0 %v1239
      %v1258 = vpop.f32.mrf.mxu0
      %v1259 = vadd.f32 0.0, %v1258
      %1260 = vdwg.mxu0
      %v1261 = vsel %vm391, %v1235, 0
      %1263 = vmatpush.msra.mxu0 0.0
      %1264 = vmatpush.msra.mxu0 0.0
      %1265 = vmatpush.msra.mxu0 0.0
      %1266 = vmatpush.msra.mxu0 0.0
      %1267 = vmatpush.msra.mxu0 0.0
      %1268 = vmatpush.msra.mxu0 0.0
      %1269 = vmatpush.msra.mxu0 0.0
      %1270 = vmatpush.msra.mxu0 0.0
      %1271 = vmatpush.msra.mxu0 0.0
      %1272 = vmatpush.msra.mxu0 0.0
      %1273 = vmatpush.msra.mxu0 0.0
      %1274 = vmatpush.msra.mxu0 0.0
      %1275 = vmatpush.msra.mxu0 %v387
      %1276 = vmatpush.msra.mxu0 %v386
      %1277 = vmatpush.msra.mxu0 %v385
      %1278 = vmatpush.msra.mxu0 %v384
      %1279 = vmatmul.f32.gmra.mxu0 %v1261
      %v1280 = vpop.f32.mrf.mxu0
      %v1281 = vadd.f32 0.0, %v1280
      %1282 = vdwg.mxu0
      %s1283 = scalar_lea.vmem [#allocation19], 48
      %v1284 = vld [vmem:[%s1283] sm:$0xff]
      %v1285 = vadd.f32 %v1284, %v1259
      %v1286 = vxor.u32 %v1285, 2147483648
      %v1287 = vmul.f32 %v1286, 1.442695
      %v1288 = vpow.pop %v1287
      %v1289 = vadd.f32 %v1288, 1.0
      %v1290 = vrcp.pop %v1289
      %v1291 = vmul.f32 %v1289, %v1290
      %v1292 = vsub.f32 1.0, %v1291
      %v1293 = vmul.f32 %v1290, %v1292
      %v1294 = vadd.f32 %v1290, %v1293
      %vm1295 = vweird.f32 %v1289
      %vm1296 = vweird.f32 %v1290
      %vm1297 = vmor %vm1295, %vm1296
      %v1298 = vsel %vm1297, %v1290, %v1294
      %v1299 = vand.u32 2147483647, %v1289
      %vm1300 = vcmp.eq.f32.partialorder %v1299, 8.507059e+37
      %v1301 = vand.u32 %v1289, 2147483648
      %v1302 = vor.u32 1.1754944e-38, %v1301
      %v1303 = vsel %vm1300, %v1302, %v1298
      %v1304 = vmul.f32 1.0, %v1303
      %v1305 = vadd.f32 %v1259, %v459
      %1307 = vrot.lane.b32.xlu0 %v1305, 64
      %v1308 = vpop.permute.xlu0 %1307
      %v1310 = vmul.f32 %v1304, %v1308
      %1312 = vrot.lane.b32.xlu0 %v1310, 64
      %v1313 = vpop.permute.xlu0 %1312
      %v1315 = vadd.f32 %v1284, %v1313
      %v1316 = vtanh.pop %v1315
      %v1317 = vsub.f32 1.0, %v1304
      %1319 = vrot.lane.b32.xlu0 %v1316, 96
      %v1320 = vpop.permute.xlu0 %1319
      %v1322 = vmul.f32 %v1317, %v1320
      %v1323 = vmul.f32 %v1304, %v1184
      %v1324 = vadd.f32 %v1322, %v1323
      %s1325 = scalar_lea.vmem [#allocation20], 8
      %v1326 = vld [vmem:[%s1325] sm:$0xff]
      %v1327 = vadd.f32 %v1326, %v1281
      %v1328 = vxor.u32 %v1327, 2147483648
      %v1329 = vmul.f32 %v1328, 1.442695
      %v1330 = vpow.pop %v1329
      %v1331 = vadd.f32 %v1330, 1.0
      %v1332 = vrcp.pop %v1331
      %v1333 = vmul.f32 %v1331, %v1332
      %v1334 = vsub.f32 1.0, %v1333
      %v1335 = vmul.f32 %v1332, %v1334
      %v1336 = vadd.f32 %v1332, %v1335
      %vm1337 = vweird.f32 %v1331
      %vm1338 = vweird.f32 %v1332
      %vm1339 = vmor %vm1337, %vm1338
      %v1340 = vsel %vm1339, %v1332, %v1336
      %v1341 = vand.u32 2147483647, %v1331
      %vm1342 = vcmp.eq.f32.partialorder %v1341, 8.507059e+37
      %v1343 = vand.u32 %v1331, 2147483648
      %v1344 = vor.u32 1.1754944e-38, %v1343
      %v1345 = vsel %vm1342, %v1344, %v1340
      %v1346 = vmul.f32 1.0, %v1345
      %v1347 = vadd.f32 %v1281, %v506
      %1349 = vrot.lane.b32.xlu0 %v1347, 64
      %v1350 = vpop.permute.xlu0 %1349
      %v1352 = vmul.f32 %v1346, %v1350
      %1354 = vrot.lane.b32.xlu0 %v1352, 64
      %v1355 = vpop.permute.xlu0 %1354
      %v1357 = vadd.f32 %v1326, %v1355
      %v1358 = vtanh.pop %v1357
      %v1359 = vsub.f32 1.0, %v1346
      %1361 = vrot.lane.b32.xlu0 %v1358, 96
      %v1362 = vpop.permute.xlu0 %1361
      %v1364 = vmul.f32 %v1359, %v1362
      %v1365 = vmul.f32 %v1346, %v1226
      %v1366 = vadd.f32 %v1364, %v1365
      %1368 = vrot.lane.b32.xlu0 %v1324, 96
      %v1369 = vpop.permute.xlu0 %1368
      %s1371 = scalar_lea.vmem [#allocation2], 48
      %1372 = vst.msk [vmem:[%s1371] sm:$0xff] %vm391, %v1369
      %1374 = vrot.lane.b32.xlu0 %v1366, 96
      %v1375 = vpop.permute.xlu0 %1374
      %s1377 = scalar_lea.vmem [#allocation3], 8
      %1378 = vst.msk [vmem:[%s1377] sm:$0xff] %vm391, %v1375
      %v1379 = vsel %vm391, %v1369, 0
      %1381 = vmatpush.msra.mxu0 0.0
      %1382 = vmatpush.msra.mxu0 0.0
      %1383 = vmatpush.msra.mxu0 0.0
      %1384 = vmatpush.msra.mxu0 0.0
      %1385 = vmatpush.msra.mxu0 0.0
      %1386 = vmatpush.msra.mxu0 0.0
      %1387 = vmatpush.msra.mxu0 0.0
      %1388 = vmatpush.msra.mxu0 0.0
      %1389 = vmatpush.msra.mxu0 0.0
      %1390 = vmatpush.msra.mxu0 0.0
      %1391 = vmatpush.msra.mxu0 0.0
      %1392 = vmatpush.msra.mxu0 0.0
      %1393 = vmatpush.msra.mxu0 %v383
      %1394 = vmatpush.msra.mxu0 %v382
      %1395 = vmatpush.msra.mxu0 %v381
      %1396 = vmatpush.msra.mxu0 %v380
      %1397 = vmatmul.f32.gmra.mxu0 %v1379
      %v1398 = vpop.f32.mrf.mxu0
      %v1399 = vadd.f32 0.0, %v1398
      %1400 = vdwg.mxu0
      %v1401 = vsel %vm391, %v1375, 0
      %1403 = vmatpush.msra.mxu0 0.0
      %1404 = vmatpush.msra.mxu0 0.0
      %1405 = vmatpush.msra.mxu0 0.0
      %1406 = vmatpush.msra.mxu0 0.0
      %1407 = vmatpush.msra.mxu0 0.0
      %1408 = vmatpush.msra.mxu0 0.0
      %1409 = vmatpush.msra.mxu0 0.0
      %1410 = vmatpush.msra.mxu0 0.0
      %1411 = vmatpush.msra.mxu0 0.0
      %1412 = vmatpush.msra.mxu0 0.0
      %1413 = vmatpush.msra.mxu0 0.0
      %1414 = vmatpush.msra.mxu0 0.0
      %1415 = vmatpush.msra.mxu0 %v387
      %1416 = vmatpush.msra.mxu0 %v386
      %1417 = vmatpush.msra.mxu0 %v385
      %1418 = vmatpush.msra.mxu0 %v384
      %1419 = vmatmul.f32.gmra.mxu0 %v1401
      %v1420 = vpop.f32.mrf.mxu0
      %v1421 = vadd.f32 0.0, %v1420
      %1422 = vdwg.mxu0
      %s1423 = scalar_lea.vmem [#allocation19], 56
      %v1424 = vld [vmem:[%s1423] sm:$0xff]
      %v1425 = vadd.f32 %v1424, %v1399
      %v1426 = vxor.u32 %v1425, 2147483648
      %v1427 = vmul.f32 %v1426, 1.442695
      %v1428 = vpow.pop %v1427
      %v1429 = vadd.f32 %v1428, 1.0
      %v1430 = vrcp.pop %v1429
      %v1431 = vmul.f32 %v1429, %v1430
      %v1432 = vsub.f32 1.0, %v1431
      %v1433 = vmul.f32 %v1430, %v1432
      %v1434 = vadd.f32 %v1430, %v1433
      %vm1435 = vweird.f32 %v1429
      %vm1436 = vweird.f32 %v1430
      %vm1437 = vmor %vm1435, %vm1436
      %v1438 = vsel %vm1437, %v1430, %v1434
      %v1439 = vand.u32 2147483647, %v1429
      %vm1440 = vcmp.eq.f32.partialorder %v1439, 8.507059e+37
      %v1441 = vand.u32 %v1429, 2147483648
      %v1442 = vor.u32 1.1754944e-38, %v1441
      %v1443 = vsel %vm1440, %v1442, %v1438
      %v1444 = vmul.f32 1.0, %v1443
      %v1445 = vadd.f32 %v1399, %v459
      %1447 = vrot.lane.b32.xlu0 %v1445, 64
      %v1448 = vpop.permute.xlu0 %1447
      %v1450 = vmul.f32 %v1444, %v1448
      %1452 = vrot.lane.b32.xlu0 %v1450, 64
      %v1453 = vpop.permute.xlu0 %1452
      %v1455 = vadd.f32 %v1424, %v1453
      %v1456 = vtanh.pop %v1455
      %v1457 = vsub.f32 1.0, %v1444
      %1459 = vrot.lane.b32.xlu0 %v1456, 96
      %v1460 = vpop.permute.xlu0 %1459
      %v1462 = vmul.f32 %v1457, %v1460
      %v1463 = vmul.f32 %v1444, %v1324
      %v1464 = vadd.f32 %v1462, %v1463
      %v1465 = vld [vmem:[#allocation20] sm:$0xff]
      %v1466 = vadd.f32 %v1465, %v1421
      %v1467 = vxor.u32 %v1466, 2147483648
      %v1468 = vmul.f32 %v1467, 1.442695
      %v1469 = vpow.pop %v1468
      %v1470 = vadd.f32 %v1469, 1.0
      %v1471 = vrcp.pop %v1470
      %v1472 = vmul.f32 %v1470, %v1471
      %v1473 = vsub.f32 1.0, %v1472
      %v1474 = vmul.f32 %v1471, %v1473
      %v1475 = vadd.f32 %v1471, %v1474
      %vm1476 = vweird.f32 %v1470
      %vm1477 = vweird.f32 %v1471
      %vm1478 = vmor %vm1476, %vm1477
      %v1479 = vsel %vm1478, %v1471, %v1475
      %v1480 = vand.u32 2147483647, %v1470
      %vm1481 = vcmp.eq.f32.partialorder %v1480, 8.507059e+37
      %v1482 = vand.u32 %v1470, 2147483648
      %v1483 = vor.u32 1.1754944e-38, %v1482
      %v1484 = vsel %vm1481, %v1483, %v1479
      %v1485 = vmul.f32 1.0, %v1484
      %v1486 = vadd.f32 %v1421, %v506
      %1488 = vrot.lane.b32.xlu0 %v1486, 64
      %v1489 = vpop.permute.xlu0 %1488
      %v1491 = vmul.f32 %v1485, %v1489
      %1493 = vrot.lane.b32.xlu0 %v1491, 64
      %v1494 = vpop.permute.xlu0 %1493
      %v1496 = vadd.f32 %v1465, %v1494
      %v1497 = vtanh.pop %v1496
      %v1498 = vsub.f32 1.0, %v1485
      %1500 = vrot.lane.b32.xlu0 %v1497, 96
      %v1501 = vpop.permute.xlu0 %1500
      %v1503 = vmul.f32 %v1498, %v1501
      %v1504 = vmul.f32 %v1485, %v1366
      %v1505 = vadd.f32 %v1503, %v1504
      %1507 = vrot.lane.b32.xlu0 %v1464, 96
      %v1508 = vpop.permute.xlu0 %1507
      %s1510 = scalar_lea.vmem [#allocation2], 56
      %1511 = vst.msk [vmem:[%s1510] sm:$0xff] %vm391, %v1508
      %1513 = vrot.lane.b32.xlu0 %v1505, 96
      %v1514 = vpop.permute.xlu0 %1513
      %1516 = vst.msk [vmem:[#allocation3] sm:$0xff] %vm391, %v1514
    $region83: #{tpu_custom_call.1} parent=1
      #allocation21 [shape = 'u8[32768]{0}', space=vmem, size = 0x8000, scoped, tag = 'scoped memory for tpu_custom_call.1']
      %v1517 = vld [vmem:[#allocation13] sm:$0xf]
      %v1518 = vld [vmem:[#allocation13 + $0x4] sm:$0xf]
      %v1519 = vld [vmem:[#allocation13 + $0x8] sm:$0xf]
      %v1520 = vld [vmem:[#allocation13 + $0xc] sm:$0xf]
      %v1521 = vld [vmem:[#allocation13 + $0x10] sm:$0xf]
      %v1522 = vld [vmem:[#allocation13 + $0x14] sm:$0xf]
      %v1523 = vld [vmem:[#allocation13 + $0x18] sm:$0xf]
      %v1524 = vld [vmem:[#allocation13 + $0x1c] sm:$0xf]
      %v1525 = vld [vmem:[#allocation15] sm:$0xf]
      %v1526 = vld [vmem:[#allocation15 + $0x4] sm:$0xf]
      %v1527 = vld [vmem:[#allocation15 + $0x8] sm:$0xf]
      %v1528 = vld [vmem:[#allocation15 + $0xc] sm:$0xf]
      %v1529 = vld [vmem:[#allocation15 + $0x10] sm:$0xf]
      %v1530 = vld [vmem:[#allocation15 + $0x14] sm:$0xf]
      %v1531 = vld [vmem:[#allocation15 + $0x18] sm:$0xf]
      %v1532 = vld [vmem:[#allocation15 + $0x1c] sm:$0xf]
      %v1533 = vld [vmem:[#allocation2] sm:$0xff]
      %v1534 = vld [vmem:[#allocation2 + $0x8] sm:$0xff]
      %v1535 = vld [vmem:[#allocation2 + $0x10] sm:$0xff]
      %v1536 = vld [vmem:[#allocation2 + $0x18] sm:$0xff]
      %v1537 = vld [vmem:[#allocation2 + $0x20] sm:$0xff]
      %v1538 = vld [vmem:[#allocation2 + $0x28] sm:$0xff]
      %v1539 = vld [vmem:[#allocation2 + $0x30] sm:$0xff]
      %v1540 = vld [vmem:[#allocation2 + $0x38] sm:$0xff]
      %v1541 = vpack.c.bf16 %v1534, %v1533
      %v1542 = vpack.c.bf16 %v1536, %v1535
      %v1543 = vpack.c.bf16 %v1538, %v1537
      %v1544 = vpack.c.bf16 %v1540, %v1539
      %v1545 = vld [vmem:[#allocation3] sm:$0xff]
      %v1546 = vld [vmem:[#allocation3 + $0x8] sm:$0xff]
      %v1547 = vld [vmem:[#allocation3 + $0x10] sm:$0xff]
      %v1548 = vld [vmem:[#allocation3 + $0x18] sm:$0xff]
      %v1549 = vld [vmem:[#allocation3 + $0x20] sm:$0xff]
      %v1550 = vld [vmem:[#allocation3 + $0x28] sm:$0xff]
      %v1551 = vld [vmem:[#allocation3 + $0x30] sm:$0xff]
      %v1552 = vld [vmem:[#allocation3 + $0x38] sm:$0xff]
      %v1553 = vpack.c.bf16 %v1546, %v1545
      %v1554 = vpack.c.bf16 %v1548, %v1547
      %v1555 = vpack.c.bf16 %v1550, %v1549
      %v1556 = vpack.c.bf16 %v1552, %v1551
      %v1561 = vunpack.c.l.b16 %v1525
      %v1562 = vunpack.c.l.b16 %v1526
      %v1563 = vunpack.c.l.b16 %v1527
      %v1564 = vunpack.c.l.b16 %v1528
      %v1565 = vpack.c.b16 %v1562, %v1561
      %v1566 = vpack.c.b16 %v1564, %v1563
      %vm1569 = vcmask 261120
      %v1571 = vsel %vm1569, %v1553, 0
      %v1574 = vsel %vm1569, %v1554, 0
      %v1577 = vsel %vm1569, %v1555, 0
      %v1580 = vsel %vm1569, %v1556, 0
      %1582 = vmatpush.bf16.msra.mxu0 0
      %1583 = vmatpush.bf16.msra.mxu0 0
      %1584 = vmatpush.bf16.msra.mxu0 0
      %1585 = vmatpush.bf16.msra.mxu0 0
      %1586 = vmatpush.bf16.msra.mxu0 0
      %1587 = vmatpush.bf16.msra.mxu0 0
      %1588 = vmatpush.bf16.msra.mxu0 %v1566
      %1589 = vmatpush.bf16.msra.mxu0 %v1565
      %1590 = vmatmul.bf16.gmra.mxu0 %v1571
      %v1591 = vpop.f32.mrf.mxu0
      %v1592 = vadd.f32 0.0, %v1591
      %v1593 = vpop.f32.mrf.mxu0
      %v1594 = vadd.f32 0.0, %v1593
      %1595 = vmatmul.bf16.gmra.mxu0 %v1574
      %v1596 = vpop.f32.mrf.mxu0
      %v1597 = vadd.f32 0.0, %v1596
      %v1598 = vpop.f32.mrf.mxu0
      %v1599 = vadd.f32 0.0, %v1598
      %1600 = vmatmul.bf16.gmra.mxu0 %v1577
      %v1601 = vpop.f32.mrf.mxu0
      %v1602 = vadd.f32 0.0, %v1601
      %v1603 = vpop.f32.mrf.mxu0
      %v1604 = vadd.f32 0.0, %v1603
      %1605 = vmatmul.bf16.gmra.mxu0 %v1580
      %v1606 = vpop.f32.mrf.mxu0
      %v1607 = vadd.f32 0.0, %v1606
      %v1608 = vpop.f32.mrf.mxu0
      %v1609 = vadd.f32 0.0, %v1608
      %1610 = vdwg.mxu0
      %v1615 = vunpack.c.l.b16 %v1517
      %v1616 = vunpack.c.l.b16 %v1518
      %v1617 = vunpack.c.l.b16 %v1519
      %v1618 = vunpack.c.l.b16 %v1520
      %v1619 = vpack.c.b16 %v1616, %v1615
      %v1620 = vpack.c.b16 %v1618, %v1617
      %v1624 = vsel %vm1569, %v1541, 0
      %v1627 = vsel %vm1569, %v1542, 0
      %v1630 = vsel %vm1569, %v1543, 0
      %v1633 = vsel %vm1569, %v1544, 0
      %1635 = vmatpush.bf16.msra.mxu0 0
      %1636 = vmatpush.bf16.msra.mxu0 0
      %1637 = vmatpush.bf16.msra.mxu0 0
      %1638 = vmatpush.bf16.msra.mxu0 0
      %1639 = vmatpush.bf16.msra.mxu0 0
      %1640 = vmatpush.bf16.msra.mxu0 0
      %1641 = vmatpush.bf16.msra.mxu0 %v1620
      %1642 = vmatpush.bf16.msra.mxu0 %v1619
      %1643 = vmatmul.bf16.gmra.mxu0 %v1624
      %v1644 = vpop.f32.mrf.mxu0
      %v1645 = vadd.f32 %v1592, %v1644
      %v1646 = vpop.f32.mrf.mxu0
      %v1647 = vadd.f32 %v1594, %v1646
      %1648 = vmatmul.bf16.gmra.mxu0 %v1627
      %v1649 = vpop.f32.mrf.mxu0
      %v1650 = vadd.f32 %v1597, %v1649
      %v1651 = vpop.f32.mrf.mxu0
      %v1652 = vadd.f32 %v1599, %v1651
      %1653 = vmatmul.bf16.gmra.mxu0 %v1630
      %v1654 = vpop.f32.mrf.mxu0
      %v1655 = vadd.f32 %v1602, %v1654
      %v1656 = vpop.f32.mrf.mxu0
      %v1657 = vadd.f32 %v1604, %v1656
      %1658 = vmatmul.bf16.gmra.mxu0 %v1633
      %v1659 = vpop.f32.mrf.mxu0
      %v1660 = vadd.f32 %v1607, %v1659
      %v1661 = vpop.f32.mrf.mxu0
      %v1662 = vadd.f32 %v1609, %v1661
      %1663 = vdwg.mxu0
      %v1664 = vld [vmem:[%s10] sm:$0x1]
      %v1666 = vperm.slane %v1664, 0
      %v1668 = vadd.f32 %v1645, %v1666
      %v1669 = vadd.f32 %v1647, %v1666
      %v1670 = vadd.f32 %v1650, %v1666
      %v1671 = vadd.f32 %v1652, %v1666
      %v1672 = vadd.f32 %v1655, %v1666
      %v1673 = vadd.f32 %v1657, %v1666
      %v1674 = vadd.f32 %v1660, %v1666
      %v1675 = vadd.f32 %v1662, %v1666
      %vm1676 = vcmask 785408
      %1677 = vst.msk [vmem:[#allocation21] sm:$0xff] %vm1676, %v1668
      %1678 = vst.msk [vmem:[#allocation21 + $0x8] sm:$0xff] %vm1676, %v1669
      %1679 = vst.msk [vmem:[#allocation21 + $0x10] sm:$0xff] %vm1676, %v1670
      %1680 = vst.msk [vmem:[#allocation21 + $0x18] sm:$0xff] %vm1676, %v1671
      %1681 = vst.msk [vmem:[#allocation21 + $0x20] sm:$0xff] %vm1676, %v1672
      %1682 = vst.msk [vmem:[#allocation21 + $0x28] sm:$0xff] %vm1676, %v1673
      %1683 = vst.msk [vmem:[#allocation21 + $0x30] sm:$0xff] %vm1676, %v1674
      %1684 = vst.msk [vmem:[#allocation21 + $0x38] sm:$0xff] %vm1676, %v1675
      %v1685 = vld [vmem:[#allocation16] sm:$0xff]
      %v1686 = vld [vmem:[#allocation16 + $0x8] sm:$0xff]
      %v1687 = vld [vmem:[#allocation16 + $0x10] sm:$0xff]
      %v1688 = vld [vmem:[#allocation16 + $0x18] sm:$0xff]
      %v1689 = vld [vmem:[%s11] sm:$0x1]
      %v1691 = vsel %vm1569, 0.0, 0
      %1693 = vmatpush.msra.mxu0 0.0
      %1694 = vmatpush.msra.mxu0 0.0
      %1695 = vmatpush.msra.mxu0 0.0
      %1696 = vmatpush.msra.mxu0 0.0
      %1697 = vmatpush.msra.mxu0 0.0
      %1698 = vmatpush.msra.mxu0 0.0
      %1699 = vmatpush.msra.mxu0 0.0
      %1700 = vmatpush.msra.mxu0 0.0
      %1701 = vmatpush.msra.mxu0 0.0
      %1702 = vmatpush.msra.mxu0 0.0
      %1703 = vmatpush.msra.mxu0 0.0
      %1704 = vmatpush.msra.mxu0 0.0
      %1705 = vmatpush.msra.mxu0 %v1688
      %1706 = vmatpush.msra.mxu0 %v1687
      %1707 = vmatpush.msra.mxu0 %v1686
      %1708 = vmatpush.msra.mxu0 %v1685
      %1709 = vmatmul.f32.gmra.mxu0 %v1691
      %v1710 = vpop.f32.mrf.mxu0
      %v1711 = vadd.f32 0.0, %v1710
      %1712 = vdwg.mxu0
      %v1713 = vld [vmem:[#allocation21] sm:$0xff]
      %v1714 = vadd.f32 %v1713, %v1711
      %v1715 = vxor.u32 %v1714, 2147483648
      %v1716 = vmul.f32 %v1715, 1.442695
      %v1717 = vpow.pop %v1716
      %v1718 = vadd.f32 %v1717, 1.0
      %v1719 = vrcp.pop %v1718
      %v1720 = vmul.f32 %v1718, %v1719
      %v1721 = vsub.f32 1.0, %v1720
      %v1722 = vmul.f32 %v1719, %v1721
      %v1723 = vadd.f32 %v1719, %v1722
      %vm1724 = vweird.f32 %v1718
      %vm1725 = vweird.f32 %v1719
      %vm1726 = vmor %vm1724, %vm1725
      %v1727 = vsel %vm1726, %v1719, %v1723
      %v1728 = vand.u32 2147483647, %v1718
      %vm1729 = vcmp.eq.f32.partialorder %v1728, 8.507059e+37
      %v1730 = vand.u32 %v1718, 2147483648
      %v1731 = vor.u32 1.1754944e-38, %v1730
      %v1732 = vsel %vm1729, %v1731, %v1727
      %v1733 = vmul.f32 1.0, %v1732
      %v1735 = vperm.slane %v1689, 0
      %1736 = vrot.lane.b32.xlu0 %v1735, 64
      %v1737 = vpop.permute.xlu0 %1736
      %v1739 = vadd.f32 %v1711, %v1737
      %1741 = vrot.lane.b32.xlu0 %v1739, 64
      %v1742 = vpop.permute.xlu0 %1741
      %v1744 = vmul.f32 %v1733, %v1742
      %1746 = vrot.lane.b32.xlu0 %v1744, 64
      %v1747 = vpop.permute.xlu0 %1746
      %v1749 = vadd.f32 %v1713, %v1747
      %v1750 = vtanh.pop %v1749
      %v1751 = vsub.f32 1.0, %v1733
      %1753 = vrot.lane.b32.xlu0 %v1750, 96
      %v1754 = vpop.permute.xlu0 %1753
      %v1756 = vmul.f32 %v1751, %v1754
      %v1757 = vmul.f32 %v1733, 0.0
      %v1758 = vadd.f32 %v1756, %v1757
      %1760 = vrot.lane.b32.xlu0 %v1758, 96
      %v1761 = vpop.permute.xlu0 %1760
      %v1762 = vsel %vm1569, %v1761, 0
      %1764 = vmatpush.msra.mxu0 0.0
      %1765 = vmatpush.msra.mxu0 0.0
      %1766 = vmatpush.msra.mxu0 0.0
      %1767 = vmatpush.msra.mxu0 0.0
      %1768 = vmatpush.msra.mxu0 0.0
      %1769 = vmatpush.msra.mxu0 0.0
      %1770 = vmatpush.msra.mxu0 0.0
      %1771 = vmatpush.msra.mxu0 0.0
      %1772 = vmatpush.msra.mxu0 0.0
      %1773 = vmatpush.msra.mxu0 0.0
      %1774 = vmatpush.msra.mxu0 0.0
      %1775 = vmatpush.msra.mxu0 0.0
      %1776 = vmatpush.msra.mxu0 %v1688
      %1777 = vmatpush.msra.mxu0 %v1687
      %1778 = vmatpush.msra.mxu0 %v1686
      %1779 = vmatpush.msra.mxu0 %v1685
      %1780 = vmatmul.f32.gmra.mxu0 %v1762
      %v1781 = vpop.f32.mrf.mxu0
      %v1782 = vadd.f32 0.0, %v1781
      %1783 = vdwg.mxu0
      %s1784 = scalar_lea.vmem [#allocation21], 8
      %v1785 = vld [vmem:[%s1784] sm:$0xff]
      %v1786 = vadd.f32 %v1785, %v1782
      %v1787 = vxor.u32 %v1786, 2147483648
      %v1788 = vmul.f32 %v1787, 1.442695
      %v1789 = vpow.pop %v1788
      %v1790 = vadd.f32 %v1789, 1.0
      %v1791 = vrcp.pop %v1790
      %v1792 = vmul.f32 %v1790, %v1791
      %v1793 = vsub.f32 1.0, %v1792
      %v1794 = vmul.f32 %v1791, %v1793
      %v1795 = vadd.f32 %v1791, %v1794
      %vm1796 = vweird.f32 %v1790
      %vm1797 = vweird.f32 %v1791
      %vm1798 = vmor %vm1796, %vm1797
      %v1799 = vsel %vm1798, %v1791, %v1795
      %v1800 = vand.u32 2147483647, %v1790
      %vm1801 = vcmp.eq.f32.partialorder %v1800, 8.507059e+37
      %v1802 = vand.u32 %v1790, 2147483648
      %v1803 = vor.u32 1.1754944e-38, %v1802
      %v1804 = vsel %vm1801, %v1803, %v1799
      %v1805 = vmul.f32 1.0, %v1804
      %v1806 = vadd.f32 %v1782, %v1737
      %1808 = vrot.lane.b32.xlu0 %v1806, 64
      %v1809 = vpop.permute.xlu0 %1808
      %v1811 = vmul.f32 %v1805, %v1809
      %1813 = vrot.lane.b32.xlu0 %v1811, 64
      %v1814 = vpop.permute.xlu0 %1813
      %v1816 = vadd.f32 %v1785, %v1814
      %v1817 = vtanh.pop %v1816
      %v1818 = vsub.f32 1.0, %v1805
      %1820 = vrot.lane.b32.xlu0 %v1817, 96
      %v1821 = vpop.permute.xlu0 %1820
      %v1823 = vmul.f32 %v1818, %v1821
      %v1824 = vmul.f32 %v1805, %v1758
      %v1825 = vadd.f32 %v1823, %v1824
      %1827 = vrot.lane.b32.xlu0 %v1825, 96
      %v1828 = vpop.permute.xlu0 %1827
      %v1829 = vsel %vm1569, %v1828, 0
      %1831 = vmatpush.msra.mxu0 0.0
      %1832 = vmatpush.msra.mxu0 0.0
      %1833 = vmatpush.msra.mxu0 0.0
      %1834 = vmatpush.msra.mxu0 0.0
      %1835 = vmatpush.msra.mxu0 0.0
      %1836 = vmatpush.msra.mxu0 0.0
      %1837 = vmatpush.msra.mxu0 0.0
      %1838 = vmatpush.msra.mxu0 0.0
      %1839 = vmatpush.msra.mxu0 0.0
      %1840 = vmatpush.msra.mxu0 0.0
      %1841 = vmatpush.msra.mxu0 0.0
      %1842 = vmatpush.msra.mxu0 0.0
      %1843 = vmatpush.msra.mxu0 %v1688
      %1844 = vmatpush.msra.mxu0 %v1687
      %1845 = vmatpush.msra.mxu0 %v1686
      %1846 = vmatpush.msra.mxu0 %v1685
      %1847 = vmatmul.f32.gmra.mxu0 %v1829
      %v1848 = vpop.f32.mrf.mxu0
      %v1849 = vadd.f32 0.0, %v1848
      %1850 = vdwg.mxu0
      %s1851 = scalar_lea.vmem [#allocation21], 16
      %v1852 = vld [vmem:[%s1851] sm:$0xff]
      %v1853 = vadd.f32 %v1852, %v1849
      %v1854 = vxor.u32 %v1853, 2147483648
      %v1855 = vmul.f32 %v1854, 1.442695
      %v1856 = vpow.pop %v1855
      %v1857 = vadd.f32 %v1856, 1.0
      %v1858 = vrcp.pop %v1857
      %v1859 = vmul.f32 %v1857, %v1858
      %v1860 = vsub.f32 1.0, %v1859
      %v1861 = vmul.f32 %v1858, %v1860
      %v1862 = vadd.f32 %v1858, %v1861
      %vm1863 = vweird.f32 %v1857
      %vm1864 = vweird.f32 %v1858
      %vm1865 = vmor %vm1863, %vm1864
      %v1866 = vsel %vm1865, %v1858, %v1862
      %v1867 = vand.u32 2147483647, %v1857
      %vm1868 = vcmp.eq.f32.partialorder %v1867, 8.507059e+37
      %v1869 = vand.u32 %v1857, 2147483648
      %v1870 = vor.u32 1.1754944e-38, %v1869
      %v1871 = vsel %vm1868, %v1870, %v1866
      %v1872 = vmul.f32 1.0, %v1871
      %v1873 = vadd.f32 %v1849, %v1737
      %1875 = vrot.lane.b32.xlu0 %v1873, 64
      %v1876 = vpop.permute.xlu0 %1875
      %v1878 = vmul.f32 %v1872, %v1876
      %1880 = vrot.lane.b32.xlu0 %v1878, 64
      %v1881 = vpop.permute.xlu0 %1880
      %v1883 = vadd.f32 %v1852, %v1881
      %v1884 = vtanh.pop %v1883
      %v1885 = vsub.f32 1.0, %v1872
      %1887 = vrot.lane.b32.xlu0 %v1884, 96
      %v1888 = vpop.permute.xlu0 %1887
      %v1890 = vmul.f32 %v1885, %v1888
      %v1891 = vmul.f32 %v1872, %v1825
      %v1892 = vadd.f32 %v1890, %v1891
      %1894 = vrot.lane.b32.xlu0 %v1892, 96
      %v1895 = vpop.permute.xlu0 %1894
      %v1896 = vsel %vm1569, %v1895, 0
      %1898 = vmatpush.msra.mxu0 0.0
      %1899 = vmatpush.msra.mxu0 0.0
      %1900 = vmatpush.msra.mxu0 0.0
      %1901 = vmatpush.msra.mxu0 0.0
      %1902 = vmatpush.msra.mxu0 0.0
      %1903 = vmatpush.msra.mxu0 0.0
      %1904 = vmatpush.msra.mxu0 0.0
      %1905 = vmatpush.msra.mxu0 0.0
      %1906 = vmatpush.msra.mxu0 0.0
      %1907 = vmatpush.msra.mxu0 0.0
      %1908 = vmatpush.msra.mxu0 0.0
      %1909 = vmatpush.msra.mxu0 0.0
      %1910 = vmatpush.msra.mxu0 %v1688
      %1911 = vmatpush.msra.mxu0 %v1687
      %1912 = vmatpush.msra.mxu0 %v1686
      %1913 = vmatpush.msra.mxu0 %v1685
      %1914 = vmatmul.f32.gmra.mxu0 %v1896
      %v1915 = vpop.f32.mrf.mxu0
      %v1916 = vadd.f32 0.0, %v1915
      %1917 = vdwg.mxu0
      %s1918 = scalar_lea.vmem [#allocation21], 24
      %v1919 = vld [vmem:[%s1918] sm:$0xff]
      %v1920 = vadd.f32 %v1919, %v1916
      %v1921 = vxor.u32 %v1920, 2147483648
      %v1922 = vmul.f32 %v1921, 1.442695
      %v1923 = vpow.pop %v1922
      %v1924 = vadd.f32 %v1923, 1.0
      %v1925 = vrcp.pop %v1924
      %v1926 = vmul.f32 %v1924, %v1925
      %v1927 = vsub.f32 1.0, %v1926
      %v1928 = vmul.f32 %v1925, %v1927
      %v1929 = vadd.f32 %v1925, %v1928
      %vm1930 = vweird.f32 %v1924
      %vm1931 = vweird.f32 %v1925
      %vm1932 = vmor %vm1930, %vm1931
      %v1933 = vsel %vm1932, %v1925, %v1929
      %v1934 = vand.u32 2147483647, %v1924
      %vm1935 = vcmp.eq.f32.partialorder %v1934, 8.507059e+37
      %v1936 = vand.u32 %v1924, 2147483648
      %v1937 = vor.u32 1.1754944e-38, %v1936
      %v1938 = vsel %vm1935, %v1937, %v1933
      %v1939 = vmul.f32 1.0, %v1938
      %v1940 = vadd.f32 %v1916, %v1737
      %1942 = vrot.lane.b32.xlu0 %v1940, 64
      %v1943 = vpop.permute.xlu0 %1942
      %v1945 = vmul.f32 %v1939, %v1943
      %1947 = vrot.lane.b32.xlu0 %v1945, 64
      %v1948 = vpop.permute.xlu0 %1947
      %v1950 = vadd.f32 %v1919, %v1948
      %v1951 = vtanh.pop %v1950
      %v1952 = vsub.f32 1.0, %v1939
      %1954 = vrot.lane.b32.xlu0 %v1951, 96
      %v1955 = vpop.permute.xlu0 %1954
      %v1957 = vmul.f32 %v1952, %v1955
      %v1958 = vmul.f32 %v1939, %v1892
      %v1959 = vadd.f32 %v1957, %v1958
      %1961 = vrot.lane.b32.xlu0 %v1959, 96
      %v1962 = vpop.permute.xlu0 %1961
      %v1963 = vsel %vm1569, %v1962, 0
      %1965 = vmatpush.msra.mxu0 0.0
      %1966 = vmatpush.msra.mxu0 0.0
      %1967 = vmatpush.msra.mxu0 0.0
      %1968 = vmatpush.msra.mxu0 0.0
      %1969 = vmatpush.msra.mxu0 0.0
      %1970 = vmatpush.msra.mxu0 0.0
      %1971 = vmatpush.msra.mxu0 0.0
      %1972 = vmatpush.msra.mxu0 0.0
      %1973 = vmatpush.msra.mxu0 0.0
      %1974 = vmatpush.msra.mxu0 0.0
      %1975 = vmatpush.msra.mxu0 0.0
      %1976 = vmatpush.msra.mxu0 0.0
      %1977 = vmatpush.msra.mxu0 %v1688
      %1978 = vmatpush.msra.mxu0 %v1687
      %1979 = vmatpush.msra.mxu0 %v1686
      %1980 = vmatpush.msra.mxu0 %v1685
      %1981 = vmatmul.f32.gmra.mxu0 %v1963
      %v1982 = vpop.f32.mrf.mxu0
      %v1983 = vadd.f32 0.0, %v1982
      %1984 = vdwg.mxu0
      %s1985 = scalar_lea.vmem [#allocation21], 32
      %v1986 = vld [vmem:[%s1985] sm:$0xff]
      %v1987 = vadd.f32 %v1986, %v1983
      %v1988 = vxor.u32 %v1987, 2147483648
      %v1989 = vmul.f32 %v1988, 1.442695
      %v1990 = vpow.pop %v1989
      %v1991 = vadd.f32 %v1990, 1.0
      %v1992 = vrcp.pop %v1991
      %v1993 = vmul.f32 %v1991, %v1992
      %v1994 = vsub.f32 1.0, %v1993
      %v1995 = vmul.f32 %v1992, %v1994
      %v1996 = vadd.f32 %v1992, %v1995
      %vm1997 = vweird.f32 %v1991
      %vm1998 = vweird.f32 %v1992
      %vm1999 = vmor %vm1997, %vm1998
      %v2000 = vsel %vm1999, %v1992, %v1996
      %v2001 = vand.u32 2147483647, %v1991
      %vm2002 = vcmp.eq.f32.partialorder %v2001, 8.507059e+37
      %v2003 = vand.u32 %v1991, 2147483648
      %v2004 = vor.u32 1.1754944e-38, %v2003
      %v2005 = vsel %vm2002, %v2004, %v2000
      %v2006 = vmul.f32 1.0, %v2005
      %v2007 = vadd.f32 %v1983, %v1737
      %2009 = vrot.lane.b32.xlu0 %v2007, 64
      %v2010 = vpop.permute.xlu0 %2009
      %v2012 = vmul.f32 %v2006, %v2010
      %2014 = vrot.lane.b32.xlu0 %v2012, 64
      %v2015 = vpop.permute.xlu0 %2014
      %v2017 = vadd.f32 %v1986, %v2015
      %v2018 = vtanh.pop %v2017
      %v2019 = vsub.f32 1.0, %v2006
      %2021 = vrot.lane.b32.xlu0 %v2018, 96
      %v2022 = vpop.permute.xlu0 %2021
      %v2024 = vmul.f32 %v2019, %v2022
      %v2025 = vmul.f32 %v2006, %v1959
      %v2026 = vadd.f32 %v2024, %v2025
      %2028 = vrot.lane.b32.xlu0 %v2026, 96
      %v2029 = vpop.permute.xlu0 %2028
      %v2030 = vsel %vm1569, %v2029, 0
      %2032 = vmatpush.msra.mxu0 0.0
      %2033 = vmatpush.msra.mxu0 0.0
      %2034 = vmatpush.msra.mxu0 0.0
      %2035 = vmatpush.msra.mxu0 0.0
      %2036 = vmatpush.msra.mxu0 0.0
      %2037 = vmatpush.msra.mxu0 0.0
      %2038 = vmatpush.msra.mxu0 0.0
      %2039 = vmatpush.msra.mxu0 0.0
      %2040 = vmatpush.msra.mxu0 0.0
      %2041 = vmatpush.msra.mxu0 0.0
      %2042 = vmatpush.msra.mxu0 0.0
      %2043 = vmatpush.msra.mxu0 0.0
      %2044 = vmatpush.msra.mxu0 %v1688
      %2045 = vmatpush.msra.mxu0 %v1687
      %2046 = vmatpush.msra.mxu0 %v1686
      %2047 = vmatpush.msra.mxu0 %v1685
      %2048 = vmatmul.f32.gmra.mxu0 %v2030
      %v2049 = vpop.f32.mrf.mxu0
      %v2050 = vadd.f32 0.0, %v2049
      %2051 = vdwg.mxu0
      %s2052 = scalar_lea.vmem [#allocation21], 40
      %v2053 = vld [vmem:[%s2052] sm:$0xff]
      %v2054 = vadd.f32 %v2053, %v2050
      %v2055 = vxor.u32 %v2054, 2147483648
      %v2056 = vmul.f32 %v2055, 1.442695
      %v2057 = vpow.pop %v2056
      %v2058 = vadd.f32 %v2057, 1.0
      %v2059 = vrcp.pop %v2058
      %v2060 = vmul.f32 %v2058, %v2059
      %v2061 = vsub.f32 1.0, %v2060
      %v2062 = vmul.f32 %v2059, %v2061
      %v2063 = vadd.f32 %v2059, %v2062
      %vm2064 = vweird.f32 %v2058
      %vm2065 = vweird.f32 %v2059
      %vm2066 = vmor %vm2064, %vm2065
      %v2067 = vsel %vm2066, %v2059, %v2063
      %v2068 = vand.u32 2147483647, %v2058
      %vm2069 = vcmp.eq.f32.partialorder %v2068, 8.507059e+37
      %v2070 = vand.u32 %v2058, 2147483648
      %v2071 = vor.u32 1.1754944e-38, %v2070
      %v2072 = vsel %vm2069, %v2071, %v2067
      %v2073 = vmul.f32 1.0, %v2072
      %v2074 = vadd.f32 %v2050, %v1737
      %2076 = vrot.lane.b32.xlu0 %v2074, 64
      %v2077 = vpop.permute.xlu0 %2076
      %v2079 = vmul.f32 %v2073, %v2077
      %2081 = vrot.lane.b32.xlu0 %v2079, 64
      %v2082 = vpop.permute.xlu0 %2081
      %v2084 = vadd.f32 %v2053, %v2082
      %v2085 = vtanh.pop %v2084
      %v2086 = vsub.f32 1.0, %v2073
      %2088 = vrot.lane.b32.xlu0 %v2085, 96
      %v2089 = vpop.permute.xlu0 %2088
      %v2091 = vmul.f32 %v2086, %v2089
      %v2092 = vmul.f32 %v2073, %v2026
      %v2093 = vadd.f32 %v2091, %v2092
      %2095 = vrot.lane.b32.xlu0 %v2093, 96
      %v2096 = vpop.permute.xlu0 %2095
      %v2097 = vsel %vm1569, %v2096, 0
      %2099 = vmatpush.msra.mxu0 0.0
      %2100 = vmatpush.msra.mxu0 0.0
      %2101 = vmatpush.msra.mxu0 0.0
      %2102 = vmatpush.msra.mxu0 0.0
      %2103 = vmatpush.msra.mxu0 0.0
      %2104 = vmatpush.msra.mxu0 0.0
      %2105 = vmatpush.msra.mxu0 0.0
      %2106 = vmatpush.msra.mxu0 0.0
      %2107 = vmatpush.msra.mxu0 0.0
      %2108 = vmatpush.msra.mxu0 0.0
      %2109 = vmatpush.msra.mxu0 0.0
      %2110 = vmatpush.msra.mxu0 0.0
      %2111 = vmatpush.msra.mxu0 %v1688
      %2112 = vmatpush.msra.mxu0 %v1687
      %2113 = vmatpush.msra.mxu0 %v1686
      %2114 = vmatpush.msra.mxu0 %v1685
      %2115 = vmatmul.f32.gmra.mxu0 %v2097
      %v2116 = vpop.f32.mrf.mxu0
      %v2117 = vadd.f32 0.0, %v2116
      %2118 = vdwg.mxu0
      %s2119 = scalar_lea.vmem [#allocation21], 48
      %v2120 = vld [vmem:[%s2119] sm:$0xff]
      %v2121 = vadd.f32 %v2120, %v2117
      %v2122 = vxor.u32 %v2121, 2147483648
      %v2123 = vmul.f32 %v2122, 1.442695
      %v2124 = vpow.pop %v2123
      %v2125 = vadd.f32 %v2124, 1.0
      %v2126 = vrcp.pop %v2125
      %v2127 = vmul.f32 %v2125, %v2126
      %v2128 = vsub.f32 1.0, %v2127
      %v2129 = vmul.f32 %v2126, %v2128
      %v2130 = vadd.f32 %v2126, %v2129
      %vm2131 = vweird.f32 %v2125
      %vm2132 = vweird.f32 %v2126
      %vm2133 = vmor %vm2131, %vm2132
      %v2134 = vsel %vm2133, %v2126, %v2130
      %v2135 = vand.u32 2147483647, %v2125
      %vm2136 = vcmp.eq.f32.partialorder %v2135, 8.507059e+37
      %v2137 = vand.u32 %v2125, 2147483648
      %v2138 = vor.u32 1.1754944e-38, %v2137
      %v2139 = vsel %vm2136, %v2138, %v2134
      %v2140 = vmul.f32 1.0, %v2139
      %v2141 = vadd.f32 %v2117, %v1737
      %2143 = vrot.lane.b32.xlu0 %v2141, 64
      %v2144 = vpop.permute.xlu0 %2143
      %v2146 = vmul.f32 %v2140, %v2144
      %2148 = vrot.lane.b32.xlu0 %v2146, 64
      %v2149 = vpop.permute.xlu0 %2148
      %v2151 = vadd.f32 %v2120, %v2149
      %v2152 = vtanh.pop %v2151
      %v2153 = vsub.f32 1.0, %v2140
      %2155 = vrot.lane.b32.xlu0 %v2152, 96
      %v2156 = vpop.permute.xlu0 %2155
      %v2158 = vmul.f32 %v2153, %v2156
      %v2159 = vmul.f32 %v2140, %v2093
      %v2160 = vadd.f32 %v2158, %v2159
      %2162 = vrot.lane.b32.xlu0 %v2160, 96
      %v2163 = vpop.permute.xlu0 %2162
      %v2164 = vsel %vm1569, %v2163, 0
      %2166 = vmatpush.msra.mxu0 0.0
      %2167 = vmatpush.msra.mxu0 0.0
      %2168 = vmatpush.msra.mxu0 0.0
      %2169 = vmatpush.msra.mxu0 0.0
      %2170 = vmatpush.msra.mxu0 0.0
      %2171 = vmatpush.msra.mxu0 0.0
      %2172 = vmatpush.msra.mxu0 0.0
      %2173 = vmatpush.msra.mxu0 0.0
      %2174 = vmatpush.msra.mxu0 0.0
      %2175 = vmatpush.msra.mxu0 0.0
      %2176 = vmatpush.msra.mxu0 0.0
      %2177 = vmatpush.msra.mxu0 0.0
      %2178 = vmatpush.msra.mxu0 %v1688
      %2179 = vmatpush.msra.mxu0 %v1687
      %2180 = vmatpush.msra.mxu0 %v1686
      %2181 = vmatpush.msra.mxu0 %v1685
      %2182 = vmatmul.f32.gmra.mxu0 %v2164
      %v2183 = vpop.f32.mrf.mxu0
      %v2184 = vadd.f32 0.0, %v2183
      %2185 = vdwg.mxu0
      %s2186 = scalar_lea.vmem [#allocation21], 56
      %v2187 = vld [vmem:[%s2186] sm:$0xff]
      %v2188 = vadd.f32 %v2187, %v2184
      %v2189 = vxor.u32 %v2188, 2147483648
      %v2190 = vmul.f32 %v2189, 1.442695
      %v2191 = vpow.pop %v2190
      %v2192 = vadd.f32 %v2191, 1.0
      %v2193 = vrcp.pop %v2192
      %v2194 = vmul.f32 %v2192, %v2193
      %v2195 = vsub.f32 1.0, %v2194
      %v2196 = vmul.f32 %v2193, %v2195
      %v2197 = vadd.f32 %v2193, %v2196
      %vm2198 = vweird.f32 %v2192
      %vm2199 = vweird.f32 %v2193
      %vm2200 = vmor %vm2198, %vm2199
      %v2201 = vsel %vm2200, %v2193, %v2197
      %v2202 = vand.u32 2147483647, %v2192
      %vm2203 = vcmp.eq.f32.partialorder %v2202, 8.507059e+37
      %v2204 = vand.u32 %v2192, 2147483648
      %v2205 = vor.u32 1.1754944e-38, %v2204
      %v2206 = vsel %vm2203, %v2205, %v2201
      %v2207 = vmul.f32 1.0, %v2206
      %v2208 = vadd.f32 %v2184, %v1737
      %2210 = vrot.lane.b32.xlu0 %v2208, 64
      %v2211 = vpop.permute.xlu0 %2210
      %v2213 = vmul.f32 %v2207, %v2211
      %2215 = vrot.lane.b32.xlu0 %v2213, 64
      %v2216 = vpop.permute.xlu0 %2215
      %v2218 = vadd.f32 %v2187, %v2216
      %v2219 = vtanh.pop %v2218
      %v2220 = vsub.f32 1.0, %v2207
      %2222 = vrot.lane.b32.xlu0 %v2219, 96
      %v2223 = vpop.permute.xlu0 %2222
      %v2225 = vmul.f32 %v2220, %v2223
      %v2226 = vmul.f32 %v2207, %v2160
      %v2227 = vadd.f32 %v2225, %v2226
      %s2228 = scalar_lea.vmem [#allocation2], 56
      %v2229 = vld [vmem:[%s2228] sm:$0xff]
      %v2230 = vpack.c.bf16 %v2229, %v2229
      %s2231 = scalar_lea.vmem [#allocation3], 56
      %v2232 = vld [vmem:[%s2231] sm:$0xff]
      %v2233 = vpack.c.bf16 %v2232, %v2232
      %v2238 = vunpack.c.l.b16 %v1529
      %v2239 = vunpack.c.l.b16 %v1530
      %v2240 = vunpack.c.l.b16 %v1531
      %v2241 = vunpack.c.l.b16 %v1532
      %v2242 = vpack.c.b16 %v2239, %v2238
      %v2243 = vpack.c.b16 %v2241, %v2240
      %v2247 = vsel %vm1569, %v2233, 0
      %2249 = vmatpush.bf16.msra.mxu0 0
      %2250 = vmatpush.bf16.msra.mxu0 0
      %2251 = vmatpush.bf16.msra.mxu0 0
      %2252 = vmatpush.bf16.msra.mxu0 0
      %2253 = vmatpush.bf16.msra.mxu0 0
      %2254 = vmatpush.bf16.msra.mxu0 0
      %2255 = vmatpush.bf16.msra.mxu0 %v2243
      %2256 = vmatpush.bf16.msra.mxu0 %v2242
      %2257 = vmatmul.bf16.gmra.mxu0 %v2247
      %v2258 = vpop.f32.mrf.mxu0
      %v2259 = vadd.f32 0.0, %v2258
      %v2260 = vpop.f32.mrf.mxu0
      %2261 = vdwg.mxu0
      %v2266 = vunpack.c.l.b16 %v1521
      %v2267 = vunpack.c.l.b16 %v1522
      %v2268 = vunpack.c.l.b16 %v1523
      %v2269 = vunpack.c.l.b16 %v1524
      %v2270 = vpack.c.b16 %v2267, %v2266
      %v2271 = vpack.c.b16 %v2269, %v2268
      %v2275 = vsel %vm1569, %v2230, 0
      %2277 = vmatpush.bf16.msra.mxu0 0
      %2278 = vmatpush.bf16.msra.mxu0 0
      %2279 = vmatpush.bf16.msra.mxu0 0
      %2280 = vmatpush.bf16.msra.mxu0 0
      %2281 = vmatpush.bf16.msra.mxu0 0
      %2282 = vmatpush.bf16.msra.mxu0 0
      %2283 = vmatpush.bf16.msra.mxu0 %v2271
      %2284 = vmatpush.bf16.msra.mxu0 %v2270
      %2285 = vmatmul.bf16.gmra.mxu0 %v2275
      %v2286 = vpop.f32.mrf.mxu0
      %v2287 = vadd.f32 %v2259, %v2286
      %v2288 = vpop.f32.mrf.mxu0
      %2289 = vdwg.mxu0
      %s2290 = scalar_lea.vmem %s10, 1
      %v2291 = vld [vmem:[%s2290] sm:$0x1]
      %v2293 = vperm.slane %v2291, 0
      %v2295 = vadd.f32 %v2287, %v2293
      %v2296 = vxor.u32 %v2295, 2147483648
      %v2297 = vmul.f32 %v2296, 1.442695
      %v2298 = vpow.pop %v2297
      %v2299 = vadd.f32 %v2298, 1.0
      %v2300 = vrcp.pop %v2299
      %v2301 = vmul.f32 %v2299, %v2300
      %v2302 = vsub.f32 1.0, %v2301
      %v2303 = vmul.f32 %v2300, %v2302
      %v2304 = vadd.f32 %v2300, %v2303
      %vm2305 = vweird.f32 %v2299
      %vm2306 = vweird.f32 %v2300
      %vm2307 = vmor %vm2305, %vm2306
      %v2308 = vsel %vm2307, %v2300, %v2304
      %v2309 = vand.u32 2147483647, %v2299
      %vm2310 = vcmp.eq.f32.partialorder %v2309, 8.507059e+37
      %v2311 = vand.u32 %v2299, 2147483648
      %v2312 = vor.u32 1.1754944e-38, %v2311
      %v2313 = vsel %vm2310, %v2312, %v2308
      %v2314 = vmul.f32 1.0, %v2313
      %s2315 = scalar_lea.vmem %s11, 1
      %v2316 = vld [vmem:[%s2315] sm:$0x1]
      %v2318 = vperm.slane %v2316, 0
      %v2320 = vmul.f32 %v2314, %v2318
      %2322 = vrot.lane.b32.xlu0 %v2320, 64
      %v2323 = vpop.permute.xlu0 %2322
      %v2325 = vadd.f32 %v2295, %v2323
      %v2326 = vtanh.pop %v2325
      %v2327 = vsub.f32 1.0, %v2314
      %2329 = vrot.lane.b32.xlu0 %v2326, 96
      %v2330 = vpop.permute.xlu0 %2329
      %v2332 = vmul.f32 %v2327, %v2330
      %2334 = vrot.lane.b32.xlu0 %v2227, 96
      %v2335 = vpop.permute.xlu0 %2334
      %v2337 = vsel %vm1569, %v2335, %v2332
      %vm2338 = vcmask 523264
      %2339 = vst.msk [vmem:[#allocation18] sm:$0xff] %vm2338, %v2337
    // Predicated region
    $region84: #{tpu_custom_call.1} parent=1 // pred_check
      _
    $region85: #{tpu_custom_call.1} parent=1 // pred_check_branch
      %2341 = sbr.rel (0) target = $region87
    $region86: #{tpu_custom_call.1} parent=1 // pred_region
      %2343 = vsyncadd [#allocation6], 0
      %s2345 = sshll.u32 [#allocation18], 4
      %s2346 = int_to_ptr.vmem [resolvable:$true] %s2345
      %s2347 = sshll.u32 %s12, 4
      %s2348 = int_to_ptr.hbm [resolvable:$true] %s2347
      %2350 = dma.vmem_to_hbm [thread:$0]  %s2346, 128, %s2348, [#allocation6]
    $region87: #{tpu_custom_call.1} parent=1 // pred_fallthru
      _
    // Predicated region
    $region88: #{tpu_custom_call.1} parent=1 // pred_check
      _
    $region89: #{tpu_custom_call.1} parent=1 // pred_check_branch
      %2352 = sbr.rel (0) target = $region91
    $region90: #{tpu_custom_call.1} parent=1 // pred_region
      %2354 = dma.done [#allocation6], 128
    $region91: #{tpu_custom_call.1} parent=1 // pred_fallthru
      _
    %2355 = vsyncpa [#allocation5], 1
    %2356 = vsyncpa [#allocation8], 1
    %2357 = vsyncpa [#allocation11], 1
    %2358 = vsyncpa [#allocation14], 1
    %2359 = vsyncpa [#allocation17], 1
    %2360 = vsyncpa [#allocation6], 1

</llo_original>
